<compile_context>
chip_gen: v6e
topology: v6e:2x2x1
jax: 0.10.0
libtpu: 0.0.40
codegen_flags: <defaults>
</compile_context>

<pallas_src>
import jax
import jax.numpy as jnp
from jax.experimental import pallas as pl
from jax.experimental.pallas import tpu as pltpu

IN_DIM = 3
IN_PAD = 128           # lane-dense padded width of the node features
HIDDEN = 256
ACTION_DIMS = 5
OUT_DIM = 3
OUT_PAD = 128          # lane-dense padded width of the final layer
NODES_PER_GRAPH = 64   # hard-coded in the PyTorch module (reshape to (*, 64, 256))

# MXU operand dtype. bf16 operands + f32 accumulation is ~3x fewer MXU pushes
# than f32 operands on v5e/v6e/v7x; set to jnp.float32 for bit-tight numerics.
MXU_DTYPE = jnp.bfloat16


def _small_k_dot(xv, w):
    """(N, >=K) @ (K, C) with tiny static K as VPU broadcast-FMAs (f32, MXU stays free)."""
    acc = xv[:, 0:1] * w[0:1, :]
    for i in range(1, w.shape[0]):
        acc = acc + xv[:, i:i + 1] * w[i:i + 1, :]
    return acc


def gnn_centroid_kernel(adj_ref, x_ref, a_ref,
                        w1_ref, b1_ref, w2_ref, b2_ref, w3_ref, b3_ref,
                        w4x_ref, w4a_ref, b4_ref, w5_ref, b5_ref,
                        w6_ref, b6_ref, out_ref):
    adj = adj_ref[0]                              # (bn, bn) block-diag norm adjacency (bf16)
    bn = adj.shape[0]
    n_g = bn // NODES_PER_GRAPH                   # graphs in this block (static)

    def aggregate(pre):                           # A_norm @ pre on the MXU, f32 accumulation
        return jnp.dot(adj, pre.astype(adj.dtype),
                       preferred_element_type=jnp.float32)

    def dense(h, w_ref):                          # h @ W on the MXU, f32 accumulation
        return jnp.dot(h.astype(w_ref.dtype), w_ref[...],
                       preferred_element_type=jnp.float32)

    def relu(v, b_ref):                           # bias + ReLU in f32
        return jnp.maximum(v + b_ref[...], 0.0)

    # conv1, reassociated: relu((A @ X) @ W1 + b1). Aggregation runs on the
    # (lane-padded) 3-wide features; the K=3 projection is VPU broadcast-FMAs.
    agg_x = aggregate(x_ref[...])                 # (bn, IN_PAD) f32, only cols 0..2 used
    h = relu(_small_k_dot(agg_x, w1_ref[...]), b1_ref)

    # conv2, conv3
    h = relu(aggregate(dense(h, w2_ref)), b2_ref)
    h = relu(aggregate(dense(h, w3_ref)), b3_ref)

    # conv4: A @ (cat([h, action_per_node]) @ W4) == A @ (h @ W4x + act @ W4a),
    # with the action projected once per graph and broadcast over its 64 nodes.
    act = _small_k_dot(a_ref[0], w4a_ref[...])    # (n_g, 256) f32
    act_nodes = jnp.concatenate(
        [jnp.broadcast_to(act[g:g + 1, :], (NODES_PER_GRAPH, HIDDEN))
         for g in range(n_g)], axis=0)            # (bn, 256)
    h = relu(aggregate(dense(h, w4x_ref) + act_nodes), b4_ref)

    # conv5, conv6 (conv6 weight/bias zero-padded to 128 output lanes)
    h = relu(aggregate(dense(h, w5_ref)), b5_ref)
    out_ref[...] = relu(aggregate(dense(h, w6_ref)), b6_ref)


def build_norm_adj(edge_index, num_nodes):
    """Dense D^-1/2 (A + I) D^-1/2, A[target, source] = 1 per edge (PyG gcn_norm)."""
    src, tgt = edge_index[0], edge_index[1]
    a = jnp.zeros((num_nodes, num_nodes), jnp.float32).at[tgt, src].add(1.0)
    a = a + jnp.eye(num_nodes, dtype=jnp.float32)
    dinv = jax.lax.rsqrt(jnp.sum(a, axis=1))
    return a * dinv[:, None] * dinv[None, :]


def build_norm_adj_blocks(edge_index, num_nodes, block_nodes):
    """Per-block dense slabs of the block-diagonal normalized adjacency.

    Precondition (PyG Batch semantics, matches the module's nnodes/64 reshape):
    edges never cross 64-node graph boundaries, hence never cross blocks that
    are a multiple of 64 nodes.
    """
    src, tgt = edge_index[0], edge_index[1]
    n_blocks = num_nodes // block_nodes
    blk = tgt // block_nodes
    a = jnp.zeros((n_blocks, block_nodes, block_nodes), jnp.float32)
    a = a.at[blk, tgt % block_nodes, src % block_nodes].add(1.0)
    a = a + jnp.eye(block_nodes, dtype=jnp.float32)[None]
    dinv = jax.lax.rsqrt(jnp.sum(a, axis=2))
    return a * dinv[:, :, None] * dinv[:, None, :]


def _default_block_graphs():
    """Aggregation tile: 4 graphs (256 nodes) on 256-wide-MXU chips (v6e/v7x),
    2 graphs (128 nodes) on 128-wide-MXU chips (v5e and older)."""
    try:
        kind = jax.devices()[0].device_kind.lower()
    except Exception:
        kind = ""
    if any(v in kind for v in ("v2", "v3", "v4", "v5")):
        return 2
    return 4


def gnn_centroid_forward(x, edge_index, action, params, block_graphs=None):
    """x: (nnodes, 3), edge_index: (2, E) int32, action: (nnodes/64, action_dims)."""
    n, c_in = x.shape
    assert c_in == IN_DIM and n % NODES_PER_GRAPH == 0
    n_graphs = n // NODES_PER_GRAPH

    if block_graphs is None:
        block_graphs = _default_block_graphs()
    block_graphs = max(1, min(block_graphs, n_graphs))
    while n_graphs % block_graphs:
        block_graphs -= 1
    bn = block_graphs * NODES_PER_GRAPH
    n_blocks = n_graphs // block_graphs

    # Block-diagonal normalized adjacency, one dense MXU-sized slab per block.
    adj = build_norm_adj_blocks(edge_index, n, bn).astype(MXU_DTYPE)

    # Lane-pad node features to 128 so the conv1 aggregation is a standard
    # lane-dense MXU dot (same push count as width 3; kernel uses cols 0..2).
    x_pad = jnp.zeros((n, IN_PAD), jnp.float32).at[:, :IN_DIM].set(
        x.astype(jnp.float32))

    # Per-block action rows (block_graphs, ACTION_DIMS).
    action_blocks = action.astype(jnp.float32).reshape(
        n_blocks, block_graphs, ACTION_DIMS)

    # Pad conv6 to a lane-dense 128-wide output (extra columns stay exactly 0).
    w6p = jnp.zeros((HIDDEN, OUT_PAD), jnp.float32).at[:, :OUT_DIM].set(params["w6"])
    b6p = jnp.zeros((1, OUT_PAD), jnp.float32).at[0, :OUT_DIM].set(params["b6"])

    row = lambda v: v[None, :].astype(jnp.float32)
    wmx = lambda v: v.astype(MXU_DTYPE)          # weights on the MXU path

    operands = (
        adj, x_pad, action_blocks,
        params["w1"].astype(jnp.float32), row(params["b1"]),
        wmx(params["w2"]), row(params["b2"]),
        wmx(params["w3"]), row(params["b3"]),
        wmx(params["w4x"]), params["w4a"].astype(jnp.float32), row(params["b4"]),
        wmx(params["w5"]), row(params["b5"]),
        wmx(w6p), b6p,
    )

    def resident(shape):
        # Full-array block with a constant index_map: DMA'd once, reused by
        # every grid step (weights / biases).
        return pl.BlockSpec(shape, lambda i: (0,) * len(shape))

    in_specs = [
        pl.BlockSpec((1, bn, bn), lambda i: (i, 0, 0)),              # adj slab
        pl.BlockSpec((bn, IN_PAD), lambda i: (i, 0)),                # x block
        pl.BlockSpec((1, block_graphs, ACTION_DIMS),
                     lambda i: (i, 0, 0)),                           # action rows
        resident((IN_DIM, HIDDEN)), resident((1, HIDDEN)),           # w1, b1
        resident((HIDDEN, HIDDEN)), resident((1, HIDDEN)),           # w2, b2
        resident((HIDDEN, HIDDEN)), resident((1, HIDDEN)),           # w3, b3
        resident((HIDDEN, HIDDEN)),                                  # w4x
        resident((ACTION_DIMS, HIDDEN)), resident((1, HIDDEN)),      # w4a, b4
        resident((HIDDEN, HIDDEN)), resident((1, HIDDEN)),           # w5, b5
        resident((HIDDEN, OUT_PAD)), resident((1, OUT_PAD)),         # w6 (pad), b6 (pad)
    ]

    out = pl.pallas_call(
        gnn_centroid_kernel,
        out_shape=jax.ShapeDtypeStruct((n, OUT_PAD), jnp.float32),
        grid=(n_blocks,),
        in_specs=in_specs,
        out_specs=pl.BlockSpec((bn, OUT_PAD), lambda i: (i, 0)),
        compiler_params=pltpu.CompilerParams(
            dimension_semantics=("parallel",),       # v7x: shard blocks over 2 TCs
            vmem_limit_bytes=32 * 1024 * 1024),      # explicit scoped-VMEM budget
    )(*operands)
    return out[:, :OUT_DIM]


def gnn_centroid_reference(x, edge_index, action, params, mxu_dtype=jnp.float32):
    """Plain-JAX reference. mxu_dtype=float32 reproduces the PyTorch module in
    full f32; mxu_dtype=bfloat16 mirrors the kernel's bf16-operand / f32-accum
    MXU numerics for a tight correctness check."""
    n = x.shape[0]
    adj = build_norm_adj(edge_index, n).astype(mxu_dtype)
    hp = jax.lax.Precision.HIGHEST

    def agg(pre):
        return jnp.dot(adj, pre.astype(mxu_dtype), precision=hp,
                       preferred_element_type=jnp.float32)

    def dense(h, w):
        return jnp.dot(h.astype(mxu_dtype), w.astype(mxu_dtype), precision=hp,
                       preferred_element_type=jnp.float32)

    relu = lambda v, b: jnp.maximum(v + b[None, :], 0.0)

    h = relu(jnp.dot(agg(x.astype(jnp.float32)), params["w1"], precision=hp),
             params["b1"])
    h = relu(agg(dense(h, params["w2"])), params["b2"])
    h = relu(agg(dense(h, params["w3"])), params["b3"])
    a_proj = jnp.dot(action, params["w4a"], precision=hp)          # (n_graphs, 256)
    a_nodes = jnp.repeat(a_proj, NODES_PER_GRAPH, axis=0)          # (N, 256)
    h = relu(agg(dense(h, params["w4x"]) + a_nodes), params["b4"])
    h = relu(agg(dense(h, params["w5"])), params["b5"])
    return relu(agg(dense(h, params["w6"])), params["b6"])


def init_params(key, action_dims=ACTION_DIMS):
    ks = jax.random.split(key, 13)

    def w(k, fan_in, fan_out):
        return (jax.random.normal(k, (fan_in, fan_out), jnp.float32)
                / jnp.sqrt(float(fan_in)))

    def b(k, c):
        return 0.01 * jax.random.normal(k, (c,), jnp.float32)

    p = {}
    p["w1"] = w(ks[0], IN_DIM, HIDDEN);        p["b1"] = b(ks[1], HIDDEN)
    p["w2"] = w(ks[2], HIDDEN, HIDDEN);        p["b2"] = b(ks[3], HIDDEN)
    p["w3"] = w(ks[4], HIDDEN, HIDDEN);        p["b3"] = b(ks[5], HIDDEN)
    # conv4 takes cat([h, action]) = 256 + action_dims inputs; store it split.
    p["w4x"] = w(ks[6], HIDDEN, HIDDEN)
    p["w4a"] = w(ks[7], action_dims, HIDDEN)
    p["b4"] = b(ks[8], HIDDEN)
    p["w5"] = w(ks[9], HIDDEN, HIDDEN);        p["b5"] = b(ks[10], HIDDEN)
    p["w6"] = w(ks[11], HIDDEN, OUT_DIM);      p["b6"] = b(ks[12], OUT_DIM)
    return p


if __name__ == "__main__":
    key = jax.random.PRNGKey(0)
    k_x, k_e, k_a, k_p = jax.random.split(key, 4)

    # Small shapes: 2 graphs x 64 nodes (module requires nnodes % 64 == 0),
    # 3-dim node features, 5-dim action (261 = 256 + 5 in the PyTorch reshape).
    nnodes = 128
    n_graphs = nnodes // NODES_PER_GRAPH
    edges_per_graph = 256

    x = jax.random.normal(k_x, (nnodes, IN_DIM), jnp.float32)

    # Random directed edges within each graph (PyG Batch-style edge_index).
    srcs, tgts = [], []
    for g, kg in enumerate(jax.random.split(k_e, n_graphs)):
        ks, kt = jax.random.split(kg)
        srcs.append(jax.random.randint(ks, (edges_per_graph,), 0, NODES_PER_GRAPH)
                    + g * NODES_PER_GRAPH)
        tgts.append(jax.random.randint(kt, (edges_per_graph,), 0, NODES_PER_GRAPH)
                    + g * NODES_PER_GRAPH)
    edge_index = jnp.stack([jnp.concatenate(srcs), jnp.concatenate(tgts)])

    # Precondition for the block-diagonal adjacency (true for PyG batched graphs).
    assert bool(jnp.all(edge_index[0] // NODES_PER_GRAPH
                        == edge_index[1] // NODES_PER_GRAPH))

    action = jax.random.normal(k_a, (n_graphs, ACTION_DIMS), jnp.float32)
    params = init_params(k_p)

    out = gnn_centroid_forward(x, edge_index, action, params)
    out = jax.block_until_ready(out)
    assert out.shape == (nnodes, OUT_DIM)

    # Tight check vs a same-precision (bf16-operand, f32-accumulate) reference:
    # validates the kernel math independently of the chosen MXU dtype.
    ref_mx = gnn_centroid_reference(x, edge_index, action, params, mxu_dtype=MXU_DTYPE)
    err_mx = float(jnp.max(jnp.abs(out - ref_mx)))
    assert jnp.allclose(out, ref_mx, atol=2e-3, rtol=2e-3), f"max abs err {err_mx}"

    # Loose check vs the full-f32 reference: bounds the bf16-MXU drift.
    ref_f32 = gnn_centroid_reference(x, edge_index, action, params,
                                     mxu_dtype=jnp.float32)
    err_f32 = float(jnp.max(jnp.abs(out - ref_f32)))
    assert jnp.allclose(out, ref_f32, atol=3e-2, rtol=3e-2), f"max abs err {err_f32}"

    print("KERNEL_OK")
</pallas_src>

<mosaic_0001>
module attributes {stable_mosaic.version = 11 : i64} {
  func.func @gnn_centroid_kernel(%arg0: i32, %arg1: memref<1x128x128xbf16, #tpu.memory_space<vmem>>, %arg2: memref<128x128xf32, #tpu.memory_space<vmem>>, %arg3: memref<1x2x5xf32, #tpu.memory_space<vmem>>, %arg4: memref<3x256xf32, #tpu.memory_space<vmem>>, %arg5: memref<1x256xf32, #tpu.memory_space<vmem>>, %arg6: memref<256x256xbf16, #tpu.memory_space<vmem>>, %arg7: memref<1x256xf32, #tpu.memory_space<vmem>>, %arg8: memref<256x256xbf16, #tpu.memory_space<vmem>>, %arg9: memref<1x256xf32, #tpu.memory_space<vmem>>, %arg10: memref<256x256xbf16, #tpu.memory_space<vmem>>, %arg11: memref<5x256xf32, #tpu.memory_space<vmem>>, %arg12: memref<1x256xf32, #tpu.memory_space<vmem>>, %arg13: memref<256x256xbf16, #tpu.memory_space<vmem>>, %arg14: memref<1x256xf32, #tpu.memory_space<vmem>>, %arg15: memref<256x128xbf16, #tpu.memory_space<vmem>>, %arg16: memref<1x128xf32, #tpu.memory_space<vmem>>, %arg17: memref<128x128xf32, #tpu.memory_space<vmem>>) attributes {dimension_semantics = [#tpu.dimension_semantics<parallel>], iteration_bounds = array<i64: 1>, scalar_prefetch = 0 : i64, scratch_operands = 0 : i64, tpu.core_type = #tpu.core_type<tc>, window_params = [{transform_indices = @transform_0, window_bounds = array<i64: 1, 128, 128>}, {transform_indices = @transform_1, window_bounds = array<i64: 128, 128>}, {transform_indices = @transform_2, window_bounds = array<i64: 1, 2, 5>}, {pipeline_mode = #tpu.pipeline_mode<synchronous>, transform_indices = @transform_3, window_bounds = array<i64: 3, 256>}, {pipeline_mode = #tpu.pipeline_mode<synchronous>, transform_indices = @transform_4, window_bounds = array<i64: 1, 256>}, {pipeline_mode = #tpu.pipeline_mode<synchronous>, transform_indices = @transform_5, window_bounds = array<i64: 256, 256>}, {pipeline_mode = #tpu.pipeline_mode<synchronous>, transform_indices = @transform_6, window_bounds = array<i64: 1, 256>}, {pipeline_mode = #tpu.pipeline_mode<synchronous>, transform_indices = @transform_7, window_bounds = array<i64: 256, 256>}, {pipeline_mode = #tpu.pipeline_mode<synchronous>, transform_indices = @transform_8, window_bounds = array<i64: 1, 256>}, {pipeline_mode = #tpu.pipeline_mode<synchronous>, transform_indices = @transform_9, window_bounds = array<i64: 256, 256>}, {pipeline_mode = #tpu.pipeline_mode<synchronous>, transform_indices = @transform_10, window_bounds = array<i64: 5, 256>}, {pipeline_mode = #tpu.pipeline_mode<synchronous>, transform_indices = @transform_11, window_bounds = array<i64: 1, 256>}, {pipeline_mode = #tpu.pipeline_mode<synchronous>, transform_indices = @transform_12, window_bounds = array<i64: 256, 256>}, {pipeline_mode = #tpu.pipeline_mode<synchronous>, transform_indices = @transform_13, window_bounds = array<i64: 1, 256>}, {pipeline_mode = #tpu.pipeline_mode<synchronous>, transform_indices = @transform_14, window_bounds = array<i64: 256, 128>}, {pipeline_mode = #tpu.pipeline_mode<synchronous>, transform_indices = @transform_15, window_bounds = array<i64: 1, 128>}, {transform_indices = @transform_16, window_bounds = array<i64: 128, 128>}]} {
    %c0 = arith.constant 0 : index
    %c0_0 = arith.constant 0 : index
    %c0_1 = arith.constant 0 : index
    %0 = vector.load %arg1[%c0, %c0_0, %c0_1] : memref<1x128x128xbf16, #tpu.memory_space<vmem>>, vector<1x128x128xbf16>
    %1 = vector.shape_cast %0 : vector<1x128x128xbf16> to vector<128x128xbf16>
    %c0_2 = arith.constant 0 : index
    %c0_3 = arith.constant 0 : index
    %2 = vector.load %arg2[%c0_2, %c0_3] : memref<128x128xf32, #tpu.memory_space<vmem>>, vector<128x128xf32>
    %3 = arith.truncf %2 : vector<128x128xf32> to vector<128x128xbf16>
    %cst = arith.constant dense<0.000000e+00> : vector<128x128xf32>
    %4 = tpu.matmul %1, %3, %cst {dimension_numbers = #tpu.dot_dimension_numbers<[1], [0], [0], [1], [0, 0, 1, 1], [], []>} : vector<128x128xbf16>, vector<128x128xbf16>, vector<128x128xf32> -> vector<128x128xf32>
    %c0_4 = arith.constant 0 : index
    %c0_5 = arith.constant 0 : index
    %5 = vector.load %arg4[%c0_4, %c0_5] : memref<3x256xf32, #tpu.memory_space<vmem>>, vector<3x256xf32>
    %6 = vector.extract_strided_slice %4 {offsets = [0, 0], sizes = [128, 1], strides = [1, 1]} : vector<128x128xf32> to vector<128x1xf32>
    %7 = vector.extract_strided_slice %5 {offsets = [0, 0], sizes = [1, 256], strides = [1, 1]} : vector<3x256xf32> to vector<1x256xf32>
    %8 = vector.broadcast %6 : vector<128x1xf32> to vector<128x256xf32>
    %9 = vector.broadcast %7 : vector<1x256xf32> to vector<128x256xf32>
    %10 = arith.mulf %8, %9 : vector<128x256xf32>
    %11 = vector.extract_strided_slice %4 {offsets = [0, 1], sizes = [128, 1], strides = [1, 1]} : vector<128x128xf32> to vector<128x1xf32>
    %12 = vector.extract_strided_slice %5 {offsets = [1, 0], sizes = [1, 256], strides = [1, 1]} : vector<3x256xf32> to vector<1x256xf32>
    %13 = vector.broadcast %11 : vector<128x1xf32> to vector<128x256xf32>
    %14 = vector.broadcast %12 : vector<1x256xf32> to vector<128x256xf32>
    %15 = arith.mulf %13, %14 : vector<128x256xf32>
    %16 = arith.addf %10, %15 : vector<128x256xf32>
    %17 = vector.extract_strided_slice %4 {offsets = [0, 2], sizes = [128, 1], strides = [1, 1]} : vector<128x128xf32> to vector<128x1xf32>
    %18 = vector.extract_strided_slice %5 {offsets = [2, 0], sizes = [1, 256], strides = [1, 1]} : vector<3x256xf32> to vector<1x256xf32>
    %19 = vector.broadcast %17 : vector<128x1xf32> to vector<128x256xf32>
    %20 = vector.broadcast %18 : vector<1x256xf32> to vector<128x256xf32>
    %21 = arith.mulf %19, %20 : vector<128x256xf32>
    %22 = arith.addf %16, %21 : vector<128x256xf32>
    %c0_6 = arith.constant 0 : index
    %c0_7 = arith.constant 0 : index
    %23 = vector.load %arg5[%c0_6, %c0_7] : memref<1x256xf32, #tpu.memory_space<vmem>>, vector<1x256xf32>
    %24 = vector.broadcast %23 : vector<1x256xf32> to vector<128x256xf32>
    %25 = arith.addf %22, %24 : vector<128x256xf32>
    %cst_8 = arith.constant 0.000000e+00 : f32
    %26 = vector.broadcast %cst_8 : f32 to vector<128x256xf32>
    %27 = arith.maximumf %25, %26 : vector<128x256xf32>
    %28 = arith.truncf %27 : vector<128x256xf32> to vector<128x256xbf16>
    %c0_9 = arith.constant 0 : index
    %c0_10 = arith.constant 0 : index
    %29 = vector.load %arg6[%c0_9, %c0_10] : memref<256x256xbf16, #tpu.memory_space<vmem>>, vector<256x256xbf16>
    %cst_11 = arith.constant dense<0.000000e+00> : vector<128x256xf32>
    %30 = tpu.matmul %28, %29, %cst_11 {dimension_numbers = #tpu.dot_dimension_numbers<[1], [0], [0], [1], [0, 0, 1, 1], [], []>} : vector<128x256xbf16>, vector<256x256xbf16>, vector<128x256xf32> -> vector<128x256xf32>
    %31 = arith.truncf %30 : vector<128x256xf32> to vector<128x256xbf16>
    %cst_12 = arith.constant dense<0.000000e+00> : vector<128x256xf32>
    %32 = tpu.matmul %1, %31, %cst_12 {dimension_numbers = #tpu.dot_dimension_numbers<[1], [0], [0], [1], [0, 0, 1, 1], [], []>} : vector<128x128xbf16>, vector<128x256xbf16>, vector<128x256xf32> -> vector<128x256xf32>
    %c0_13 = arith.constant 0 : index
    %c0_14 = arith.constant 0 : index
    %33 = vector.load %arg7[%c0_13, %c0_14] : memref<1x256xf32, #tpu.memory_space<vmem>>, vector<1x256xf32>
    %34 = vector.broadcast %33 : vector<1x256xf32> to vector<128x256xf32>
    %35 = arith.addf %32, %34 : vector<128x256xf32>
    %cst_15 = arith.constant 0.000000e+00 : f32
    %36 = vector.broadcast %cst_15 : f32 to vector<128x256xf32>
    %37 = arith.maximumf %35, %36 : vector<128x256xf32>
    %38 = arith.truncf %37 : vector<128x256xf32> to vector<128x256xbf16>
    %c0_16 = arith.constant 0 : index
    %c0_17 = arith.constant 0 : index
    %39 = vector.load %arg8[%c0_16, %c0_17] : memref<256x256xbf16, #tpu.memory_space<vmem>>, vector<256x256xbf16>
    %cst_18 = arith.constant dense<0.000000e+00> : vector<128x256xf32>
    %40 = tpu.matmul %38, %39, %cst_18 {dimension_numbers = #tpu.dot_dimension_numbers<[1], [0], [0], [1], [0, 0, 1, 1], [], []>} : vector<128x256xbf16>, vector<256x256xbf16>, vector<128x256xf32> -> vector<128x256xf32>
    %41 = arith.truncf %40 : vector<128x256xf32> to vector<128x256xbf16>
    %cst_19 = arith.constant dense<0.000000e+00> : vector<128x256xf32>
    %42 = tpu.matmul %1, %41, %cst_19 {dimension_numbers = #tpu.dot_dimension_numbers<[1], [0], [0], [1], [0, 0, 1, 1], [], []>} : vector<128x128xbf16>, vector<128x256xbf16>, vector<128x256xf32> -> vector<128x256xf32>
    %c0_20 = arith.constant 0 : index
    %c0_21 = arith.constant 0 : index
    %43 = vector.load %arg9[%c0_20, %c0_21] : memref<1x256xf32, #tpu.memory_space<vmem>>, vector<1x256xf32>
    %44 = vector.broadcast %43 : vector<1x256xf32> to vector<128x256xf32>
    %45 = arith.addf %42, %44 : vector<128x256xf32>
    %cst_22 = arith.constant 0.000000e+00 : f32
    %46 = vector.broadcast %cst_22 : f32 to vector<128x256xf32>
    %47 = arith.maximumf %45, %46 : vector<128x256xf32>
    %c0_23 = arith.constant 0 : index
    %c0_24 = arith.constant 0 : index
    %c0_25 = arith.constant 0 : index
    %48 = vector.load %arg3[%c0_23, %c0_24, %c0_25] : memref<1x2x5xf32, #tpu.memory_space<vmem>>, vector<1x2x5xf32>
    %49 = vector.shape_cast %48 : vector<1x2x5xf32> to vector<2x5xf32>
    %c0_26 = arith.constant 0 : index
    %c0_27 = arith.constant 0 : index
    %50 = vector.load %arg11[%c0_26, %c0_27] : memref<5x256xf32, #tpu.memory_space<vmem>>, vector<5x256xf32>
    %51 = vector.extract_strided_slice %49 {offsets = [0, 0], sizes = [2, 1], strides = [1, 1]} : vector<2x5xf32> to vector<2x1xf32>
    %52 = vector.extract_strided_slice %50 {offsets = [0, 0], sizes = [1, 256], strides = [1, 1]} : vector<5x256xf32> to vector<1x256xf32>
    %53 = vector.broadcast %51 : vector<2x1xf32> to vector<2x256xf32>
    %54 = vector.broadcast %52 : vector<1x256xf32> to vector<2x256xf32>
    %55 = arith.mulf %53, %54 : vector<2x256xf32>
    %56 = vector.extract_strided_slice %49 {offsets = [0, 1], sizes = [2, 1], strides = [1, 1]} : vector<2x5xf32> to vector<2x1xf32>
    %57 = vector.extract_strided_slice %50 {offsets = [1, 0], sizes = [1, 256], strides = [1, 1]} : vector<5x256xf32> to vector<1x256xf32>
    %58 = vector.broadcast %56 : vector<2x1xf32> to vector<2x256xf32>
    %59 = vector.broadcast %57 : vector<1x256xf32> to vector<2x256xf32>
    %60 = arith.mulf %58, %59 : vector<2x256xf32>
    %61 = arith.addf %55, %60 : vector<2x256xf32>
    %62 = vector.extract_strided_slice %49 {offsets = [0, 2], sizes = [2, 1], strides = [1, 1]} : vector<2x5xf32> to vector<2x1xf32>
    %63 = vector.extract_strided_slice %50 {offsets = [2, 0], sizes = [1, 256], strides = [1, 1]} : vector<5x256xf32> to vector<1x256xf32>
    %64 = vector.broadcast %62 : vector<2x1xf32> to vector<2x256xf32>
    %65 = vector.broadcast %63 : vector<1x256xf32> to vector<2x256xf32>
    %66 = arith.mulf %64, %65 : vector<2x256xf32>
    %67 = arith.addf %61, %66 : vector<2x256xf32>
    %68 = vector.extract_strided_slice %49 {offsets = [0, 3], sizes = [2, 1], strides = [1, 1]} : vector<2x5xf32> to vector<2x1xf32>
    %69 = vector.extract_strided_slice %50 {offsets = [3, 0], sizes = [1, 256], strides = [1, 1]} : vector<5x256xf32> to vector<1x256xf32>
    %70 = vector.broadcast %68 : vector<2x1xf32> to vector<2x256xf32>
    %71 = vector.broadcast %69 : vector<1x256xf32> to vector<2x256xf32>
    %72 = arith.mulf %70, %71 : vector<2x256xf32>
    %73 = arith.addf %67, %72 : vector<2x256xf32>
    %74 = vector.extract_strided_slice %49 {offsets = [0, 4], sizes = [2, 1], strides = [1, 1]} : vector<2x5xf32> to vector<2x1xf32>
    %75 = vector.extract_strided_slice %50 {offsets = [4, 0], sizes = [1, 256], strides = [1, 1]} : vector<5x256xf32> to vector<1x256xf32>
    %76 = vector.broadcast %74 : vector<2x1xf32> to vector<2x256xf32>
    %77 = vector.broadcast %75 : vector<1x256xf32> to vector<2x256xf32>
    %78 = arith.mulf %76, %77 : vector<2x256xf32>
    %79 = arith.addf %73, %78 : vector<2x256xf32>
    %80 = vector.extract_strided_slice %79 {offsets = [0, 0], sizes = [1, 256], strides = [1, 1]} : vector<2x256xf32> to vector<1x256xf32>
    %81 = vector.shape_cast %80 : vector<1x256xf32> to vector<1x256xf32>
    %82 = vector.broadcast %81 : vector<1x256xf32> to vector<64x256xf32>
    %83 = vector.extract_strided_slice %79 {offsets = [1, 0], sizes = [1, 256], strides = [1, 1]} : vector<2x256xf32> to vector<1x256xf32>
    %84 = vector.shape_cast %83 : vector<1x256xf32> to vector<1x256xf32>
    %85 = vector.broadcast %84 : vector<1x256xf32> to vector<64x256xf32>
    %86 = tpu.concatenate %82, %85 in 0 : vector<64x256xf32>, vector<64x256xf32> -> vector<128x256xf32>
    %87 = arith.truncf %47 : vector<128x256xf32> to vector<128x256xbf16>
    %c0_28 = arith.constant 0 : index
    %c0_29 = arith.constant 0 : index
    %88 = vector.load %arg10[%c0_28, %c0_29] : memref<256x256xbf16, #tpu.memory_space<vmem>>, vector<256x256xbf16>
    %cst_30 = arith.constant dense<0.000000e+00> : vector<128x256xf32>
    %89 = tpu.matmul %87, %88, %cst_30 {dimension_numbers = #tpu.dot_dimension_numbers<[1], [0], [0], [1], [0, 0, 1, 1], [], []>} : vector<128x256xbf16>, vector<256x256xbf16>, vector<128x256xf32> -> vector<128x256xf32>
    %90 = arith.addf %89, %86 : vector<128x256xf32>
    %91 = arith.truncf %90 : vector<128x256xf32> to vector<128x256xbf16>
    %cst_31 = arith.constant dense<0.000000e+00> : vector<128x256xf32>
    %92 = tpu.matmul %1, %91, %cst_31 {dimension_numbers = #tpu.dot_dimension_numbers<[1], [0], [0], [1], [0, 0, 1, 1], [], []>} : vector<128x128xbf16>, vector<128x256xbf16>, vector<128x256xf32> -> vector<128x256xf32>
    %c0_32 = arith.constant 0 : index
    %c0_33 = arith.constant 0 : index
    %93 = vector.load %arg12[%c0_32, %c0_33] : memref<1x256xf32, #tpu.memory_space<vmem>>, vector<1x256xf32>
    %94 = vector.broadcast %93 : vector<1x256xf32> to vector<128x256xf32>
    %95 = arith.addf %92, %94 : vector<128x256xf32>
    %cst_34 = arith.constant 0.000000e+00 : f32
    %96 = vector.broadcast %cst_34 : f32 to vector<128x256xf32>
    %97 = arith.maximumf %95, %96 : vector<128x256xf32>
    %98 = arith.truncf %97 : vector<128x256xf32> to vector<128x256xbf16>
    %c0_35 = arith.constant 0 : index
    %c0_36 = arith.constant 0 : index
    %99 = vector.load %arg13[%c0_35, %c0_36] : memref<256x256xbf16, #tpu.memory_space<vmem>>, vector<256x256xbf16>
    %cst_37 = arith.constant dense<0.000000e+00> : vector<128x256xf32>
    %100 = tpu.matmul %98, %99, %cst_37 {dimension_numbers = #tpu.dot_dimension_numbers<[1], [0], [0], [1], [0, 0, 1, 1], [], []>} : vector<128x256xbf16>, vector<256x256xbf16>, vector<128x256xf32> -> vector<128x256xf32>
    %101 = arith.truncf %100 : vector<128x256xf32> to vector<128x256xbf16>
    %cst_38 = arith.constant dense<0.000000e+00> : vector<128x256xf32>
    %102 = tpu.matmul %1, %101, %cst_38 {dimension_numbers = #tpu.dot_dimension_numbers<[1], [0], [0], [1], [0, 0, 1, 1], [], []>} : vector<128x128xbf16>, vector<128x256xbf16>, vector<128x256xf32> -> vector<128x256xf32>
    %c0_39 = arith.constant 0 : index
    %c0_40 = arith.constant 0 : index
    %103 = vector.load %arg14[%c0_39, %c0_40] : memref<1x256xf32, #tpu.memory_space<vmem>>, vector<1x256xf32>
    %104 = vector.broadcast %103 : vector<1x256xf32> to vector<128x256xf32>
    %105 = arith.addf %102, %104 : vector<128x256xf32>
    %cst_41 = arith.constant 0.000000e+00 : f32
    %106 = vector.broadcast %cst_41 : f32 to vector<128x256xf32>
    %107 = arith.maximumf %105, %106 : vector<128x256xf32>
    %108 = arith.truncf %107 : vector<128x256xf32> to vector<128x256xbf16>
    %c0_42 = arith.constant 0 : index
    %c0_43 = arith.constant 0 : index
    %109 = vector.load %arg15[%c0_42, %c0_43] : memref<256x128xbf16, #tpu.memory_space<vmem>>, vector<256x128xbf16>
    %cst_44 = arith.constant dense<0.000000e+00> : vector<128x128xf32>
    %110 = tpu.matmul %108, %109, %cst_44 {dimension_numbers = #tpu.dot_dimension_numbers<[1], [0], [0], [1], [0, 0, 1, 1], [], []>} : vector<128x256xbf16>, vector<256x128xbf16>, vector<128x128xf32> -> vector<128x128xf32>
    %111 = arith.truncf %110 : vector<128x128xf32> to vector<128x128xbf16>
    %cst_45 = arith.constant dense<0.000000e+00> : vector<128x128xf32>
    %112 = tpu.matmul %1, %111, %cst_45 {dimension_numbers = #tpu.dot_dimension_numbers<[1], [0], [0], [1], [0, 0, 1, 1], [], []>} : vector<128x128xbf16>, vector<128x128xbf16>, vector<128x128xf32> -> vector<128x128xf32>
    %c0_46 = arith.constant 0 : index
    %c0_47 = arith.constant 0 : index
    %113 = vector.load %arg16[%c0_46, %c0_47] : memref<1x128xf32, #tpu.memory_space<vmem>>, vector<1x128xf32>
    %114 = vector.broadcast %113 : vector<1x128xf32> to vector<128x128xf32>
    %115 = arith.addf %112, %114 : vector<128x128xf32>
    %cst_48 = arith.constant 0.000000e+00 : f32
    %116 = vector.broadcast %cst_48 : f32 to vector<128x128xf32>
    %117 = arith.maximumf %115, %116 : vector<128x128xf32>
    %c0_49 = arith.constant 0 : index
    %c0_50 = arith.constant 0 : index
    %118 = vector.load %arg17[%c0_49, %c0_50] : memref<128x128xf32, #tpu.memory_space<vmem>>, vector<128x128xf32>
    tpu.vector_store %arg17[%c0_49, %c0_50], %117 {strides = array<i32>} : memref<128x128xf32, #tpu.memory_space<vmem>>, vector<128x128xf32>,
    return
  }
  func.func @transform_0(%arg0: i32) -> (i32, i32, i32) {
    %c0_i32 = arith.constant 0 : i32
    %c0_i32_0 = arith.constant 0 : i32
    %c0_i32_1 = arith.constant 0 : i32
    return %arg0, %c0_i32, %c0_i32_0 : i32, i32, i32
  }
  func.func @transform_1(%arg0: i32) -> (i32, i32) {
    %c0_i32 = arith.constant 0 : i32
    %c0_i32_0 = arith.constant 0 : i32
    return %arg0, %c0_i32 : i32, i32
  }
  func.func @transform_2(%arg0: i32) -> (i32, i32, i32) {
    %c0_i32 = arith.constant 0 : i32
    %c0_i32_0 = arith.constant 0 : i32
    %c0_i32_1 = arith.constant 0 : i32
    return %arg0, %c0_i32, %c0_i32_0 : i32, i32, i32
  }
  func.func @transform_3(%arg0: i32) -> (i32, i32) {
    %c0_i32 = arith.constant 0 : i32
    %c0_i32_0 = arith.constant 0 : i32
    %c0_i32_1 = arith.constant 0 : i32
    return %c0_i32, %c0_i32_0 : i32, i32
  }
  func.func @transform_4(%arg0: i32) -> (i32, i32) {
    %c0_i32 = arith.constant 0 : i32
    %c0_i32_0 = arith.constant 0 : i32
    %c0_i32_1 = arith.constant 0 : i32
    return %c0_i32, %c0_i32_0 : i32, i32
  }
  func.func @transform_5(%arg0: i32) -> (i32, i32) {
    %c0_i32 = arith.constant 0 : i32
    %c0_i32_0 = arith.constant 0 : i32
    %c0_i32_1 = arith.constant 0 : i32
    return %c0_i32, %c0_i32_0 : i32, i32
  }
  func.func @transform_6(%arg0: i32) -> (i32, i32) {
    %c0_i32 = arith.constant 0 : i32
    %c0_i32_0 = arith.constant 0 : i32
    %c0_i32_1 = arith.constant 0 : i32
    return %c0_i32, %c0_i32_0 : i32, i32
  }
  func.func @transform_7(%arg0: i32) -> (i32, i32) {
    %c0_i32 = arith.constant 0 : i32
    %c0_i32_0 = arith.constant 0 : i32
    %c0_i32_1 = arith.constant 0 : i32
    return %c0_i32, %c0_i32_0 : i32, i32
  }
  func.func @transform_8(%arg0: i32) -> (i32, i32) {
    %c0_i32 = arith.constant 0 : i32
    %c0_i32_0 = arith.constant 0 : i32
    %c0_i32_1 = arith.constant 0 : i32
    return %c0_i32, %c0_i32_0 : i32, i32
  }
  func.func @transform_9(%arg0: i32) -> (i32, i32) {
    %c0_i32 = arith.constant 0 : i32
    %c0_i32_0 = arith.constant 0 : i32
    %c0_i32_1 = arith.constant 0 : i32
    return %c0_i32, %c0_i32_0 : i32, i32
  }
  func.func @transform_10(%arg0: i32) -> (i32, i32) {
    %c0_i32 = arith.constant 0 : i32
    %c0_i32_0 = arith.constant 0 : i32
    %c0_i32_1 = arith.constant 0 : i32
    return %c0_i32, %c0_i32_0 : i32, i32
  }
  func.func @transform_11(%arg0: i32) -> (i32, i32) {
    %c0_i32 = arith.constant 0 : i32
    %c0_i32_0 = arith.constant 0 : i32
    %c0_i32_1 = arith.constant 0 : i32
    return %c0_i32, %c0_i32_0 : i32, i32
  }
  func.func @transform_12(%arg0: i32) -> (i32, i32) {
    %c0_i32 = arith.constant 0 : i32
    %c0_i32_0 = arith.constant 0 : i32
    %c0_i32_1 = arith.constant 0 : i32
    return %c0_i32, %c0_i32_0 : i32, i32
  }
  func.func @transform_13(%arg0: i32) -> (i32, i32) {
    %c0_i32 = arith.constant 0 : i32
    %c0_i32_0 = arith.constant 0 : i32
    %c0_i32_1 = arith.constant 0 : i32
    return %c0_i32, %c0_i32_0 : i32, i32
  }
  func.func @transform_14(%arg0: i32) -> (i32, i32) {
    %c0_i32 = arith.constant 0 : i32
    %c0_i32_0 = arith.constant 0 : i32
    %c0_i32_1 = arith.constant 0 : i32
    return %c0_i32, %c0_i32_0 : i32, i32
  }
  func.func @transform_15(%arg0: i32) -> (i32, i32) {
    %c0_i32 = arith.constant 0 : i32
    %c0_i32_0 = arith.constant 0 : i32
    %c0_i32_1 = arith.constant 0 : i32
    return %c0_i32, %c0_i32_0 : i32, i32
  }
  func.func @transform_16(%arg0: i32) -> (i32, i32) {
    %c0_i32 = arith.constant 0 : i32
    %c0_i32_0 = arith.constant 0 : i32
    return %arg0, %c0_i32 : i32, i32
  }
}

</mosaic_0001>

<llo_original>
// kernel: tpu_custom_call.1
$region0: #{tpu_custom_call.1}
  #allocation0 [shape = 'u32[]', space=smem, size = 0x4, offset = 0x4, fixed_abs, tag = 'smem constant byte address 0x4 - core index']
  #allocation1 [shape = 'u32[144,128]{1,0:T(1,128)}', space=vmem, size = 0x12000, scoped, tag = 'internal scratch']
  %s0 = inlined_call_operand.hbm [shape: bf16[1,128,128], index: 0, kind: input, shape index: {}]
  %s1 = inlined_call_operand.hbm [shape: f32[128,128], index: 1, kind: input, shape index: {}]
  %s2 = inlined_call_operand.vmem [shape: f32[1,2,5], index: 2, kind: input, shape index: {}]
  %s3 = inlined_call_operand.hbm [shape: f32[3,256], index: 3, kind: input, shape index: {}]
  %s4 = inlined_call_operand.hbm [shape: f32[1,256], index: 4, kind: input, shape index: {}]
  %s5 = inlined_call_operand.hbm [shape: bf16[256,256], index: 5, kind: input, shape index: {}]
  %s6 = inlined_call_operand.hbm [shape: f32[1,256], index: 6, kind: input, shape index: {}]
  %s7 = inlined_call_operand.hbm [shape: bf16[256,256], index: 7, kind: input, shape index: {}]
  %s8 = inlined_call_operand.hbm [shape: f32[1,256], index: 8, kind: input, shape index: {}]
  %s9 = inlined_call_operand.hbm [shape: bf16[256,256], index: 9, kind: input, shape index: {}]
  %s10 = inlined_call_operand.vmem [shape: f32[5,256], index: 10, kind: input, shape index: {}]
  %s11 = inlined_call_operand.vmem [shape: f32[1,256], index: 11, kind: input, shape index: {}]
  %s12 = inlined_call_operand.hbm [shape: bf16[256,256], index: 12, kind: input, shape index: {}]
  %s13 = inlined_call_operand.vmem [shape: f32[1,256], index: 13, kind: input, shape index: {}]
  %s14 = inlined_call_operand.hbm [shape: bf16[256,128], index: 14, kind: input, shape index: {}]
  %s15 = inlined_call_operand.vmem [shape: f32[1,128], index: 15, kind: input, shape index: {}]
  %s16 = inlined_call_operand.hbm [shape: f32[128,128], index: 16, kind: output, shape index: {}]
  %s17 = sld [smem:[#allocation0]]
  $region118: #{tpu_custom_call.1} parent=0
    _
  %s19 = ssub.s32 1, %s17
  %s20 = scalar_select 0, %s19, %s17
  $region1: #{tpu_custom_call.1} parent=0
    #allocation2 [shape = 'u8[32768]{0}', space=vmem, size = 0x8000, scoped, tag = 'input window, operand 0, single buffered']
    #allocation3 [shape = 's32[1]{0}', space=sflag, size = 0x4, scoped, tag = 'scoped memory for tpu_custom_call.1']
    #allocation4 [shape = 's32[1]{0}', space=sflag, size = 0x4, scoped, tag = 'scoped memory for tpu_custom_call.1']
    #allocation5 [shape = 'u8[65536]{0}', space=vmem, size = 0x10000, scoped, tag = 'input window, operand 1, single buffered']
    #allocation6 [shape = 's32[1]{0}', space=sflag, size = 0x4, scoped, tag = 'scoped memory for tpu_custom_call.1']
    #allocation7 [shape = 'u8[4096]{0}', space=vmem, size = 0x1000, scoped, tag = 'input window, operand 3, single buffered']
    #allocation8 [shape = 'u8[1024]{0}', space=vmem, size = 0x400, scoped, tag = 'input window, operand 4, single buffered']
    #allocation9 [shape = 's32[1]{0}', space=sflag, size = 0x4, scoped, tag = 'scoped memory for tpu_custom_call.1']
    #allocation10 [shape = 'u8[131072]{0}', space=vmem, size = 0x20000, scoped, tag = 'input window, operand 5, single buffered']
    #allocation11 [shape = 'u8[1024]{0}', space=vmem, size = 0x400, scoped, tag = 'input window, operand 6, single buffered']
    #allocation12 [shape = 's32[1]{0}', space=sflag, size = 0x4, scoped, tag = 'scoped memory for tpu_custom_call.1']
    #allocation13 [shape = 'u8[131072]{0}', space=vmem, size = 0x20000, scoped, tag = 'input window, operand 7, single buffered']
    #allocation14 [shape = 'u8[1024]{0}', space=vmem, size = 0x400, scoped, tag = 'input window, operand 8, single buffered']
    #allocation15 [shape = 's32[1]{0}', space=sflag, size = 0x4, scoped, tag = 'scoped memory for tpu_custom_call.1']
    #allocation16 [shape = 'u8[131072]{0}', space=vmem, size = 0x20000, scoped, tag = 'input window, operand 9, single buffered']
    #allocation17 [shape = 'u8[131072]{0}', space=vmem, size = 0x20000, scoped, tag = 'input window, operand 12, single buffered']
    #allocation18 [shape = 's32[1]{0}', space=sflag, size = 0x4, scoped, tag = 'scoped memory for tpu_custom_call.1']
    #allocation19 [shape = 'u8[65536]{0}', space=vmem, size = 0x10000, scoped, tag = 'input window, operand 14, single buffered']
    #allocation20 [shape = 'u8[65536]{0}', space=vmem, size = 0x10000, scoped, tag = 'output window, operand 0, single buffered']
    %21 = vsyncpa [#allocation3], 0
    %22 = vsyncpa [#allocation6], 0
    %23 = vsyncpa [#allocation9], 0
    %24 = vsyncpa [#allocation12], 0
    %25 = vsyncpa [#allocation15], 0
    %26 = vsyncpa [#allocation18], 0
    %27 = vsyncpa [#allocation4], 0
    // Predicated region
    $region2: #{tpu_custom_call.1} parent=1 // pred_check
      _
    $region3: #{tpu_custom_call.1} parent=1 // pred_check_branch
      %29 = sbr.rel (0) target = $region5
    $region4: #{tpu_custom_call.1} parent=1 // pred_region
      %s31 = ssub.s32 1024, 1024
      %32 = vsyncadd [#allocation3], %s31
      %s33 = sshll.u32 [#allocation2], 4
      %s34 = int_to_ptr.vmem [resolvable:$true] %s33
      %39 = dma.hbm_to_vmem [thread:$0]  %s0, 1024, %s34, [#allocation3], 64, 64, 4
    $region5: #{tpu_custom_call.1} parent=1 // pred_fallthru
      _
    // Predicated region
    $region6: #{tpu_custom_call.1} parent=1 // pred_check
      _
    $region7: #{tpu_custom_call.1} parent=1 // pred_check_branch
      %41 = sbr.rel (0) target = $region9
    $region8: #{tpu_custom_call.1} parent=1 // pred_region
      %s43 = ssub.s32 2048, 2048
      %44 = vsyncadd [#allocation6], %s43
      %s45 = sshll.u32 [#allocation5], 4
      %s46 = int_to_ptr.vmem [resolvable:$true] %s45
      %51 = dma.hbm_to_vmem [thread:$0]  %s1, 2048, %s46, [#allocation6], 128, 128, 8
    $region9: #{tpu_custom_call.1} parent=1 // pred_fallthru
      _
    // Predicated region
    $region10: #{tpu_custom_call.1} parent=1 // pred_check
      _
    $region11: #{tpu_custom_call.1} parent=1 // pred_check_branch
      %53 = sbr.rel (0) target = $region13
    $region12: #{tpu_custom_call.1} parent=1 // pred_region
      _
    $region13: #{tpu_custom_call.1} parent=1 // pred_fallthru
      _
    // Predicated region
    $region14: #{tpu_custom_call.1} parent=1 // pred_check
      _
    $region15: #{tpu_custom_call.1} parent=1 // pred_check_branch
      %55 = sbr.rel (0) target = $region17
    $region16: #{tpu_custom_call.1} parent=1 // pred_region
      %s57 = ssub.s32 128, 128
      %58 = vsyncadd [#allocation6], %s57
      %s60 = sshll.u32 [#allocation7], 4
      %s61 = int_to_ptr.vmem [resolvable:$true] %s60
      %63 = dma.hbm_to_vmem [thread:$0]  %s3, 128, %s61, [#allocation6]
    $region17: #{tpu_custom_call.1} parent=1 // pred_fallthru
      _
    // Predicated region
    $region18: #{tpu_custom_call.1} parent=1 // pred_check
      _
    $region19: #{tpu_custom_call.1} parent=1 // pred_check_branch
      %65 = sbr.rel (0) target = $region21
    $region20: #{tpu_custom_call.1} parent=1 // pred_region
      %s67 = ssub.s32 32, 32
      %68 = vsyncadd [#allocation9], %s67
      %s70 = sshll.u32 [#allocation8], 4
      %s71 = int_to_ptr.vmem [resolvable:$true] %s70
      %73 = dma.hbm_to_vmem [thread:$0]  %s4, 32, %s71, [#allocation9]
    $region21: #{tpu_custom_call.1} parent=1 // pred_fallthru
      _
    // Predicated region
    $region22: #{tpu_custom_call.1} parent=1 // pred_check
      _
    $region23: #{tpu_custom_call.1} parent=1 // pred_check_branch
      %75 = sbr.rel (0) target = $region25
    $region24: #{tpu_custom_call.1} parent=1 // pred_region
      %s77 = ssub.s32 4096, 4096
      %78 = vsyncadd [#allocation9], %s77
      %s79 = sshll.u32 [#allocation10], 4
      %s80 = int_to_ptr.vmem [resolvable:$true] %s79
      %85 = dma.hbm_to_vmem [thread:$0]  %s5, 4096, %s80, [#allocation9], 128, 128, 8
    $region25: #{tpu_custom_call.1} parent=1 // pred_fallthru
      _
    // Predicated region
    $region26: #{tpu_custom_call.1} parent=1 // pred_check
      _
    $region27: #{tpu_custom_call.1} parent=1 // pred_check_branch
      %87 = sbr.rel (0) target = $region29
    $region28: #{tpu_custom_call.1} parent=1 // pred_region
      %s89 = ssub.s32 32, 32
      %90 = vsyncadd [#allocation12], %s89
      %s92 = sshll.u32 [#allocation11], 4
      %s93 = int_to_ptr.vmem [resolvable:$true] %s92
      %95 = dma.hbm_to_vmem [thread:$0]  %s6, 32, %s93, [#allocation12]
    $region29: #{tpu_custom_call.1} parent=1 // pred_fallthru
      _
    // Predicated region
    $region30: #{tpu_custom_call.1} parent=1 // pred_check
      _
    $region31: #{tpu_custom_call.1} parent=1 // pred_check_branch
      %97 = sbr.rel (0) target = $region33
    $region32: #{tpu_custom_call.1} parent=1 // pred_region
      %s99 = ssub.s32 4096, 4096
      %100 = vsyncadd [#allocation12], %s99
      %s101 = sshll.u32 [#allocation13], 4
      %s102 = int_to_ptr.vmem [resolvable:$true] %s101
      %107 = dma.hbm_to_vmem [thread:$0]  %s7, 4096, %s102, [#allocation12], 128, 128, 8
    $region33: #{tpu_custom_call.1} parent=1 // pred_fallthru
      _
    // Predicated region
    $region34: #{tpu_custom_call.1} parent=1 // pred_check
      _
    $region35: #{tpu_custom_call.1} parent=1 // pred_check_branch
      %109 = sbr.rel (0) target = $region37
    $region36: #{tpu_custom_call.1} parent=1 // pred_region
      %s111 = ssub.s32 32, 32
      %112 = vsyncadd [#allocation15], %s111
      %s114 = sshll.u32 [#allocation14], 4
      %s115 = int_to_ptr.vmem [resolvable:$true] %s114
      %117 = dma.hbm_to_vmem [thread:$0]  %s8, 32, %s115, [#allocation15]
    $region37: #{tpu_custom_call.1} parent=1 // pred_fallthru
      _
    // Predicated region
    $region38: #{tpu_custom_call.1} parent=1 // pred_check
      _
    $region39: #{tpu_custom_call.1} parent=1 // pred_check_branch
      %119 = sbr.rel (0) target = $region41
    $region40: #{tpu_custom_call.1} parent=1 // pred_region
      %s121 = ssub.s32 4096, 4096
      %122 = vsyncadd [#allocation15], %s121
      %s123 = sshll.u32 [#allocation16], 4
      %s124 = int_to_ptr.vmem [resolvable:$true] %s123
      %129 = dma.hbm_to_vmem [thread:$0]  %s9, 4096, %s124, [#allocation15], 128, 128, 8
    $region41: #{tpu_custom_call.1} parent=1 // pred_fallthru
      _
    // Predicated region
    $region42: #{tpu_custom_call.1} parent=1 // pred_check
      _
    $region43: #{tpu_custom_call.1} parent=1 // pred_check_branch
      %131 = sbr.rel (0) target = $region45
    $region44: #{tpu_custom_call.1} parent=1 // pred_region
      _
    $region45: #{tpu_custom_call.1} parent=1 // pred_fallthru
      _
    // Predicated region
    $region46: #{tpu_custom_call.1} parent=1 // pred_check
      _
    $region47: #{tpu_custom_call.1} parent=1 // pred_check_branch
      %133 = sbr.rel (0) target = $region49
    $region48: #{tpu_custom_call.1} parent=1 // pred_region
      _
    $region49: #{tpu_custom_call.1} parent=1 // pred_fallthru
      _
    // Predicated region
    $region50: #{tpu_custom_call.1} parent=1 // pred_check
      _
    $region51: #{tpu_custom_call.1} parent=1 // pred_check_branch
      %135 = sbr.rel (0) target = $region53
    $region52: #{tpu_custom_call.1} parent=1 // pred_region
      %s137 = ssub.s32 4096, 4096
      %138 = vsyncadd [#allocation18], %s137
      %s139 = sshll.u32 [#allocation17], 4
      %s140 = int_to_ptr.vmem [resolvable:$true] %s139
      %145 = dma.hbm_to_vmem [thread:$0]  %s12, 4096, %s140, [#allocation18], 128, 128, 8
    $region53: #{tpu_custom_call.1} parent=1 // pred_fallthru
      _
    // Predicated region
    $region54: #{tpu_custom_call.1} parent=1 // pred_check
      _
    $region55: #{tpu_custom_call.1} parent=1 // pred_check_branch
      %147 = sbr.rel (0) target = $region57
    $region56: #{tpu_custom_call.1} parent=1 // pred_region
      _
    $region57: #{tpu_custom_call.1} parent=1 // pred_fallthru
      _
    // Predicated region
    $region58: #{tpu_custom_call.1} parent=1 // pred_check
      _
    $region59: #{tpu_custom_call.1} parent=1 // pred_check_branch
      %149 = sbr.rel (0) target = $region61
    $region60: #{tpu_custom_call.1} parent=1 // pred_region
      %s151 = ssub.s32 2048, 2048
      %152 = vsyncadd [#allocation18], %s151
      %s153 = sshll.u32 [#allocation19], 4
      %s154 = int_to_ptr.vmem [resolvable:$true] %s153
      %159 = dma.hbm_to_vmem [thread:$0]  %s14, 2048, %s154, [#allocation18], 64, 64, 4
    $region61: #{tpu_custom_call.1} parent=1 // pred_fallthru
      _
    // Predicated region
    $region62: #{tpu_custom_call.1} parent=1 // pred_check
      _
    $region63: #{tpu_custom_call.1} parent=1 // pred_check_branch
      %161 = sbr.rel (0) target = $region65
    $region64: #{tpu_custom_call.1} parent=1 // pred_region
      _
    $region65: #{tpu_custom_call.1} parent=1 // pred_fallthru
      _
    // Predicated region
    $region66: #{tpu_custom_call.1} parent=1 // pred_check
      _
    $region67: #{tpu_custom_call.1} parent=1 // pred_check_branch
      %163 = sbr.rel (0) target = $region69
    $region68: #{tpu_custom_call.1} parent=1 // pred_region
      %164 = dma.done [#allocation3], 1024
    $region69: #{tpu_custom_call.1} parent=1 // pred_fallthru
      _
    // Predicated region
    $region70: #{tpu_custom_call.1} parent=1 // pred_check
      _
    $region71: #{tpu_custom_call.1} parent=1 // pred_check_branch
      %166 = sbr.rel (0) target = $region73
    $region72: #{tpu_custom_call.1} parent=1 // pred_region
      %167 = dma.done [#allocation6], 2048
    $region73: #{tpu_custom_call.1} parent=1 // pred_fallthru
      _
    // Predicated region
    $region74: #{tpu_custom_call.1} parent=1 // pred_check
      _
    $region75: #{tpu_custom_call.1} parent=1 // pred_check_branch
      %169 = sbr.rel (0) target = $region77
    $region76: #{tpu_custom_call.1} parent=1 // pred_region
      %170 = dma.done [#allocation6], 128
    $region77: #{tpu_custom_call.1} parent=1 // pred_fallthru
      _
    // Predicated region
    $region78: #{tpu_custom_call.1} parent=1 // pred_check
      _
    $region79: #{tpu_custom_call.1} parent=1 // pred_check_branch
      %172 = sbr.rel (0) target = $region81
    $region80: #{tpu_custom_call.1} parent=1 // pred_region
      %173 = dma.done [#allocation9], 32
    $region81: #{tpu_custom_call.1} parent=1 // pred_fallthru
      _
    // Predicated region
    $region82: #{tpu_custom_call.1} parent=1 // pred_check
      _
    $region83: #{tpu_custom_call.1} parent=1 // pred_check_branch
      %175 = sbr.rel (0) target = $region85
    $region84: #{tpu_custom_call.1} parent=1 // pred_region
      %176 = dma.done [#allocation9], 4096
    $region85: #{tpu_custom_call.1} parent=1 // pred_fallthru
      _
    // Predicated region
    $region86: #{tpu_custom_call.1} parent=1 // pred_check
      _
    $region87: #{tpu_custom_call.1} parent=1 // pred_check_branch
      %178 = sbr.rel (0) target = $region89
    $region88: #{tpu_custom_call.1} parent=1 // pred_region
      %179 = dma.done [#allocation12], 32
    $region89: #{tpu_custom_call.1} parent=1 // pred_fallthru
      _
    // Predicated region
    $region90: #{tpu_custom_call.1} parent=1 // pred_check
      _
    $region91: #{tpu_custom_call.1} parent=1 // pred_check_branch
      %181 = sbr.rel (0) target = $region93
    $region92: #{tpu_custom_call.1} parent=1 // pred_region
      %182 = dma.done [#allocation12], 4096
    $region93: #{tpu_custom_call.1} parent=1 // pred_fallthru
      _
    // Predicated region
    $region94: #{tpu_custom_call.1} parent=1 // pred_check
      _
    $region95: #{tpu_custom_call.1} parent=1 // pred_check_branch
      %184 = sbr.rel (0) target = $region97
    $region96: #{tpu_custom_call.1} parent=1 // pred_region
      %185 = dma.done [#allocation15], 32
    $region97: #{tpu_custom_call.1} parent=1 // pred_fallthru
      _
    // Predicated region
    $region98: #{tpu_custom_call.1} parent=1 // pred_check
      _
    $region99: #{tpu_custom_call.1} parent=1 // pred_check_branch
      %187 = sbr.rel (0) target = $region101
    $region100: #{tpu_custom_call.1} parent=1 // pred_region
      %188 = dma.done [#allocation15], 4096
    $region101: #{tpu_custom_call.1} parent=1 // pred_fallthru
      _
    // Predicated region
    $region102: #{tpu_custom_call.1} parent=1 // pred_check
      _
    $region103: #{tpu_custom_call.1} parent=1 // pred_check_branch
      %190 = sbr.rel (0) target = $region105
    $region104: #{tpu_custom_call.1} parent=1 // pred_region
      %191 = dma.done [#allocation18], 4096
    $region105: #{tpu_custom_call.1} parent=1 // pred_fallthru
      _
    // Predicated region
    $region106: #{tpu_custom_call.1} parent=1 // pred_check
      _
    $region107: #{tpu_custom_call.1} parent=1 // pred_check_branch
      %193 = sbr.rel (0) target = $region109
    $region108: #{tpu_custom_call.1} parent=1 // pred_region
      %194 = dma.done [#allocation18], 2048
    $region109: #{tpu_custom_call.1} parent=1 // pred_fallthru
      _
    %v196 = vld [vmem:[#allocation2] sm:$0xf]
    %v197 = vld [vmem:[#allocation2 + $0x4] sm:$0xf]
    %v198 = vld [vmem:[#allocation2 + $0x8] sm:$0xf]
    %v199 = vld [vmem:[#allocation2 + $0xc] sm:$0xf]
    %v200 = vld [vmem:[#allocation2 + $0x10] sm:$0xf]
    %v201 = vld [vmem:[#allocation2 + $0x14] sm:$0xf]
    %v202 = vld [vmem:[#allocation2 + $0x18] sm:$0xf]
    %v203 = vld [vmem:[#allocation2 + $0x1c] sm:$0xf]
    %v204 = vld [vmem:[#allocation2 + $0x20] sm:$0xf]
    %v205 = vld [vmem:[#allocation2 + $0x24] sm:$0xf]
    %v206 = vld [vmem:[#allocation2 + $0x28] sm:$0xf]
    %v207 = vld [vmem:[#allocation2 + $0x2c] sm:$0xf]
    %v208 = vld [vmem:[#allocation2 + $0x30] sm:$0xf]
    %v209 = vld [vmem:[#allocation2 + $0x34] sm:$0xf]
    %v210 = vld [vmem:[#allocation2 + $0x38] sm:$0xf]
    %v211 = vld [vmem:[#allocation2 + $0x3c] sm:$0xf]
    %v212 = vld [vmem:[#allocation5] sm:$0xff]
    %v213 = vld [vmem:[#allocation5 + $0x8] sm:$0xff]
    %v214 = vld [vmem:[#allocation5 + $0x10] sm:$0xff]
    %v215 = vld [vmem:[#allocation5 + $0x18] sm:$0xff]
    %v216 = vld [vmem:[#allocation5 + $0x20] sm:$0xff]
    %v217 = vld [vmem:[#allocation5 + $0x28] sm:$0xff]
    %v218 = vld [vmem:[#allocation5 + $0x30] sm:$0xff]
    %v219 = vld [vmem:[#allocation5 + $0x38] sm:$0xff]
    %v220 = vld [vmem:[#allocation5 + $0x40] sm:$0xff]
    %v221 = vld [vmem:[#allocation5 + $0x48] sm:$0xff]
    %v222 = vld [vmem:[#allocation5 + $0x50] sm:$0xff]
    %v223 = vld [vmem:[#allocation5 + $0x58] sm:$0xff]
    %v224 = vld [vmem:[#allocation5 + $0x60] sm:$0xff]
    %v225 = vld [vmem:[#allocation5 + $0x68] sm:$0xff]
    %v226 = vld [vmem:[#allocation5 + $0x70] sm:$0xff]
    %v227 = vld [vmem:[#allocation5 + $0x78] sm:$0xff]
    %v228 = vpack.c.bf16 %v213, %v212
    %v229 = vpack.c.bf16 %v215, %v214
    %v230 = vpack.c.bf16 %v217, %v216
    %v231 = vpack.c.bf16 %v219, %v218
    %v232 = vpack.c.bf16 %v221, %v220
    %v233 = vpack.c.bf16 %v223, %v222
    %v234 = vpack.c.bf16 %v225, %v224
    %v235 = vpack.c.bf16 %v227, %v226
    %v252 = vunpack.c.l.b16 %v196
    %v253 = vunpack.c.l.b16 %v197
    %v254 = vunpack.c.l.b16 %v198
    %v255 = vunpack.c.l.b16 %v199
    %v256 = vunpack.c.l.b16 %v200
    %v257 = vunpack.c.l.b16 %v201
    %v258 = vunpack.c.l.b16 %v202
    %v259 = vunpack.c.l.b16 %v203
    %v260 = vunpack.c.l.b16 %v204
    %v261 = vunpack.c.l.b16 %v205
    %v262 = vunpack.c.l.b16 %v206
    %v263 = vunpack.c.l.b16 %v207
    %v264 = vunpack.c.l.b16 %v208
    %v265 = vunpack.c.l.b16 %v209
    %v266 = vunpack.c.l.b16 %v210
    %v267 = vunpack.c.l.b16 %v211
    %v268 = vpack.c.b16 %v253, %v252
    %v269 = vpack.c.b16 %v255, %v254
    %v270 = vpack.c.b16 %v257, %v256
    %v271 = vpack.c.b16 %v259, %v258
    %v272 = vpack.c.b16 %v261, %v260
    %v273 = vpack.c.b16 %v263, %v262
    %v274 = vpack.c.b16 %v265, %v264
    %v275 = vpack.c.b16 %v267, %v266
    %284 = vmatprep.subr.bf16.mxu0 0
    %285 = vmatpush1.bf16.msra.mxu0 %v235
    %286 = vmatprep.subr.bf16.mxu0 0
    %287 = vmatpush1.bf16.msra.mxu0 %v234
    %288 = vmatprep.subr.bf16.mxu0 0
    %289 = vmatpush1.bf16.msra.mxu0 %v233
    %290 = vmatprep.subr.bf16.mxu0 0
    %291 = vmatpush1.bf16.msra.mxu0 %v232
    %292 = vmatprep.subr.bf16.mxu0 0
    %293 = vmatpush1.bf16.msra.mxu0 %v231
    %294 = vmatprep.subr.bf16.mxu0 0
    %295 = vmatpush1.bf16.msra.mxu0 %v230
    %296 = vmatprep.subr.bf16.mxu0 0
    %297 = vmatpush1.bf16.msra.mxu0 %v229
    %298 = vmatprep.subr.bf16.mxu0 0
    %299 = vmatpush1.bf16.msra.mxu0 %v228
    %300 = vmatprep.subr.bf16.mxu0 0
    %301 = vmatpush2.bf16.msra.mxu0 0
    %302 = vmatprep.subr.bf16.mxu0 0
    %303 = vmatpush2.bf16.msra.mxu0 0
    %304 = vmatprep.subr.bf16.mxu0 0
    %305 = vmatpush2.bf16.msra.mxu0 0
    %306 = vmatprep.subr.bf16.mxu0 0
    %307 = vmatpush2.bf16.msra.mxu0 0
    %308 = vmatprep.subr.bf16.mxu0 0
    %309 = vmatpush2.bf16.msra.mxu0 0
    %310 = vmatprep.subr.bf16.mxu0 0
    %311 = vmatpush2.bf16.msra.mxu0 0
    %312 = vmatprep.subr.bf16.mxu0 0
    %313 = vmatpush2.bf16.msra.mxu0 0
    %314 = vmatprep.subr.bf16.mxu0 0
    %315 = vmatpush2.bf16.msra.mxu0 0
    %316 = vmatprep.mubr.bf16.mxu0 0
    %317 = vmatmul.mubr.bf16.gmra.mxu0 %v268
    %v318 = vpop.f32.mrf.mxu0
    %v319 = vadd.f32 0.0, %v318
    %v320 = vpop.f32.mrf.mxu0
    %v321 = vpop.f32.mrf.mxu0
    %v322 = vadd.f32 0.0, %v321
    %v323 = vpop.f32.mrf.mxu0
    %324 = vmatprep.mubr.bf16.mxu0 0
    %325 = vmatmul.mubr.bf16.gmra.mxu0 %v269
    %v326 = vpop.f32.mrf.mxu0
    %v327 = vadd.f32 0.0, %v326
    %v328 = vpop.f32.mrf.mxu0
    %v329 = vpop.f32.mrf.mxu0
    %v330 = vadd.f32 0.0, %v329
    %v331 = vpop.f32.mrf.mxu0
    %332 = vmatprep.mubr.bf16.mxu0 0
    %333 = vmatmul.mubr.bf16.gmra.mxu0 %v270
    %v334 = vpop.f32.mrf.mxu0
    %v335 = vadd.f32 0.0, %v334
    %v336 = vpop.f32.mrf.mxu0
    %v337 = vpop.f32.mrf.mxu0
    %v338 = vadd.f32 0.0, %v337
    %v339 = vpop.f32.mrf.mxu0
    %340 = vmatprep.mubr.bf16.mxu0 0
    %341 = vmatmul.mubr.bf16.gmra.mxu0 %v271
    %v342 = vpop.f32.mrf.mxu0
    %v343 = vadd.f32 0.0, %v342
    %v344 = vpop.f32.mrf.mxu0
    %v345 = vpop.f32.mrf.mxu0
    %v346 = vadd.f32 0.0, %v345
    %v347 = vpop.f32.mrf.mxu0
    %348 = vmatprep.mubr.bf16.mxu0 0
    %349 = vmatmul.mubr.bf16.gmra.mxu0 %v272
    %v350 = vpop.f32.mrf.mxu0
    %v351 = vadd.f32 0.0, %v350
    %v352 = vpop.f32.mrf.mxu0
    %v353 = vpop.f32.mrf.mxu0
    %v354 = vadd.f32 0.0, %v353
    %v355 = vpop.f32.mrf.mxu0
    %356 = vmatprep.mubr.bf16.mxu0 0
    %357 = vmatmul.mubr.bf16.gmra.mxu0 %v273
    %v358 = vpop.f32.mrf.mxu0
    %v359 = vadd.f32 0.0, %v358
    %v360 = vpop.f32.mrf.mxu0
    %v361 = vpop.f32.mrf.mxu0
    %v362 = vadd.f32 0.0, %v361
    %v363 = vpop.f32.mrf.mxu0
    %364 = vmatprep.mubr.bf16.mxu0 0
    %365 = vmatmul.mubr.bf16.gmra.mxu0 %v274
    %v366 = vpop.f32.mrf.mxu0
    %v367 = vadd.f32 0.0, %v366
    %v368 = vpop.f32.mrf.mxu0
    %v369 = vpop.f32.mrf.mxu0
    %v370 = vadd.f32 0.0, %v369
    %v371 = vpop.f32.mrf.mxu0
    %372 = vmatprep.mubr.bf16.mxu0 0
    %373 = vmatmul.mubr.bf16.gmra.mxu0 %v275
    %v374 = vpop.f32.mrf.mxu0
    %v375 = vadd.f32 0.0, %v374
    %v376 = vpop.f32.mrf.mxu0
    %v377 = vpop.f32.mrf.mxu0
    %v378 = vadd.f32 0.0, %v377
    %v379 = vpop.f32.mrf.mxu0
    %380 = vdwg.mxu0
    %v381 = vld [vmem:[#allocation7] sm:$0x77]
    %383 = vset.pattern.permute.xlu0 0
    %384 = vperm.xlu0 %383, %v319
    %v385 = vpop.permute.xlu0 %384
    %388 = vset.pattern.permute.xlu0 0
    %389 = vperm.xlu0 %388, %v322
    %v390 = vpop.permute.xlu0 %389
    %393 = vset.pattern.permute.xlu0 0
    %394 = vperm.xlu0 %393, %v327
    %v395 = vpop.permute.xlu0 %394
    %398 = vset.pattern.permute.xlu0 0
    %399 = vperm.xlu0 %398, %v330
    %v400 = vpop.permute.xlu0 %399
    %403 = vset.pattern.permute.xlu0 0
    %404 = vperm.xlu0 %403, %v335
    %v405 = vpop.permute.xlu0 %404
    %408 = vset.pattern.permute.xlu0 0
    %409 = vperm.xlu0 %408, %v338
    %v410 = vpop.permute.xlu0 %409
    %413 = vset.pattern.permute.xlu0 0
    %414 = vperm.xlu0 %413, %v343
    %v415 = vpop.permute.xlu0 %414
    %418 = vset.pattern.permute.xlu0 0
    %419 = vperm.xlu0 %418, %v346
    %v420 = vpop.permute.xlu0 %419
    %423 = vset.pattern.permute.xlu0 0
    %424 = vperm.xlu0 %423, %v351
    %v425 = vpop.permute.xlu0 %424
    %428 = vset.pattern.permute.xlu0 0
    %429 = vperm.xlu0 %428, %v354
    %v430 = vpop.permute.xlu0 %429
    %433 = vset.pattern.permute.xlu0 0
    %434 = vperm.xlu0 %433, %v359
    %v435 = vpop.permute.xlu0 %434
    %438 = vset.pattern.permute.xlu0 0
    %439 = vperm.xlu0 %438, %v362
    %v440 = vpop.permute.xlu0 %439
    %443 = vset.pattern.permute.xlu0 0
    %444 = vperm.xlu0 %443, %v367
    %v445 = vpop.permute.xlu0 %444
    %448 = vset.pattern.permute.xlu0 0
    %449 = vperm.xlu0 %448, %v370
    %v450 = vpop.permute.xlu0 %449
    %453 = vset.pattern.permute.xlu0 0
    %454 = vperm.xlu0 %453, %v375
    %v455 = vpop.permute.xlu0 %454
    %458 = vset.pattern.permute.xlu0 0
    %459 = vperm.xlu0 %458, %v378
    %v460 = vpop.permute.xlu0 %459
    %v463 = vlaneseq
    %v464 = vshrl.u32 %v463, 7
    %v465 = vsub.s32 0, %v464
    %v466 = vrot.slane %v381, %v465
    %v467 = vlaneseq
    %v468 = vshrl.u32 %v467, 7
    %v469 = vsub.s32 4, %v468
    %v470 = vrot.slane %v381, %v469
    %v473 = vlaneseq
    %v474 = vshrl.u32 %v473, 7
    %v475 = vsub.s32 0, %v474
    %v476 = vrot.slane %v466, %v475
    %v477 = vlaneseq
    %v478 = vshrl.u32 %v477, 7
    %v479 = vsub.s32 0, %v478
    %v480 = vrot.slane %v470, %v479
    %v481 = vmul.f32 %v385, %v476
    %v482 = vmul.f32 %v385, %v480
    %v483 = vmul.f32 %v390, %v476
    %v484 = vmul.f32 %v390, %v480
    %v485 = vmul.f32 %v395, %v476
    %v486 = vmul.f32 %v395, %v480
    %v487 = vmul.f32 %v400, %v476
    %v488 = vmul.f32 %v400, %v480
    %v489 = vmul.f32 %v405, %v476
    %v490 = vmul.f32 %v405, %v480
    %v491 = vmul.f32 %v410, %v476
    %v492 = vmul.f32 %v410, %v480
    %v493 = vmul.f32 %v415, %v476
    %v494 = vmul.f32 %v415, %v480
    %v495 = vmul.f32 %v420, %v476
    %v496 = vmul.f32 %v420, %v480
    %v497 = vmul.f32 %v425, %v476
    %v498 = vmul.f32 %v425, %v480
    %v499 = vmul.f32 %v430, %v476
    %v500 = vmul.f32 %v430, %v480
    %v501 = vmul.f32 %v435, %v476
    %v502 = vmul.f32 %v435, %v480
    %v503 = vmul.f32 %v440, %v476
    %v504 = vmul.f32 %v440, %v480
    %v505 = vmul.f32 %v445, %v476
    %v506 = vmul.f32 %v445, %v480
    %v507 = vmul.f32 %v450, %v476
    %v508 = vmul.f32 %v450, %v480
    %v509 = vmul.f32 %v455, %v476
    %v510 = vmul.f32 %v455, %v480
    %v511 = vmul.f32 %v460, %v476
    %v512 = vmul.f32 %v460, %v480
    %513 = vset.pattern.permute.xlu0 1
    %514 = vperm.xlu0 %513, %v319
    %v515 = vpop.permute.xlu0 %514
    %517 = vset.pattern.permute.xlu0 1
    %518 = vperm.xlu0 %517, %v322
    %v519 = vpop.permute.xlu0 %518
    %521 = vset.pattern.permute.xlu0 1
    %522 = vperm.xlu0 %521, %v327
    %v523 = vpop.permute.xlu0 %522
    %525 = vset.pattern.permute.xlu0 1
    %526 = vperm.xlu0 %525, %v330
    %v527 = vpop.permute.xlu0 %526
    %529 = vset.pattern.permute.xlu0 1
    %530 = vperm.xlu0 %529, %v335
    %v531 = vpop.permute.xlu0 %530
    %533 = vset.pattern.permute.xlu0 1
    %534 = vperm.xlu0 %533, %v338
    %v535 = vpop.permute.xlu0 %534
    %537 = vset.pattern.permute.xlu0 1
    %538 = vperm.xlu0 %537, %v343
    %v539 = vpop.permute.xlu0 %538
    %541 = vset.pattern.permute.xlu0 1
    %542 = vperm.xlu0 %541, %v346
    %v543 = vpop.permute.xlu0 %542
    %545 = vset.pattern.permute.xlu0 1
    %546 = vperm.xlu0 %545, %v351
    %v547 = vpop.permute.xlu0 %546
    %549 = vset.pattern.permute.xlu0 1
    %550 = vperm.xlu0 %549, %v354
    %v551 = vpop.permute.xlu0 %550
    %553 = vset.pattern.permute.xlu0 1
    %554 = vperm.xlu0 %553, %v359
    %v555 = vpop.permute.xlu0 %554
    %557 = vset.pattern.permute.xlu0 1
    %558 = vperm.xlu0 %557, %v362
    %v559 = vpop.permute.xlu0 %558
    %561 = vset.pattern.permute.xlu0 1
    %562 = vperm.xlu0 %561, %v367
    %v563 = vpop.permute.xlu0 %562
    %565 = vset.pattern.permute.xlu0 1
    %566 = vperm.xlu0 %565, %v370
    %v567 = vpop.permute.xlu0 %566
    %569 = vset.pattern.permute.xlu0 1
    %570 = vperm.xlu0 %569, %v375
    %v571 = vpop.permute.xlu0 %570
    %573 = vset.pattern.permute.xlu0 1
    %574 = vperm.xlu0 %573, %v378
    %v575 = vpop.permute.xlu0 %574
    %v577 = vlaneseq
    %v578 = vshrl.u32 %v577, 7
    %v579 = vsub.s32 1, %v578
    %v580 = vrot.slane %v381, %v579
    %v581 = vlaneseq
    %v582 = vshrl.u32 %v581, 7
    %v583 = vsub.s32 5, %v582
    %v584 = vrot.slane %v381, %v583
    %v587 = vlaneseq
    %v588 = vshrl.u32 %v587, 7
    %v589 = vsub.s32 1, %v588
    %v590 = vrot.slane %v580, %v589
    %v591 = vlaneseq
    %v592 = vshrl.u32 %v591, 7
    %v593 = vsub.s32 1, %v592
    %v594 = vrot.slane %v584, %v593
    %v595 = vmul.f32 %v515, %v590
    %v596 = vmul.f32 %v515, %v594
    %v597 = vmul.f32 %v519, %v590
    %v598 = vmul.f32 %v519, %v594
    %v599 = vmul.f32 %v523, %v590
    %v600 = vmul.f32 %v523, %v594
    %v601 = vmul.f32 %v527, %v590
    %v602 = vmul.f32 %v527, %v594
    %v603 = vmul.f32 %v531, %v590
    %v604 = vmul.f32 %v531, %v594
    %v605 = vmul.f32 %v535, %v590
    %v606 = vmul.f32 %v535, %v594
    %v607 = vmul.f32 %v539, %v590
    %v608 = vmul.f32 %v539, %v594
    %v609 = vmul.f32 %v543, %v590
    %v610 = vmul.f32 %v543, %v594
    %v611 = vmul.f32 %v547, %v590
    %v612 = vmul.f32 %v547, %v594
    %v613 = vmul.f32 %v551, %v590
    %v614 = vmul.f32 %v551, %v594
    %v615 = vmul.f32 %v555, %v590
    %v616 = vmul.f32 %v555, %v594
    %v617 = vmul.f32 %v559, %v590
    %v618 = vmul.f32 %v559, %v594
    %v619 = vmul.f32 %v563, %v590
    %v620 = vmul.f32 %v563, %v594
    %v621 = vmul.f32 %v567, %v590
    %v622 = vmul.f32 %v567, %v594
    %v623 = vmul.f32 %v571, %v590
    %v624 = vmul.f32 %v571, %v594
    %v625 = vmul.f32 %v575, %v590
    %v626 = vmul.f32 %v575, %v594
    %v627 = vadd.f32 %v481, %v595
    %v628 = vadd.f32 %v482, %v596
    %v629 = vadd.f32 %v483, %v597
    %v630 = vadd.f32 %v484, %v598
    %v631 = vadd.f32 %v485, %v599
    %v632 = vadd.f32 %v486, %v600
    %v633 = vadd.f32 %v487, %v601
    %v634 = vadd.f32 %v488, %v602
    %v635 = vadd.f32 %v489, %v603
    %v636 = vadd.f32 %v490, %v604
    %v637 = vadd.f32 %v491, %v605
    %v638 = vadd.f32 %v492, %v606
    %v639 = vadd.f32 %v493, %v607
    %v640 = vadd.f32 %v494, %v608
    %v641 = vadd.f32 %v495, %v609
    %v642 = vadd.f32 %v496, %v610
    %v643 = vadd.f32 %v497, %v611
    %v644 = vadd.f32 %v498, %v612
    %v645 = vadd.f32 %v499, %v613
    %v646 = vadd.f32 %v500, %v614
    %v647 = vadd.f32 %v501, %v615
    %v648 = vadd.f32 %v502, %v616
    %v649 = vadd.f32 %v503, %v617
    %v650 = vadd.f32 %v504, %v618
    %v651 = vadd.f32 %v505, %v619
    %v652 = vadd.f32 %v506, %v620
    %v653 = vadd.f32 %v507, %v621
    %v654 = vadd.f32 %v508, %v622
    %v655 = vadd.f32 %v509, %v623
    %v656 = vadd.f32 %v510, %v624
    %v657 = vadd.f32 %v511, %v625
    %v658 = vadd.f32 %v512, %v626
    %659 = vset.pattern.permute.xlu0 2
    %660 = vperm.xlu0 %659, %v319
    %v661 = vpop.permute.xlu0 %660
    %663 = vset.pattern.permute.xlu0 2
    %664 = vperm.xlu0 %663, %v322
    %v665 = vpop.permute.xlu0 %664
    %667 = vset.pattern.permute.xlu0 2
    %668 = vperm.xlu0 %667, %v327
    %v669 = vpop.permute.xlu0 %668
    %671 = vset.pattern.permute.xlu0 2
    %672 = vperm.xlu0 %671, %v330
    %v673 = vpop.permute.xlu0 %672
    %675 = vset.pattern.permute.xlu0 2
    %676 = vperm.xlu0 %675, %v335
    %v677 = vpop.permute.xlu0 %676
    %679 = vset.pattern.permute.xlu0 2
    %680 = vperm.xlu0 %679, %v338
    %v681 = vpop.permute.xlu0 %680
    %683 = vset.pattern.permute.xlu0 2
    %684 = vperm.xlu0 %683, %v343
    %v685 = vpop.permute.xlu0 %684
    %687 = vset.pattern.permute.xlu0 2
    %688 = vperm.xlu0 %687, %v346
    %v689 = vpop.permute.xlu0 %688
    %691 = vset.pattern.permute.xlu0 2
    %692 = vperm.xlu0 %691, %v351
    %v693 = vpop.permute.xlu0 %692
    %695 = vset.pattern.permute.xlu0 2
    %696 = vperm.xlu0 %695, %v354
    %v697 = vpop.permute.xlu0 %696
    %699 = vset.pattern.permute.xlu0 2
    %700 = vperm.xlu0 %699, %v359
    %v701 = vpop.permute.xlu0 %700
    %703 = vset.pattern.permute.xlu0 2
    %704 = vperm.xlu0 %703, %v362
    %v705 = vpop.permute.xlu0 %704
    %707 = vset.pattern.permute.xlu0 2
    %708 = vperm.xlu0 %707, %v367
    %v709 = vpop.permute.xlu0 %708
    %711 = vset.pattern.permute.xlu0 2
    %712 = vperm.xlu0 %711, %v370
    %v713 = vpop.permute.xlu0 %712
    %715 = vset.pattern.permute.xlu0 2
    %716 = vperm.xlu0 %715, %v375
    %v717 = vpop.permute.xlu0 %716
    %719 = vset.pattern.permute.xlu0 2
    %720 = vperm.xlu0 %719, %v378
    %v721 = vpop.permute.xlu0 %720
    %v723 = vlaneseq
    %v724 = vshrl.u32 %v723, 7
    %v725 = vsub.s32 2, %v724
    %v726 = vrot.slane %v381, %v725
    %v727 = vlaneseq
    %v728 = vshrl.u32 %v727, 7
    %v729 = vsub.s32 6, %v728
    %v730 = vrot.slane %v381, %v729
    %v733 = vlaneseq
    %v734 = vshrl.u32 %v733, 7
    %v735 = vsub.s32 2, %v734
    %v736 = vrot.slane %v726, %v735
    %v737 = vlaneseq
    %v738 = vshrl.u32 %v737, 7
    %v739 = vsub.s32 2, %v738
    %v740 = vrot.slane %v730, %v739
    %v741 = vmul.f32 %v661, %v736
    %v742 = vmul.f32 %v661, %v740
    %v743 = vmul.f32 %v665, %v736
    %v744 = vmul.f32 %v665, %v740
    %v745 = vmul.f32 %v669, %v736
    %v746 = vmul.f32 %v669, %v740
    %v747 = vmul.f32 %v673, %v736
    %v748 = vmul.f32 %v673, %v740
    %v749 = vmul.f32 %v677, %v736
    %v750 = vmul.f32 %v677, %v740
    %v751 = vmul.f32 %v681, %v736
    %v752 = vmul.f32 %v681, %v740
    %v753 = vmul.f32 %v685, %v736
    %v754 = vmul.f32 %v685, %v740
    %v755 = vmul.f32 %v689, %v736
    %v756 = vmul.f32 %v689, %v740
    %v757 = vmul.f32 %v693, %v736
    %v758 = vmul.f32 %v693, %v740
    %v759 = vmul.f32 %v697, %v736
    %v760 = vmul.f32 %v697, %v740
    %v761 = vmul.f32 %v701, %v736
    %v762 = vmul.f32 %v701, %v740
    %v763 = vmul.f32 %v705, %v736
    %v764 = vmul.f32 %v705, %v740
    %v765 = vmul.f32 %v709, %v736
    %v766 = vmul.f32 %v709, %v740
    %v767 = vmul.f32 %v713, %v736
    %v768 = vmul.f32 %v713, %v740
    %v769 = vmul.f32 %v717, %v736
    %v770 = vmul.f32 %v717, %v740
    %v771 = vmul.f32 %v721, %v736
    %v772 = vmul.f32 %v721, %v740
    %v773 = vadd.f32 %v627, %v741
    %v774 = vadd.f32 %v628, %v742
    %v775 = vadd.f32 %v629, %v743
    %v776 = vadd.f32 %v630, %v744
    %v777 = vadd.f32 %v631, %v745
    %v778 = vadd.f32 %v632, %v746
    %v779 = vadd.f32 %v633, %v747
    %v780 = vadd.f32 %v634, %v748
    %v781 = vadd.f32 %v635, %v749
    %v782 = vadd.f32 %v636, %v750
    %v783 = vadd.f32 %v637, %v751
    %v784 = vadd.f32 %v638, %v752
    %v785 = vadd.f32 %v639, %v753
    %v786 = vadd.f32 %v640, %v754
    %v787 = vadd.f32 %v641, %v755
    %v788 = vadd.f32 %v642, %v756
    %v789 = vadd.f32 %v643, %v757
    %v790 = vadd.f32 %v644, %v758
    %v791 = vadd.f32 %v645, %v759
    %v792 = vadd.f32 %v646, %v760
    %v793 = vadd.f32 %v647, %v761
    %v794 = vadd.f32 %v648, %v762
    %v795 = vadd.f32 %v649, %v763
    %v796 = vadd.f32 %v650, %v764
    %v797 = vadd.f32 %v651, %v765
    %v798 = vadd.f32 %v652, %v766
    %v799 = vadd.f32 %v653, %v767
    %v800 = vadd.f32 %v654, %v768
    %v801 = vadd.f32 %v655, %v769
    %v802 = vadd.f32 %v656, %v770
    %v803 = vadd.f32 %v657, %v771
    %v804 = vadd.f32 %v658, %v772
    %v805 = vld [vmem:[#allocation8] sm:$0x3]
    %v807 = vlaneseq
    %v808 = vshrl.u32 %v807, 7
    %v809 = vsub.s32 0, %v808
    %v810 = vrot.slane %v805, %v809
    %v811 = vlaneseq
    %v812 = vshrl.u32 %v811, 7
    %v813 = vsub.s32 1, %v812
    %v814 = vrot.slane %v805, %v813
    %v817 = vadd.f32 %v773, %v810
    %v818 = vadd.f32 %v774, %v814
    %v819 = vadd.f32 %v775, %v810
    %v820 = vadd.f32 %v776, %v814
    %v821 = vadd.f32 %v777, %v810
    %v822 = vadd.f32 %v778, %v814
    %v823 = vadd.f32 %v779, %v810
    %v824 = vadd.f32 %v780, %v814
    %v825 = vadd.f32 %v781, %v810
    %v826 = vadd.f32 %v782, %v814
    %v827 = vadd.f32 %v783, %v810
    %v828 = vadd.f32 %v784, %v814
    %v829 = vadd.f32 %v785, %v810
    %v830 = vadd.f32 %v786, %v814
    %v831 = vadd.f32 %v787, %v810
    %v832 = vadd.f32 %v788, %v814
    %v833 = vadd.f32 %v789, %v810
    %v834 = vadd.f32 %v790, %v814
    %v835 = vadd.f32 %v791, %v810
    %v836 = vadd.f32 %v792, %v814
    %v837 = vadd.f32 %v793, %v810
    %v838 = vadd.f32 %v794, %v814
    %v839 = vadd.f32 %v795, %v810
    %v840 = vadd.f32 %v796, %v814
    %v841 = vadd.f32 %v797, %v810
    %v842 = vadd.f32 %v798, %v814
    %v843 = vadd.f32 %v799, %v810
    %v844 = vadd.f32 %v800, %v814
    %v845 = vadd.f32 %v801, %v810
    %v846 = vadd.f32 %v802, %v814
    %v847 = vadd.f32 %v803, %v810
    %v848 = vadd.f32 %v804, %v814
    %v849 = vmax.f32 %v817, 0.0
    %v850 = vmax.f32 %v818, 0.0
    %v851 = vmax.f32 %v819, 0.0
    %v852 = vmax.f32 %v820, 0.0
    %v853 = vmax.f32 %v821, 0.0
    %v854 = vmax.f32 %v822, 0.0
    %v855 = vmax.f32 %v823, 0.0
    %v856 = vmax.f32 %v824, 0.0
    %v857 = vmax.f32 %v825, 0.0
    %v858 = vmax.f32 %v826, 0.0
    %v859 = vmax.f32 %v827, 0.0
    %v860 = vmax.f32 %v828, 0.0
    %v861 = vmax.f32 %v829, 0.0
    %v862 = vmax.f32 %v830, 0.0
    %v863 = vmax.f32 %v831, 0.0
    %v864 = vmax.f32 %v832, 0.0
    %v865 = vmax.f32 %v833, 0.0
    %v866 = vmax.f32 %v834, 0.0
    %v867 = vmax.f32 %v835, 0.0
    %v868 = vmax.f32 %v836, 0.0
    %v869 = vmax.f32 %v837, 0.0
    %v870 = vmax.f32 %v838, 0.0
    %v871 = vmax.f32 %v839, 0.0
    %v872 = vmax.f32 %v840, 0.0
    %v873 = vmax.f32 %v841, 0.0
    %v874 = vmax.f32 %v842, 0.0
    %v875 = vmax.f32 %v843, 0.0
    %v876 = vmax.f32 %v844, 0.0
    %v877 = vmax.f32 %v845, 0.0
    %v878 = vmax.f32 %v846, 0.0
    %v879 = vmax.f32 %v847, 0.0
    %v880 = vmax.f32 %v848, 0.0
    %v881 = vpack.c.bf16 %v851, %v849
    %v882 = vpack.c.bf16 %v852, %v850
    %v883 = vpack.c.bf16 %v855, %v853
    %v884 = vpack.c.bf16 %v856, %v854
    %v885 = vpack.c.bf16 %v859, %v857
    %v886 = vpack.c.bf16 %v860, %v858
    %v887 = vpack.c.bf16 %v863, %v861
    %v888 = vpack.c.bf16 %v864, %v862
    %v889 = vpack.c.bf16 %v867, %v865
    %v890 = vpack.c.bf16 %v868, %v866
    %v891 = vpack.c.bf16 %v871, %v869
    %v892 = vpack.c.bf16 %v872, %v870
    %v893 = vpack.c.bf16 %v875, %v873
    %v894 = vpack.c.bf16 %v876, %v874
    %v895 = vpack.c.bf16 %v879, %v877
    %v896 = vpack.c.bf16 %v880, %v878
    %v897 = vld [vmem:[#allocation10] sm:$0xff]
    %v898 = vld [vmem:[#allocation10 + $0x8] sm:$0xff]
    %v899 = vld [vmem:[#allocation10 + $0x10] sm:$0xff]
    %v900 = vld [vmem:[#allocation10 + $0x18] sm:$0xff]
    %v901 = vld [vmem:[#allocation10 + $0x20] sm:$0xff]
    %v902 = vld [vmem:[#allocation10 + $0x28] sm:$0xff]
    %v903 = vld [vmem:[#allocation10 + $0x30] sm:$0xff]
    %v904 = vld [vmem:[#allocation10 + $0x38] sm:$0xff]
    %v905 = vld [vmem:[#allocation10 + $0x40] sm:$0xff]
    %v906 = vld [vmem:[#allocation10 + $0x48] sm:$0xff]
    %v907 = vld [vmem:[#allocation10 + $0x50] sm:$0xff]
    %v908 = vld [vmem:[#allocation10 + $0x58] sm:$0xff]
    %v909 = vld [vmem:[#allocation10 + $0x60] sm:$0xff]
    %v910 = vld [vmem:[#allocation10 + $0x68] sm:$0xff]
    %v911 = vld [vmem:[#allocation10 + $0x70] sm:$0xff]
    %v912 = vld [vmem:[#allocation10 + $0x78] sm:$0xff]
    %v913 = vld [vmem:[#allocation10 + $0x80] sm:$0xff]
    %v914 = vld [vmem:[#allocation10 + $0x88] sm:$0xff]
    %v915 = vld [vmem:[#allocation10 + $0x90] sm:$0xff]
    %v916 = vld [vmem:[#allocation10 + $0x98] sm:$0xff]
    %v917 = vld [vmem:[#allocation10 + $0xa0] sm:$0xff]
    %v918 = vld [vmem:[#allocation10 + $0xa8] sm:$0xff]
    %v919 = vld [vmem:[#allocation10 + $0xb0] sm:$0xff]
    %v920 = vld [vmem:[#allocation10 + $0xb8] sm:$0xff]
    %v921 = vld [vmem:[#allocation10 + $0xc0] sm:$0xff]
    %v922 = vld [vmem:[#allocation10 + $0xc8] sm:$0xff]
    %v923 = vld [vmem:[#allocation10 + $0xd0] sm:$0xff]
    %v924 = vld [vmem:[#allocation10 + $0xd8] sm:$0xff]
    %v925 = vld [vmem:[#allocation10 + $0xe0] sm:$0xff]
    %v926 = vld [vmem:[#allocation10 + $0xe8] sm:$0xff]
    %v927 = vld [vmem:[#allocation10 + $0xf0] sm:$0xff]
    %v928 = vld [vmem:[#allocation10 + $0xf8] sm:$0xff]
    %v961 = vunpack.c.l.b16 %v897
    %v962 = vunpack.c.h.b16 %v897
    %v963 = vunpack.c.l.b16 %v898
    %v964 = vunpack.c.h.b16 %v898
    %v965 = vunpack.c.l.b16 %v899
    %v966 = vunpack.c.h.b16 %v899
    %v967 = vunpack.c.l.b16 %v900
    %v968 = vunpack.c.h.b16 %v900
    %v969 = vunpack.c.l.b16 %v901
    %v970 = vunpack.c.h.b16 %v901
    %v971 = vunpack.c.l.b16 %v902
    %v972 = vunpack.c.h.b16 %v902
    %v973 = vunpack.c.l.b16 %v903
    %v974 = vunpack.c.h.b16 %v903
    %v975 = vunpack.c.l.b16 %v904
    %v976 = vunpack.c.h.b16 %v904
    %v977 = vunpack.c.l.b16 %v905
    %v978 = vunpack.c.h.b16 %v905
    %v979 = vunpack.c.l.b16 %v906
    %v980 = vunpack.c.h.b16 %v906
    %v981 = vunpack.c.l.b16 %v907
    %v982 = vunpack.c.h.b16 %v907
    %v983 = vunpack.c.l.b16 %v908
    %v984 = vunpack.c.h.b16 %v908
    %v985 = vunpack.c.l.b16 %v909
    %v986 = vunpack.c.h.b16 %v909
    %v987 = vunpack.c.l.b16 %v910
    %v988 = vunpack.c.h.b16 %v910
    %v989 = vunpack.c.l.b16 %v911
    %v990 = vunpack.c.h.b16 %v911
    %v991 = vunpack.c.l.b16 %v912
    %v992 = vunpack.c.h.b16 %v912
    %v993 = vunpack.c.l.b16 %v913
    %v994 = vunpack.c.h.b16 %v913
    %v995 = vunpack.c.l.b16 %v914
    %v996 = vunpack.c.h.b16 %v914
    %v997 = vunpack.c.l.b16 %v915
    %v998 = vunpack.c.h.b16 %v915
    %v999 = vunpack.c.l.b16 %v916
    %v1000 = vunpack.c.h.b16 %v916
    %v1001 = vunpack.c.l.b16 %v917
    %v1002 = vunpack.c.h.b16 %v917
    %v1003 = vunpack.c.l.b16 %v918
    %v1004 = vunpack.c.h.b16 %v918
    %v1005 = vunpack.c.l.b16 %v919
    %v1006 = vunpack.c.h.b16 %v919
    %v1007 = vunpack.c.l.b16 %v920
    %v1008 = vunpack.c.h.b16 %v920
    %v1009 = vunpack.c.l.b16 %v921
    %v1010 = vunpack.c.h.b16 %v921
    %v1011 = vunpack.c.l.b16 %v922
    %v1012 = vunpack.c.h.b16 %v922
    %v1013 = vunpack.c.l.b16 %v923
    %v1014 = vunpack.c.h.b16 %v923
    %v1015 = vunpack.c.l.b16 %v924
    %v1016 = vunpack.c.h.b16 %v924
    %v1017 = vunpack.c.l.b16 %v925
    %v1018 = vunpack.c.h.b16 %v925
    %v1019 = vunpack.c.l.b16 %v926
    %v1020 = vunpack.c.h.b16 %v926
    %v1021 = vunpack.c.l.b16 %v927
    %v1022 = vunpack.c.h.b16 %v927
    %v1023 = vunpack.c.l.b16 %v928
    %v1024 = vunpack.c.h.b16 %v928
    %v1025 = vpack.c.b16 %v963, %v961
    %v1026 = vpack.c.b16 %v964, %v962
    %v1027 = vpack.c.b16 %v967, %v965
    %v1028 = vpack.c.b16 %v968, %v966
    %v1029 = vpack.c.b16 %v971, %v969
    %v1030 = vpack.c.b16 %v972, %v970
    %v1031 = vpack.c.b16 %v975, %v973
    %v1032 = vpack.c.b16 %v976, %v974
    %v1033 = vpack.c.b16 %v979, %v977
    %v1034 = vpack.c.b16 %v980, %v978
    %v1035 = vpack.c.b16 %v983, %v981
    %v1036 = vpack.c.b16 %v984, %v982
    %v1037 = vpack.c.b16 %v987, %v985
    %v1038 = vpack.c.b16 %v988, %v986
    %v1039 = vpack.c.b16 %v991, %v989
    %v1040 = vpack.c.b16 %v992, %v990
    %v1041 = vpack.c.b16 %v995, %v993
    %v1042 = vpack.c.b16 %v996, %v994
    %v1043 = vpack.c.b16 %v999, %v997
    %v1044 = vpack.c.b16 %v1000, %v998
    %v1045 = vpack.c.b16 %v1003, %v1001
    %v1046 = vpack.c.b16 %v1004, %v1002
    %v1047 = vpack.c.b16 %v1007, %v1005
    %v1048 = vpack.c.b16 %v1008, %v1006
    %v1049 = vpack.c.b16 %v1011, %v1009
    %v1050 = vpack.c.b16 %v1012, %v1010
    %v1051 = vpack.c.b16 %v1015, %v1013
    %v1052 = vpack.c.b16 %v1016, %v1014
    %v1053 = vpack.c.b16 %v1019, %v1017
    %v1054 = vpack.c.b16 %v1020, %v1018
    %v1055 = vpack.c.b16 %v1023, %v1021
    %v1056 = vpack.c.b16 %v1024, %v1022
    %1089 = vmatprep.subr.bf16.mxu0 %v1040
    %1090 = vmatpush1.bf16.msra.mxu0 %v1039
    %1091 = vmatprep.subr.bf16.mxu0 %v1038
    %1092 = vmatpush1.bf16.msra.mxu0 %v1037
    %1093 = vmatprep.subr.bf16.mxu0 %v1036
    %1094 = vmatpush1.bf16.msra.mxu0 %v1035
    %1095 = vmatprep.subr.bf16.mxu0 %v1034
    %1096 = vmatpush1.bf16.msra.mxu0 %v1033
    %1097 = vmatprep.subr.bf16.mxu0 %v1032
    %1098 = vmatpush1.bf16.msra.mxu0 %v1031
    %1099 = vmatprep.subr.bf16.mxu0 %v1030
    %1100 = vmatpush1.bf16.msra.mxu0 %v1029
    %1101 = vmatprep.subr.bf16.mxu0 %v1028
    %1102 = vmatpush1.bf16.msra.mxu0 %v1027
    %1103 = vmatprep.subr.bf16.mxu0 %v1026
    %1104 = vmatpush1.bf16.msra.mxu0 %v1025
    %1105 = vmatprep.subr.bf16.mxu0 %v1056
    %1106 = vmatpush2.bf16.msra.mxu0 %v1055
    %1107 = vmatprep.subr.bf16.mxu0 %v1054
    %1108 = vmatpush2.bf16.msra.mxu0 %v1053
    %1109 = vmatprep.subr.bf16.mxu0 %v1052
    %1110 = vmatpush2.bf16.msra.mxu0 %v1051
    %1111 = vmatprep.subr.bf16.mxu0 %v1050
    %1112 = vmatpush2.bf16.msra.mxu0 %v1049
    %1113 = vmatprep.subr.bf16.mxu0 %v1048
    %1114 = vmatpush2.bf16.msra.mxu0 %v1047
    %1115 = vmatprep.subr.bf16.mxu0 %v1046
    %1116 = vmatpush2.bf16.msra.mxu0 %v1045
    %1117 = vmatprep.subr.bf16.mxu0 %v1044
    %1118 = vmatpush2.bf16.msra.mxu0 %v1043
    %1119 = vmatprep.subr.bf16.mxu0 %v1042
    %1120 = vmatpush2.bf16.msra.mxu0 %v1041
    %1121 = vmatprep.mubr.bf16.mxu0 %v882
    %1122 = vmatmul.mubr.bf16.gmra.mxu0 %v881
    %v1123 = vpop.f32.mrf.mxu0
    %v1124 = vadd.f32 0.0, %v1123
    %v1125 = vpop.f32.mrf.mxu0
    %v1126 = vadd.f32 0.0, %v1125
    %v1127 = vpop.f32.mrf.mxu0
    %v1128 = vadd.f32 0.0, %v1127
    %v1129 = vpop.f32.mrf.mxu0
    %v1130 = vadd.f32 0.0, %v1129
    %1131 = vmatprep.mubr.bf16.mxu0 %v884
    %1132 = vmatmul.mubr.bf16.gmra.mxu0 %v883
    %v1133 = vpop.f32.mrf.mxu0
    %v1134 = vadd.f32 0.0, %v1133
    %v1135 = vpop.f32.mrf.mxu0
    %v1136 = vadd.f32 0.0, %v1135
    %v1137 = vpop.f32.mrf.mxu0
    %v1138 = vadd.f32 0.0, %v1137
    %v1139 = vpop.f32.mrf.mxu0
    %v1140 = vadd.f32 0.0, %v1139
    %1141 = vmatprep.mubr.bf16.mxu0 %v886
    %1142 = vmatmul.mubr.bf16.gmra.mxu0 %v885
    %v1143 = vpop.f32.mrf.mxu0
    %v1144 = vadd.f32 0.0, %v1143
    %v1145 = vpop.f32.mrf.mxu0
    %v1146 = vadd.f32 0.0, %v1145
    %v1147 = vpop.f32.mrf.mxu0
    %v1148 = vadd.f32 0.0, %v1147
    %v1149 = vpop.f32.mrf.mxu0
    %v1150 = vadd.f32 0.0, %v1149
    %1151 = vmatprep.mubr.bf16.mxu0 %v888
    %1152 = vmatmul.mubr.bf16.gmra.mxu0 %v887
    %v1153 = vpop.f32.mrf.mxu0
    %v1154 = vadd.f32 0.0, %v1153
    %v1155 = vpop.f32.mrf.mxu0
    %v1156 = vadd.f32 0.0, %v1155
    %v1157 = vpop.f32.mrf.mxu0
    %v1158 = vadd.f32 0.0, %v1157
    %v1159 = vpop.f32.mrf.mxu0
    %v1160 = vadd.f32 0.0, %v1159
    %1161 = vmatprep.mubr.bf16.mxu0 %v890
    %1162 = vmatmul.mubr.bf16.gmra.mxu0 %v889
    %v1163 = vpop.f32.mrf.mxu0
    %v1164 = vadd.f32 0.0, %v1163
    %v1165 = vpop.f32.mrf.mxu0
    %v1166 = vadd.f32 0.0, %v1165
    %v1167 = vpop.f32.mrf.mxu0
    %v1168 = vadd.f32 0.0, %v1167
    %v1169 = vpop.f32.mrf.mxu0
    %v1170 = vadd.f32 0.0, %v1169
    %1171 = vmatprep.mubr.bf16.mxu0 %v892
    %1172 = vmatmul.mubr.bf16.gmra.mxu0 %v891
    %v1173 = vpop.f32.mrf.mxu0
    %v1174 = vadd.f32 0.0, %v1173
    %v1175 = vpop.f32.mrf.mxu0
    %v1176 = vadd.f32 0.0, %v1175
    %v1177 = vpop.f32.mrf.mxu0
    %v1178 = vadd.f32 0.0, %v1177
    %v1179 = vpop.f32.mrf.mxu0
    %v1180 = vadd.f32 0.0, %v1179
    %1181 = vmatprep.mubr.bf16.mxu0 %v894
    %1182 = vmatmul.mubr.bf16.gmra.mxu0 %v893
    %v1183 = vpop.f32.mrf.mxu0
    %v1184 = vadd.f32 0.0, %v1183
    %v1185 = vpop.f32.mrf.mxu0
    %v1186 = vadd.f32 0.0, %v1185
    %v1187 = vpop.f32.mrf.mxu0
    %v1188 = vadd.f32 0.0, %v1187
    %v1189 = vpop.f32.mrf.mxu0
    %v1190 = vadd.f32 0.0, %v1189
    %1191 = vmatprep.mubr.bf16.mxu0 %v896
    %1192 = vmatmul.mubr.bf16.gmra.mxu0 %v895
    %v1193 = vpop.f32.mrf.mxu0
    %v1194 = vadd.f32 0.0, %v1193
    %v1195 = vpop.f32.mrf.mxu0
    %v1196 = vadd.f32 0.0, %v1195
    %v1197 = vpop.f32.mrf.mxu0
    %v1198 = vadd.f32 0.0, %v1197
    %v1199 = vpop.f32.mrf.mxu0
    %v1200 = vadd.f32 0.0, %v1199
    %1201 = vdwg.mxu0
    %v1202 = vpack.c.bf16 %v1128, %v1124
    %v1203 = vpack.c.bf16 %v1130, %v1126
    %v1204 = vpack.c.bf16 %v1138, %v1134
    %v1205 = vpack.c.bf16 %v1140, %v1136
    %v1206 = vpack.c.bf16 %v1148, %v1144
    %v1207 = vpack.c.bf16 %v1150, %v1146
    %v1208 = vpack.c.bf16 %v1158, %v1154
    %v1209 = vpack.c.bf16 %v1160, %v1156
    %v1210 = vpack.c.bf16 %v1168, %v1164
    %v1211 = vpack.c.bf16 %v1170, %v1166
    %v1212 = vpack.c.bf16 %v1178, %v1174
    %v1213 = vpack.c.bf16 %v1180, %v1176
    %v1214 = vpack.c.bf16 %v1188, %v1184
    %v1215 = vpack.c.bf16 %v1190, %v1186
    %v1216 = vpack.c.bf16 %v1198, %v1194
    %v1217 = vpack.c.bf16 %v1200, %v1196
    %v1218 = vld [vmem:[#allocation11] sm:$0x3]
    %v1220 = vlaneseq
    %v1221 = vshrl.u32 %v1220, 7
    %v1222 = vsub.s32 0, %v1221
    %v1223 = vrot.slane %v1218, %v1222
    %v1224 = vlaneseq
    %v1225 = vshrl.u32 %v1224, 7
    %v1226 = vsub.s32 1, %v1225
    %v1227 = vrot.slane %v1218, %v1226
    %1230 = vmatprep.subr.bf16.mxu0 %v1217
    %1231 = vmatpush1.bf16.msra.mxu0 %v1216
    %1232 = vmatprep.subr.bf16.mxu0 %v1215
    %1233 = vmatpush1.bf16.msra.mxu0 %v1214
    %1234 = vmatprep.subr.bf16.mxu0 %v1213
    %1235 = vmatpush1.bf16.msra.mxu0 %v1212
    %1236 = vmatprep.subr.bf16.mxu0 %v1211
    %1237 = vmatpush1.bf16.msra.mxu0 %v1210
    %1238 = vmatprep.subr.bf16.mxu0 %v1209
    %1239 = vmatpush1.bf16.msra.mxu0 %v1208
    %1240 = vmatprep.subr.bf16.mxu0 %v1207
    %1241 = vmatpush1.bf16.msra.mxu0 %v1206
    %1242 = vmatprep.subr.bf16.mxu0 %v1205
    %1243 = vmatpush1.bf16.msra.mxu0 %v1204
    %1244 = vmatprep.subr.bf16.mxu0 %v1203
    %1245 = vmatpush1.bf16.msra.mxu0 %v1202
    %1246 = vmatprep.subr.bf16.mxu0 0
    %1247 = vmatpush2.bf16.msra.mxu0 0
    %1248 = vmatprep.subr.bf16.mxu0 0
    %1249 = vmatpush2.bf16.msra.mxu0 0
    %1250 = vmatprep.subr.bf16.mxu0 0
    %1251 = vmatpush2.bf16.msra.mxu0 0
    %1252 = vmatprep.subr.bf16.mxu0 0
    %1253 = vmatpush2.bf16.msra.mxu0 0
    %1254 = vmatprep.subr.bf16.mxu0 0
    %1255 = vmatpush2.bf16.msra.mxu0 0
    %1256 = vmatprep.subr.bf16.mxu0 0
    %1257 = vmatpush2.bf16.msra.mxu0 0
    %1258 = vmatprep.subr.bf16.mxu0 0
    %1259 = vmatpush2.bf16.msra.mxu0 0
    %1260 = vmatprep.subr.bf16.mxu0 0
    %1261 = vmatpush2.bf16.msra.mxu0 0
    %1262 = vmatprep.mubr.bf16.mxu0 0
    %1263 = vmatmul.mubr.bf16.gmra.mxu0 %v268
    %v1264 = vpop.f32.mrf.mxu0
    %v1265 = vadd.f32 %v1223, %v1264
    %v1266 = vpop.f32.mrf.mxu0
    %v1267 = vadd.f32 %v1227, %v1266
    %v1268 = vpop.f32.mrf.mxu0
    %v1269 = vadd.f32 %v1223, %v1268
    %v1270 = vpop.f32.mrf.mxu0
    %v1271 = vadd.f32 %v1227, %v1270
    %1272 = vmatprep.mubr.bf16.mxu0 0
    %1273 = vmatmul.mubr.bf16.gmra.mxu0 %v269
    %v1274 = vpop.f32.mrf.mxu0
    %v1275 = vadd.f32 %v1223, %v1274
    %v1276 = vpop.f32.mrf.mxu0
    %v1277 = vadd.f32 %v1227, %v1276
    %v1278 = vpop.f32.mrf.mxu0
    %v1279 = vadd.f32 %v1223, %v1278
    %v1280 = vpop.f32.mrf.mxu0
    %v1281 = vadd.f32 %v1227, %v1280
    %1282 = vmatprep.mubr.bf16.mxu0 0
    %1283 = vmatmul.mubr.bf16.gmra.mxu0 %v270
    %v1284 = vpop.f32.mrf.mxu0
    %v1285 = vadd.f32 %v1223, %v1284
    %v1286 = vpop.f32.mrf.mxu0
    %v1287 = vadd.f32 %v1227, %v1286
    %v1288 = vpop.f32.mrf.mxu0
    %v1289 = vadd.f32 %v1223, %v1288
    %v1290 = vpop.f32.mrf.mxu0
    %v1291 = vadd.f32 %v1227, %v1290
    %1292 = vmatprep.mubr.bf16.mxu0 0
    %1293 = vmatmul.mubr.bf16.gmra.mxu0 %v271
    %v1294 = vpop.f32.mrf.mxu0
    %v1295 = vadd.f32 %v1223, %v1294
    %v1296 = vpop.f32.mrf.mxu0
    %v1297 = vadd.f32 %v1227, %v1296
    %v1298 = vpop.f32.mrf.mxu0
    %v1299 = vadd.f32 %v1223, %v1298
    %v1300 = vpop.f32.mrf.mxu0
    %v1301 = vadd.f32 %v1227, %v1300
    %1302 = vmatprep.mubr.bf16.mxu0 0
    %1303 = vmatmul.mubr.bf16.gmra.mxu0 %v272
    %v1304 = vpop.f32.mrf.mxu0
    %v1305 = vadd.f32 %v1223, %v1304
    %v1306 = vpop.f32.mrf.mxu0
    %v1307 = vadd.f32 %v1227, %v1306
    %v1308 = vpop.f32.mrf.mxu0
    %v1309 = vadd.f32 %v1223, %v1308
    %v1310 = vpop.f32.mrf.mxu0
    %v1311 = vadd.f32 %v1227, %v1310
    %1312 = vmatprep.mubr.bf16.mxu0 0
    %1313 = vmatmul.mubr.bf16.gmra.mxu0 %v273
    %v1314 = vpop.f32.mrf.mxu0
    %v1315 = vadd.f32 %v1223, %v1314
    %v1316 = vpop.f32.mrf.mxu0
    %v1317 = vadd.f32 %v1227, %v1316
    %v1318 = vpop.f32.mrf.mxu0
    %v1319 = vadd.f32 %v1223, %v1318
    %v1320 = vpop.f32.mrf.mxu0
    %v1321 = vadd.f32 %v1227, %v1320
    %1322 = vmatprep.mubr.bf16.mxu0 0
    %1323 = vmatmul.mubr.bf16.gmra.mxu0 %v274
    %v1324 = vpop.f32.mrf.mxu0
    %v1325 = vadd.f32 %v1223, %v1324
    %v1326 = vpop.f32.mrf.mxu0
    %v1327 = vadd.f32 %v1227, %v1326
    %v1328 = vpop.f32.mrf.mxu0
    %v1329 = vadd.f32 %v1223, %v1328
    %v1330 = vpop.f32.mrf.mxu0
    %v1331 = vadd.f32 %v1227, %v1330
    %1332 = vmatprep.mubr.bf16.mxu0 0
    %1333 = vmatmul.mubr.bf16.gmra.mxu0 %v275
    %v1334 = vpop.f32.mrf.mxu0
    %v1335 = vadd.f32 %v1223, %v1334
    %v1336 = vpop.f32.mrf.mxu0
    %v1337 = vadd.f32 %v1227, %v1336
    %v1338 = vpop.f32.mrf.mxu0
    %v1339 = vadd.f32 %v1223, %v1338
    %v1340 = vpop.f32.mrf.mxu0
    %v1341 = vadd.f32 %v1227, %v1340
    %1342 = vdwg.mxu0
    %v1343 = vmax.f32 %v1265, 0.0
    %v1344 = vmax.f32 %v1267, 0.0
    %v1345 = vmax.f32 %v1269, 0.0
    %v1346 = vmax.f32 %v1271, 0.0
    %v1347 = vmax.f32 %v1275, 0.0
    %v1348 = vmax.f32 %v1277, 0.0
    %v1349 = vmax.f32 %v1279, 0.0
    %v1350 = vmax.f32 %v1281, 0.0
    %v1351 = vmax.f32 %v1285, 0.0
    %v1352 = vmax.f32 %v1287, 0.0
    %v1353 = vmax.f32 %v1289, 0.0
    %v1354 = vmax.f32 %v1291, 0.0
    %v1355 = vmax.f32 %v1295, 0.0
    %v1356 = vmax.f32 %v1297, 0.0
    %v1357 = vmax.f32 %v1299, 0.0
    %v1358 = vmax.f32 %v1301, 0.0
    %v1359 = vmax.f32 %v1305, 0.0
    %v1360 = vmax.f32 %v1307, 0.0
    %v1361 = vmax.f32 %v1309, 0.0
    %v1362 = vmax.f32 %v1311, 0.0
    %v1363 = vmax.f32 %v1315, 0.0
    %v1364 = vmax.f32 %v1317, 0.0
    %v1365 = vmax.f32 %v1319, 0.0
    %v1366 = vmax.f32 %v1321, 0.0
    %v1367 = vmax.f32 %v1325, 0.0
    %v1368 = vmax.f32 %v1327, 0.0
    %v1369 = vmax.f32 %v1329, 0.0
    %v1370 = vmax.f32 %v1331, 0.0
    %v1371 = vmax.f32 %v1335, 0.0
    %v1372 = vmax.f32 %v1337, 0.0
    %v1373 = vmax.f32 %v1339, 0.0
    %v1374 = vmax.f32 %v1341, 0.0
    %v1375 = vpack.c.bf16 %v1345, %v1343
    %v1376 = vpack.c.bf16 %v1346, %v1344
    %v1377 = vpack.c.bf16 %v1349, %v1347
    %v1378 = vpack.c.bf16 %v1350, %v1348
    %v1379 = vpack.c.bf16 %v1353, %v1351
    %v1380 = vpack.c.bf16 %v1354, %v1352
    %v1381 = vpack.c.bf16 %v1357, %v1355
    %v1382 = vpack.c.bf16 %v1358, %v1356
    %v1383 = vpack.c.bf16 %v1361, %v1359
    %v1384 = vpack.c.bf16 %v1362, %v1360
    %v1385 = vpack.c.bf16 %v1365, %v1363
    %v1386 = vpack.c.bf16 %v1366, %v1364
    %v1387 = vpack.c.bf16 %v1369, %v1367
    %v1388 = vpack.c.bf16 %v1370, %v1368
    %v1389 = vpack.c.bf16 %v1373, %v1371
    %v1390 = vpack.c.bf16 %v1374, %v1372
    %v1391 = vld [vmem:[#allocation13] sm:$0xff]
    %v1392 = vld [vmem:[#allocation13 + $0x8] sm:$0xff]
    %v1393 = vld [vmem:[#allocation13 + $0x10] sm:$0xff]
    %v1394 = vld [vmem:[#allocation13 + $0x18] sm:$0xff]
    %v1395 = vld [vmem:[#allocation13 + $0x20] sm:$0xff]
    %v1396 = vld [vmem:[#allocation13 + $0x28] sm:$0xff]
    %v1397 = vld [vmem:[#allocation13 + $0x30] sm:$0xff]
    %v1398 = vld [vmem:[#allocation13 + $0x38] sm:$0xff]
    %v1399 = vld [vmem:[#allocation13 + $0x40] sm:$0xff]
    %v1400 = vld [vmem:[#allocation13 + $0x48] sm:$0xff]
    %v1401 = vld [vmem:[#allocation13 + $0x50] sm:$0xff]
    %v1402 = vld [vmem:[#allocation13 + $0x58] sm:$0xff]
    %v1403 = vld [vmem:[#allocation13 + $0x60] sm:$0xff]
    %v1404 = vld [vmem:[#allocation13 + $0x68] sm:$0xff]
    %v1405 = vld [vmem:[#allocation13 + $0x70] sm:$0xff]
    %v1406 = vld [vmem:[#allocation13 + $0x78] sm:$0xff]
    %v1407 = vld [vmem:[#allocation13 + $0x80] sm:$0xff]
    %v1408 = vld [vmem:[#allocation13 + $0x88] sm:$0xff]
    %v1409 = vld [vmem:[#allocation13 + $0x90] sm:$0xff]
    %v1410 = vld [vmem:[#allocation13 + $0x98] sm:$0xff]
    %v1411 = vld [vmem:[#allocation13 + $0xa0] sm:$0xff]
    %v1412 = vld [vmem:[#allocation13 + $0xa8] sm:$0xff]
    %v1413 = vld [vmem:[#allocation13 + $0xb0] sm:$0xff]
    %v1414 = vld [vmem:[#allocation13 + $0xb8] sm:$0xff]
    %v1415 = vld [vmem:[#allocation13 + $0xc0] sm:$0xff]
    %v1416 = vld [vmem:[#allocation13 + $0xc8] sm:$0xff]
    %v1417 = vld [vmem:[#allocation13 + $0xd0] sm:$0xff]
    %v1418 = vld [vmem:[#allocation13 + $0xd8] sm:$0xff]
    %v1419 = vld [vmem:[#allocation13 + $0xe0] sm:$0xff]
    %v1420 = vld [vmem:[#allocation13 + $0xe8] sm:$0xff]
    %v1421 = vld [vmem:[#allocation13 + $0xf0] sm:$0xff]
    %v1422 = vld [vmem:[#allocation13 + $0xf8] sm:$0xff]
    %v1455 = vunpack.c.l.b16 %v1391
    %v1456 = vunpack.c.h.b16 %v1391
    %v1457 = vunpack.c.l.b16 %v1392
    %v1458 = vunpack.c.h.b16 %v1392
    %v1459 = vunpack.c.l.b16 %v1393
    %v1460 = vunpack.c.h.b16 %v1393
    %v1461 = vunpack.c.l.b16 %v1394
    %v1462 = vunpack.c.h.b16 %v1394
    %v1463 = vunpack.c.l.b16 %v1395
    %v1464 = vunpack.c.h.b16 %v1395
    %v1465 = vunpack.c.l.b16 %v1396
    %v1466 = vunpack.c.h.b16 %v1396
    %v1467 = vunpack.c.l.b16 %v1397
    %v1468 = vunpack.c.h.b16 %v1397
    %v1469 = vunpack.c.l.b16 %v1398
    %v1470 = vunpack.c.h.b16 %v1398
    %v1471 = vunpack.c.l.b16 %v1399
    %v1472 = vunpack.c.h.b16 %v1399
    %v1473 = vunpack.c.l.b16 %v1400
    %v1474 = vunpack.c.h.b16 %v1400
    %v1475 = vunpack.c.l.b16 %v1401
    %v1476 = vunpack.c.h.b16 %v1401
    %v1477 = vunpack.c.l.b16 %v1402
    %v1478 = vunpack.c.h.b16 %v1402
    %v1479 = vunpack.c.l.b16 %v1403
    %v1480 = vunpack.c.h.b16 %v1403
    %v1481 = vunpack.c.l.b16 %v1404
    %v1482 = vunpack.c.h.b16 %v1404
    %v1483 = vunpack.c.l.b16 %v1405
    %v1484 = vunpack.c.h.b16 %v1405
    %v1485 = vunpack.c.l.b16 %v1406
    %v1486 = vunpack.c.h.b16 %v1406
    %v1487 = vunpack.c.l.b16 %v1407
    %v1488 = vunpack.c.h.b16 %v1407
    %v1489 = vunpack.c.l.b16 %v1408
    %v1490 = vunpack.c.h.b16 %v1408
    %v1491 = vunpack.c.l.b16 %v1409
    %v1492 = vunpack.c.h.b16 %v1409
    %v1493 = vunpack.c.l.b16 %v1410
    %v1494 = vunpack.c.h.b16 %v1410
    %v1495 = vunpack.c.l.b16 %v1411
    %v1496 = vunpack.c.h.b16 %v1411
    %v1497 = vunpack.c.l.b16 %v1412
    %v1498 = vunpack.c.h.b16 %v1412
    %v1499 = vunpack.c.l.b16 %v1413
    %v1500 = vunpack.c.h.b16 %v1413
    %v1501 = vunpack.c.l.b16 %v1414
    %v1502 = vunpack.c.h.b16 %v1414
    %v1503 = vunpack.c.l.b16 %v1415
    %v1504 = vunpack.c.h.b16 %v1415
    %v1505 = vunpack.c.l.b16 %v1416
    %v1506 = vunpack.c.h.b16 %v1416
    %v1507 = vunpack.c.l.b16 %v1417
    %v1508 = vunpack.c.h.b16 %v1417
    %v1509 = vunpack.c.l.b16 %v1418
    %v1510 = vunpack.c.h.b16 %v1418
    %v1511 = vunpack.c.l.b16 %v1419
    %v1512 = vunpack.c.h.b16 %v1419
    %v1513 = vunpack.c.l.b16 %v1420
    %v1514 = vunpack.c.h.b16 %v1420
    %v1515 = vunpack.c.l.b16 %v1421
    %v1516 = vunpack.c.h.b16 %v1421
    %v1517 = vunpack.c.l.b16 %v1422
    %v1518 = vunpack.c.h.b16 %v1422
    %v1519 = vpack.c.b16 %v1457, %v1455
    %v1520 = vpack.c.b16 %v1458, %v1456
    %v1521 = vpack.c.b16 %v1461, %v1459
    %v1522 = vpack.c.b16 %v1462, %v1460
    %v1523 = vpack.c.b16 %v1465, %v1463
    %v1524 = vpack.c.b16 %v1466, %v1464
    %v1525 = vpack.c.b16 %v1469, %v1467
    %v1526 = vpack.c.b16 %v1470, %v1468
    %v1527 = vpack.c.b16 %v1473, %v1471
    %v1528 = vpack.c.b16 %v1474, %v1472
    %v1529 = vpack.c.b16 %v1477, %v1475
    %v1530 = vpack.c.b16 %v1478, %v1476
    %v1531 = vpack.c.b16 %v1481, %v1479
    %v1532 = vpack.c.b16 %v1482, %v1480
    %v1533 = vpack.c.b16 %v1485, %v1483
    %v1534 = vpack.c.b16 %v1486, %v1484
    %v1535 = vpack.c.b16 %v1489, %v1487
    %v1536 = vpack.c.b16 %v1490, %v1488
    %v1537 = vpack.c.b16 %v1493, %v1491
    %v1538 = vpack.c.b16 %v1494, %v1492
    %v1539 = vpack.c.b16 %v1497, %v1495
    %v1540 = vpack.c.b16 %v1498, %v1496
    %v1541 = vpack.c.b16 %v1501, %v1499
    %v1542 = vpack.c.b16 %v1502, %v1500
    %v1543 = vpack.c.b16 %v1505, %v1503
    %v1544 = vpack.c.b16 %v1506, %v1504
    %v1545 = vpack.c.b16 %v1509, %v1507
    %v1546 = vpack.c.b16 %v1510, %v1508
    %v1547 = vpack.c.b16 %v1513, %v1511
    %v1548 = vpack.c.b16 %v1514, %v1512
    %v1549 = vpack.c.b16 %v1517, %v1515
    %v1550 = vpack.c.b16 %v1518, %v1516
    %1583 = vmatprep.subr.bf16.mxu0 %v1534
    %1584 = vmatpush1.bf16.msra.mxu0 %v1533
    %1585 = vmatprep.subr.bf16.mxu0 %v1532
    %1586 = vmatpush1.bf16.msra.mxu0 %v1531
    %1587 = vmatprep.subr.bf16.mxu0 %v1530
    %1588 = vmatpush1.bf16.msra.mxu0 %v1529
    %1589 = vmatprep.subr.bf16.mxu0 %v1528
    %1590 = vmatpush1.bf16.msra.mxu0 %v1527
    %1591 = vmatprep.subr.bf16.mxu0 %v1526
    %1592 = vmatpush1.bf16.msra.mxu0 %v1525
    %1593 = vmatprep.subr.bf16.mxu0 %v1524
    %1594 = vmatpush1.bf16.msra.mxu0 %v1523
    %1595 = vmatprep.subr.bf16.mxu0 %v1522
    %1596 = vmatpush1.bf16.msra.mxu0 %v1521
    %1597 = vmatprep.subr.bf16.mxu0 %v1520
    %1598 = vmatpush1.bf16.msra.mxu0 %v1519
    %1599 = vmatprep.subr.bf16.mxu0 %v1550
    %1600 = vmatpush2.bf16.msra.mxu0 %v1549
    %1601 = vmatprep.subr.bf16.mxu0 %v1548
    %1602 = vmatpush2.bf16.msra.mxu0 %v1547
    %1603 = vmatprep.subr.bf16.mxu0 %v1546
    %1604 = vmatpush2.bf16.msra.mxu0 %v1545
    %1605 = vmatprep.subr.bf16.mxu0 %v1544
    %1606 = vmatpush2.bf16.msra.mxu0 %v1543
    %1607 = vmatprep.subr.bf16.mxu0 %v1542
    %1608 = vmatpush2.bf16.msra.mxu0 %v1541
    %1609 = vmatprep.subr.bf16.mxu0 %v1540
    %1610 = vmatpush2.bf16.msra.mxu0 %v1539
    %1611 = vmatprep.subr.bf16.mxu0 %v1538
    %1612 = vmatpush2.bf16.msra.mxu0 %v1537
    %1613 = vmatprep.subr.bf16.mxu0 %v1536
    %1614 = vmatpush2.bf16.msra.mxu0 %v1535
    %1615 = vmatprep.mubr.bf16.mxu0 %v1376
    %1616 = vmatmul.mubr.bf16.gmra.mxu0 %v1375
    %v1617 = vpop.f32.mrf.mxu0
    %v1618 = vadd.f32 0.0, %v1617
    %v1619 = vpop.f32.mrf.mxu0
    %v1620 = vadd.f32 0.0, %v1619
    %v1621 = vpop.f32.mrf.mxu0
    %v1622 = vadd.f32 0.0, %v1621
    %v1623 = vpop.f32.mrf.mxu0
    %v1624 = vadd.f32 0.0, %v1623
    %1625 = vmatprep.mubr.bf16.mxu0 %v1378
    %1626 = vmatmul.mubr.bf16.gmra.mxu0 %v1377
    %v1627 = vpop.f32.mrf.mxu0
    %v1628 = vadd.f32 0.0, %v1627
    %v1629 = vpop.f32.mrf.mxu0
    %v1630 = vadd.f32 0.0, %v1629
    %v1631 = vpop.f32.mrf.mxu0
    %v1632 = vadd.f32 0.0, %v1631
    %v1633 = vpop.f32.mrf.mxu0
    %v1634 = vadd.f32 0.0, %v1633
    %1635 = vmatprep.mubr.bf16.mxu0 %v1380
    %1636 = vmatmul.mubr.bf16.gmra.mxu0 %v1379
    %v1637 = vpop.f32.mrf.mxu0
    %v1638 = vadd.f32 0.0, %v1637
    %v1639 = vpop.f32.mrf.mxu0
    %v1640 = vadd.f32 0.0, %v1639
    %v1641 = vpop.f32.mrf.mxu0
    %v1642 = vadd.f32 0.0, %v1641
    %v1643 = vpop.f32.mrf.mxu0
    %v1644 = vadd.f32 0.0, %v1643
    %1645 = vmatprep.mubr.bf16.mxu0 %v1382
    %1646 = vmatmul.mubr.bf16.gmra.mxu0 %v1381
    %v1647 = vpop.f32.mrf.mxu0
    %v1648 = vadd.f32 0.0, %v1647
    %v1649 = vpop.f32.mrf.mxu0
    %v1650 = vadd.f32 0.0, %v1649
    %v1651 = vpop.f32.mrf.mxu0
    %v1652 = vadd.f32 0.0, %v1651
    %v1653 = vpop.f32.mrf.mxu0
    %v1654 = vadd.f32 0.0, %v1653
    %1655 = vmatprep.mubr.bf16.mxu0 %v1384
    %1656 = vmatmul.mubr.bf16.gmra.mxu0 %v1383
    %v1657 = vpop.f32.mrf.mxu0
    %v1658 = vadd.f32 0.0, %v1657
    %v1659 = vpop.f32.mrf.mxu0
    %v1660 = vadd.f32 0.0, %v1659
    %v1661 = vpop.f32.mrf.mxu0
    %v1662 = vadd.f32 0.0, %v1661
    %v1663 = vpop.f32.mrf.mxu0
    %v1664 = vadd.f32 0.0, %v1663
    %1665 = vmatprep.mubr.bf16.mxu0 %v1386
    %1666 = vmatmul.mubr.bf16.gmra.mxu0 %v1385
    %v1667 = vpop.f32.mrf.mxu0
    %v1668 = vadd.f32 0.0, %v1667
    %v1669 = vpop.f32.mrf.mxu0
    %v1670 = vadd.f32 0.0, %v1669
    %v1671 = vpop.f32.mrf.mxu0
    %v1672 = vadd.f32 0.0, %v1671
    %v1673 = vpop.f32.mrf.mxu0
    %v1674 = vadd.f32 0.0, %v1673
    %1675 = vmatprep.mubr.bf16.mxu0 %v1388
    %1676 = vmatmul.mubr.bf16.gmra.mxu0 %v1387
    %v1677 = vpop.f32.mrf.mxu0
    %v1678 = vadd.f32 0.0, %v1677
    %v1679 = vpop.f32.mrf.mxu0
    %v1680 = vadd.f32 0.0, %v1679
    %v1681 = vpop.f32.mrf.mxu0
    %v1682 = vadd.f32 0.0, %v1681
    %v1683 = vpop.f32.mrf.mxu0
    %v1684 = vadd.f32 0.0, %v1683
    %1685 = vmatprep.mubr.bf16.mxu0 %v1390
    %1686 = vmatmul.mubr.bf16.gmra.mxu0 %v1389
    %v1687 = vpop.f32.mrf.mxu0
    %v1688 = vadd.f32 0.0, %v1687
    %v1689 = vpop.f32.mrf.mxu0
    %v1690 = vadd.f32 0.0, %v1689
    %v1691 = vpop.f32.mrf.mxu0
    %v1692 = vadd.f32 0.0, %v1691
    %v1693 = vpop.f32.mrf.mxu0
    %v1694 = vadd.f32 0.0, %v1693
    %1695 = vdwg.mxu0
    %v1696 = vpack.c.bf16 %v1622, %v1618
    %v1697 = vpack.c.bf16 %v1624, %v1620
    %v1698 = vpack.c.bf16 %v1632, %v1628
    %v1699 = vpack.c.bf16 %v1634, %v1630
    %v1700 = vpack.c.bf16 %v1642, %v1638
    %v1701 = vpack.c.bf16 %v1644, %v1640
    %v1702 = vpack.c.bf16 %v1652, %v1648
    %v1703 = vpack.c.bf16 %v1654, %v1650
    %v1704 = vpack.c.bf16 %v1662, %v1658
    %v1705 = vpack.c.bf16 %v1664, %v1660
    %v1706 = vpack.c.bf16 %v1672, %v1668
    %v1707 = vpack.c.bf16 %v1674, %v1670
    %v1708 = vpack.c.bf16 %v1682, %v1678
    %v1709 = vpack.c.bf16 %v1684, %v1680
    %v1710 = vpack.c.bf16 %v1692, %v1688
    %v1711 = vpack.c.bf16 %v1694, %v1690
    %v1712 = vld [vmem:[#allocation14] sm:$0x3]
    %v1714 = vlaneseq
    %v1715 = vshrl.u32 %v1714, 7
    %v1716 = vsub.s32 0, %v1715
    %v1717 = vrot.slane %v1712, %v1716
    %v1718 = vlaneseq
    %v1719 = vshrl.u32 %v1718, 7
    %v1720 = vsub.s32 1, %v1719
    %v1721 = vrot.slane %v1712, %v1720
    %1724 = vmatprep.subr.bf16.mxu0 %v1711
    %1725 = vmatpush1.bf16.msra.mxu0 %v1710
    %1726 = vmatprep.subr.bf16.mxu0 %v1709
    %1727 = vmatpush1.bf16.msra.mxu0 %v1708
    %1728 = vmatprep.subr.bf16.mxu0 %v1707
    %1729 = vmatpush1.bf16.msra.mxu0 %v1706
    %1730 = vmatprep.subr.bf16.mxu0 %v1705
    %1731 = vmatpush1.bf16.msra.mxu0 %v1704
    %1732 = vmatprep.subr.bf16.mxu0 %v1703
    %1733 = vmatpush1.bf16.msra.mxu0 %v1702
    %1734 = vmatprep.subr.bf16.mxu0 %v1701
    %1735 = vmatpush1.bf16.msra.mxu0 %v1700
    %1736 = vmatprep.subr.bf16.mxu0 %v1699
    %1737 = vmatpush1.bf16.msra.mxu0 %v1698
    %1738 = vmatprep.subr.bf16.mxu0 %v1697
    %1739 = vmatpush1.bf16.msra.mxu0 %v1696
    %1740 = vmatprep.subr.bf16.mxu0 0
    %1741 = vmatpush2.bf16.msra.mxu0 0
    %1742 = vmatprep.subr.bf16.mxu0 0
    %1743 = vmatpush2.bf16.msra.mxu0 0
    %1744 = vmatprep.subr.bf16.mxu0 0
    %1745 = vmatpush2.bf16.msra.mxu0 0
    %1746 = vmatprep.subr.bf16.mxu0 0
    %1747 = vmatpush2.bf16.msra.mxu0 0
    %1748 = vmatprep.subr.bf16.mxu0 0
    %1749 = vmatpush2.bf16.msra.mxu0 0
    %1750 = vmatprep.subr.bf16.mxu0 0
    %1751 = vmatpush2.bf16.msra.mxu0 0
    %1752 = vmatprep.subr.bf16.mxu0 0
    %1753 = vmatpush2.bf16.msra.mxu0 0
    %1754 = vmatprep.subr.bf16.mxu0 0
    %1755 = vmatpush2.bf16.msra.mxu0 0
    %1756 = vmatprep.mubr.bf16.mxu0 0
    %1757 = vmatmul.mubr.bf16.gmra.mxu0 %v268
    %v1758 = vpop.f32.mrf.mxu0
    %v1759 = vadd.f32 %v1717, %v1758
    %v1760 = vpop.f32.mrf.mxu0
    %v1761 = vadd.f32 %v1721, %v1760
    %v1762 = vpop.f32.mrf.mxu0
    %v1763 = vadd.f32 %v1717, %v1762
    %v1764 = vpop.f32.mrf.mxu0
    %v1765 = vadd.f32 %v1721, %v1764
    %1766 = vmatprep.mubr.bf16.mxu0 0
    %1767 = vmatmul.mubr.bf16.gmra.mxu0 %v269
    %v1768 = vpop.f32.mrf.mxu0
    %v1769 = vadd.f32 %v1717, %v1768
    %v1770 = vpop.f32.mrf.mxu0
    %v1771 = vadd.f32 %v1721, %v1770
    %v1772 = vpop.f32.mrf.mxu0
    %v1773 = vadd.f32 %v1717, %v1772
    %v1774 = vpop.f32.mrf.mxu0
    %v1775 = vadd.f32 %v1721, %v1774
    %1776 = vmatprep.mubr.bf16.mxu0 0
    %1777 = vmatmul.mubr.bf16.gmra.mxu0 %v270
    %v1778 = vpop.f32.mrf.mxu0
    %v1779 = vadd.f32 %v1717, %v1778
    %v1780 = vpop.f32.mrf.mxu0
    %v1781 = vadd.f32 %v1721, %v1780
    %v1782 = vpop.f32.mrf.mxu0
    %v1783 = vadd.f32 %v1717, %v1782
    %v1784 = vpop.f32.mrf.mxu0
    %v1785 = vadd.f32 %v1721, %v1784
    %1786 = vmatprep.mubr.bf16.mxu0 0
    %1787 = vmatmul.mubr.bf16.gmra.mxu0 %v271
    %v1788 = vpop.f32.mrf.mxu0
    %v1789 = vadd.f32 %v1717, %v1788
    %v1790 = vpop.f32.mrf.mxu0
    %v1791 = vadd.f32 %v1721, %v1790
    %v1792 = vpop.f32.mrf.mxu0
    %v1793 = vadd.f32 %v1717, %v1792
    %v1794 = vpop.f32.mrf.mxu0
    %v1795 = vadd.f32 %v1721, %v1794
    %1796 = vmatprep.mubr.bf16.mxu0 0
    %1797 = vmatmul.mubr.bf16.gmra.mxu0 %v272
    %v1798 = vpop.f32.mrf.mxu0
    %v1799 = vadd.f32 %v1717, %v1798
    %v1800 = vpop.f32.mrf.mxu0
    %v1801 = vadd.f32 %v1721, %v1800
    %v1802 = vpop.f32.mrf.mxu0
    %v1803 = vadd.f32 %v1717, %v1802
    %v1804 = vpop.f32.mrf.mxu0
    %v1805 = vadd.f32 %v1721, %v1804
    %1806 = vmatprep.mubr.bf16.mxu0 0
    %1807 = vmatmul.mubr.bf16.gmra.mxu0 %v273
    %v1808 = vpop.f32.mrf.mxu0
    %v1809 = vadd.f32 %v1717, %v1808
    %v1810 = vpop.f32.mrf.mxu0
    %v1811 = vadd.f32 %v1721, %v1810
    %v1812 = vpop.f32.mrf.mxu0
    %v1813 = vadd.f32 %v1717, %v1812
    %v1814 = vpop.f32.mrf.mxu0
    %v1815 = vadd.f32 %v1721, %v1814
    %1816 = vmatprep.mubr.bf16.mxu0 0
    %1817 = vmatmul.mubr.bf16.gmra.mxu0 %v274
    %v1818 = vpop.f32.mrf.mxu0
    %v1819 = vadd.f32 %v1717, %v1818
    %v1820 = vpop.f32.mrf.mxu0
    %v1821 = vadd.f32 %v1721, %v1820
    %v1822 = vpop.f32.mrf.mxu0
    %v1823 = vadd.f32 %v1717, %v1822
    %v1824 = vpop.f32.mrf.mxu0
    %v1825 = vadd.f32 %v1721, %v1824
    %1826 = vmatprep.mubr.bf16.mxu0 0
    %1827 = vmatmul.mubr.bf16.gmra.mxu0 %v275
    %v1828 = vpop.f32.mrf.mxu0
    %v1829 = vadd.f32 %v1717, %v1828
    %v1830 = vpop.f32.mrf.mxu0
    %v1831 = vadd.f32 %v1721, %v1830
    %v1832 = vpop.f32.mrf.mxu0
    %v1833 = vadd.f32 %v1717, %v1832
    %v1834 = vpop.f32.mrf.mxu0
    %v1835 = vadd.f32 %v1721, %v1834
    %1836 = vdwg.mxu0
    %v1837 = vmax.f32 %v1759, 0.0
    %v1838 = vmax.f32 %v1761, 0.0
    %v1839 = vmax.f32 %v1763, 0.0
    %v1840 = vmax.f32 %v1765, 0.0
    %v1841 = vmax.f32 %v1769, 0.0
    %v1842 = vmax.f32 %v1771, 0.0
    %v1843 = vmax.f32 %v1773, 0.0
    %v1844 = vmax.f32 %v1775, 0.0
    %v1845 = vmax.f32 %v1779, 0.0
    %v1846 = vmax.f32 %v1781, 0.0
    %v1847 = vmax.f32 %v1783, 0.0
    %v1848 = vmax.f32 %v1785, 0.0
    %v1849 = vmax.f32 %v1789, 0.0
    %v1850 = vmax.f32 %v1791, 0.0
    %v1851 = vmax.f32 %v1793, 0.0
    %v1852 = vmax.f32 %v1795, 0.0
    %v1853 = vmax.f32 %v1799, 0.0
    %v1854 = vmax.f32 %v1801, 0.0
    %v1855 = vmax.f32 %v1803, 0.0
    %v1856 = vmax.f32 %v1805, 0.0
    %v1857 = vmax.f32 %v1809, 0.0
    %v1858 = vmax.f32 %v1811, 0.0
    %v1859 = vmax.f32 %v1813, 0.0
    %v1860 = vmax.f32 %v1815, 0.0
    %v1861 = vmax.f32 %v1819, 0.0
    %v1862 = vmax.f32 %v1821, 0.0
    %v1863 = vmax.f32 %v1823, 0.0
    %v1864 = vmax.f32 %v1825, 0.0
    %v1865 = vmax.f32 %v1829, 0.0
    %v1866 = vmax.f32 %v1831, 0.0
    %v1867 = vmax.f32 %v1833, 0.0
    %v1868 = vmax.f32 %v1835, 0.0
    %v1869 = vld [vmem:[%s2] sm:$0x3]
    %v1870 = vld [vmem:[%s10] sm:$0x1f]
    %v1871 = vld [vmem:[%s10 + $0x8] sm:$0x1f]
    %1873 = vset.pattern.permute.xlu0 0
    %1874 = vperm.xlu0 %1873, %v1869
    %v1875 = vpop.permute.xlu0 %1874
    %v1877 = vlaneseq
    %v1878 = vshrl.u32 %v1877, 7
    %v1879 = vsub.s32 0, %v1878
    %v1880 = vrot.slane %v1870, %v1879
    %v1881 = vlaneseq
    %v1882 = vshrl.u32 %v1881, 7
    %v1883 = vsub.s32 0, %v1882
    %v1884 = vrot.slane %v1871, %v1883
    %v1885 = vmul.f32 %v1875, %v1880
    %v1886 = vmul.f32 %v1875, %v1884
    %1887 = vset.pattern.permute.xlu0 1
    %1888 = vperm.xlu0 %1887, %v1869
    %v1889 = vpop.permute.xlu0 %1888
    %v1891 = vlaneseq
    %v1892 = vshrl.u32 %v1891, 7
    %v1893 = vsub.s32 1, %v1892
    %v1894 = vrot.slane %v1870, %v1893
    %v1895 = vlaneseq
    %v1896 = vshrl.u32 %v1895, 7
    %v1897 = vsub.s32 1, %v1896
    %v1898 = vrot.slane %v1871, %v1897
    %v1899 = vmul.f32 %v1889, %v1894
    %v1900 = vmul.f32 %v1889, %v1898
    %v1901 = vadd.f32 %v1885, %v1899
    %v1902 = vadd.f32 %v1886, %v1900
    %1903 = vset.pattern.permute.xlu0 2
    %1904 = vperm.xlu0 %1903, %v1869
    %v1905 = vpop.permute.xlu0 %1904
    %v1907 = vlaneseq
    %v1908 = vshrl.u32 %v1907, 7
    %v1909 = vsub.s32 2, %v1908
    %v1910 = vrot.slane %v1870, %v1909
    %v1911 = vlaneseq
    %v1912 = vshrl.u32 %v1911, 7
    %v1913 = vsub.s32 2, %v1912
    %v1914 = vrot.slane %v1871, %v1913
    %v1915 = vmul.f32 %v1905, %v1910
    %v1916 = vmul.f32 %v1905, %v1914
    %v1917 = vadd.f32 %v1901, %v1915
    %v1918 = vadd.f32 %v1902, %v1916
    %1919 = vset.pattern.permute.xlu0 3
    %1920 = vperm.xlu0 %1919, %v1869
    %v1921 = vpop.permute.xlu0 %1920
    %v1923 = vlaneseq
    %v1924 = vshrl.u32 %v1923, 7
    %v1925 = vsub.s32 3, %v1924
    %v1926 = vrot.slane %v1870, %v1925
    %v1927 = vlaneseq
    %v1928 = vshrl.u32 %v1927, 7
    %v1929 = vsub.s32 3, %v1928
    %v1930 = vrot.slane %v1871, %v1929
    %v1931 = vmul.f32 %v1921, %v1926
    %v1932 = vmul.f32 %v1921, %v1930
    %v1933 = vadd.f32 %v1917, %v1931
    %v1934 = vadd.f32 %v1918, %v1932
    %1935 = vset.pattern.permute.xlu0 4
    %1936 = vperm.xlu0 %1935, %v1869
    %v1937 = vpop.permute.xlu0 %1936
    %v1939 = vlaneseq
    %v1940 = vshrl.u32 %v1939, 7
    %v1941 = vsub.s32 4, %v1940
    %v1942 = vrot.slane %v1870, %v1941
    %v1943 = vlaneseq
    %v1944 = vshrl.u32 %v1943, 7
    %v1945 = vsub.s32 4, %v1944
    %v1946 = vrot.slane %v1871, %v1945
    %v1947 = vmul.f32 %v1937, %v1942
    %v1948 = vmul.f32 %v1937, %v1946
    %v1949 = vadd.f32 %v1933, %v1947
    %v1950 = vadd.f32 %v1934, %v1948
    %v1951 = vlaneseq
    %v1952 = vshrl.u32 %v1951, 7
    %v1953 = vsub.s32 0, %v1952
    %v1954 = vrot.slane %v1949, %v1953
    %v1955 = vlaneseq
    %v1956 = vshrl.u32 %v1955, 7
    %v1957 = vsub.s32 0, %v1956
    %v1958 = vrot.slane %v1950, %v1957
    %v1959 = vlaneseq
    %v1960 = vshrl.u32 %v1959, 7
    %v1961 = vsub.s32 1, %v1960
    %v1962 = vrot.slane %v1949, %v1961
    %v1963 = vlaneseq
    %v1964 = vshrl.u32 %v1963, 7
    %v1965 = vsub.s32 1, %v1964
    %v1966 = vrot.slane %v1950, %v1965
    %v1967 = vpack.c.bf16 %v1839, %v1837
    %v1968 = vpack.c.bf16 %v1840, %v1838
    %v1969 = vpack.c.bf16 %v1843, %v1841
    %v1970 = vpack.c.bf16 %v1844, %v1842
    %v1971 = vpack.c.bf16 %v1847, %v1845
    %v1972 = vpack.c.bf16 %v1848, %v1846
    %v1973 = vpack.c.bf16 %v1851, %v1849
    %v1974 = vpack.c.bf16 %v1852, %v1850
    %v1975 = vpack.c.bf16 %v1855, %v1853
    %v1976 = vpack.c.bf16 %v1856, %v1854
    %v1977 = vpack.c.bf16 %v1859, %v1857
    %v1978 = vpack.c.bf16 %v1860, %v1858
    %v1979 = vpack.c.bf16 %v1863, %v1861
    %v1980 = vpack.c.bf16 %v1864, %v1862
    %v1981 = vpack.c.bf16 %v1867, %v1865
    %v1982 = vpack.c.bf16 %v1868, %v1866
    %v1983 = vld [vmem:[#allocation16] sm:$0xff]
    %v1984 = vld [vmem:[#allocation16 + $0x8] sm:$0xff]
    %v1985 = vld [vmem:[#allocation16 + $0x10] sm:$0xff]
    %v1986 = vld [vmem:[#allocation16 + $0x18] sm:$0xff]
    %v1987 = vld [vmem:[#allocation16 + $0x20] sm:$0xff]
    %v1988 = vld [vmem:[#allocation16 + $0x28] sm:$0xff]
    %v1989 = vld [vmem:[#allocation16 + $0x30] sm:$0xff]
    %v1990 = vld [vmem:[#allocation16 + $0x38] sm:$0xff]
    %v1991 = vld [vmem:[#allocation16 + $0x40] sm:$0xff]
    %v1992 = vld [vmem:[#allocation16 + $0x48] sm:$0xff]
    %v1993 = vld [vmem:[#allocation16 + $0x50] sm:$0xff]
    %v1994 = vld [vmem:[#allocation16 + $0x58] sm:$0xff]
    %v1995 = vld [vmem:[#allocation16 + $0x60] sm:$0xff]
    %v1996 = vld [vmem:[#allocation16 + $0x68] sm:$0xff]
    %v1997 = vld [vmem:[#allocation16 + $0x70] sm:$0xff]
    %v1998 = vld [vmem:[#allocation16 + $0x78] sm:$0xff]
    %v1999 = vld [vmem:[#allocation16 + $0x80] sm:$0xff]
    %v2000 = vld [vmem:[#allocation16 + $0x88] sm:$0xff]
    %v2001 = vld [vmem:[#allocation16 + $0x90] sm:$0xff]
    %v2002 = vld [vmem:[#allocation16 + $0x98] sm:$0xff]
    %v2003 = vld [vmem:[#allocation16 + $0xa0] sm:$0xff]
    %v2004 = vld [vmem:[#allocation16 + $0xa8] sm:$0xff]
    %v2005 = vld [vmem:[#allocation16 + $0xb0] sm:$0xff]
    %v2006 = vld [vmem:[#allocation16 + $0xb8] sm:$0xff]
    %v2007 = vld [vmem:[#allocation16 + $0xc0] sm:$0xff]
    %v2008 = vld [vmem:[#allocation16 + $0xc8] sm:$0xff]
    %v2009 = vld [vmem:[#allocation16 + $0xd0] sm:$0xff]
    %v2010 = vld [vmem:[#allocation16 + $0xd8] sm:$0xff]
    %v2011 = vld [vmem:[#allocation16 + $0xe0] sm:$0xff]
    %v2012 = vld [vmem:[#allocation16 + $0xe8] sm:$0xff]
    %v2013 = vld [vmem:[#allocation16 + $0xf0] sm:$0xff]
    %v2014 = vld [vmem:[#allocation16 + $0xf8] sm:$0xff]
    %v2047 = vunpack.c.l.b16 %v1983
    %v2048 = vunpack.c.h.b16 %v1983
    %v2049 = vunpack.c.l.b16 %v1984
    %v2050 = vunpack.c.h.b16 %v1984
    %v2051 = vunpack.c.l.b16 %v1985
    %v2052 = vunpack.c.h.b16 %v1985
    %v2053 = vunpack.c.l.b16 %v1986
    %v2054 = vunpack.c.h.b16 %v1986
    %v2055 = vunpack.c.l.b16 %v1987
    %v2056 = vunpack.c.h.b16 %v1987
    %v2057 = vunpack.c.l.b16 %v1988
    %v2058 = vunpack.c.h.b16 %v1988
    %v2059 = vunpack.c.l.b16 %v1989
    %v2060 = vunpack.c.h.b16 %v1989
    %v2061 = vunpack.c.l.b16 %v1990
    %v2062 = vunpack.c.h.b16 %v1990
    %v2063 = vunpack.c.l.b16 %v1991
    %v2064 = vunpack.c.h.b16 %v1991
    %v2065 = vunpack.c.l.b16 %v1992
    %v2066 = vunpack.c.h.b16 %v1992
    %v2067 = vunpack.c.l.b16 %v1993
    %v2068 = vunpack.c.h.b16 %v1993
    %v2069 = vunpack.c.l.b16 %v1994
    %v2070 = vunpack.c.h.b16 %v1994
    %v2071 = vunpack.c.l.b16 %v1995
    %v2072 = vunpack.c.h.b16 %v1995
    %v2073 = vunpack.c.l.b16 %v1996
    %v2074 = vunpack.c.h.b16 %v1996
    %v2075 = vunpack.c.l.b16 %v1997
    %v2076 = vunpack.c.h.b16 %v1997
    %v2077 = vunpack.c.l.b16 %v1998
    %v2078 = vunpack.c.h.b16 %v1998
    %v2079 = vunpack.c.l.b16 %v1999
    %v2080 = vunpack.c.h.b16 %v1999
    %v2081 = vunpack.c.l.b16 %v2000
    %v2082 = vunpack.c.h.b16 %v2000
    %v2083 = vunpack.c.l.b16 %v2001
    %v2084 = vunpack.c.h.b16 %v2001
    %v2085 = vunpack.c.l.b16 %v2002
    %v2086 = vunpack.c.h.b16 %v2002
    %v2087 = vunpack.c.l.b16 %v2003
    %v2088 = vunpack.c.h.b16 %v2003
    %v2089 = vunpack.c.l.b16 %v2004
    %v2090 = vunpack.c.h.b16 %v2004
    %v2091 = vunpack.c.l.b16 %v2005
    %v2092 = vunpack.c.h.b16 %v2005
    %v2093 = vunpack.c.l.b16 %v2006
    %v2094 = vunpack.c.h.b16 %v2006
    %v2095 = vunpack.c.l.b16 %v2007
    %v2096 = vunpack.c.h.b16 %v2007
    %v2097 = vunpack.c.l.b16 %v2008
    %v2098 = vunpack.c.h.b16 %v2008
    %v2099 = vunpack.c.l.b16 %v2009
    %v2100 = vunpack.c.h.b16 %v2009
    %v2101 = vunpack.c.l.b16 %v2010
    %v2102 = vunpack.c.h.b16 %v2010
    %v2103 = vunpack.c.l.b16 %v2011
    %v2104 = vunpack.c.h.b16 %v2011
    %v2105 = vunpack.c.l.b16 %v2012
    %v2106 = vunpack.c.h.b16 %v2012
    %v2107 = vunpack.c.l.b16 %v2013
    %v2108 = vunpack.c.h.b16 %v2013
    %v2109 = vunpack.c.l.b16 %v2014
    %v2110 = vunpack.c.h.b16 %v2014
    %v2111 = vpack.c.b16 %v2049, %v2047
    %v2112 = vpack.c.b16 %v2050, %v2048
    %v2113 = vpack.c.b16 %v2053, %v2051
    %v2114 = vpack.c.b16 %v2054, %v2052
    %v2115 = vpack.c.b16 %v2057, %v2055
    %v2116 = vpack.c.b16 %v2058, %v2056
    %v2117 = vpack.c.b16 %v2061, %v2059
    %v2118 = vpack.c.b16 %v2062, %v2060
    %v2119 = vpack.c.b16 %v2065, %v2063
    %v2120 = vpack.c.b16 %v2066, %v2064
    %v2121 = vpack.c.b16 %v2069, %v2067
    %v2122 = vpack.c.b16 %v2070, %v2068
    %v2123 = vpack.c.b16 %v2073, %v2071
    %v2124 = vpack.c.b16 %v2074, %v2072
    %v2125 = vpack.c.b16 %v2077, %v2075
    %v2126 = vpack.c.b16 %v2078, %v2076
    %v2127 = vpack.c.b16 %v2081, %v2079
    %v2128 = vpack.c.b16 %v2082, %v2080
    %v2129 = vpack.c.b16 %v2085, %v2083
    %v2130 = vpack.c.b16 %v2086, %v2084
    %v2131 = vpack.c.b16 %v2089, %v2087
    %v2132 = vpack.c.b16 %v2090, %v2088
    %v2133 = vpack.c.b16 %v2093, %v2091
    %v2134 = vpack.c.b16 %v2094, %v2092
    %v2135 = vpack.c.b16 %v2097, %v2095
    %v2136 = vpack.c.b16 %v2098, %v2096
    %v2137 = vpack.c.b16 %v2101, %v2099
    %v2138 = vpack.c.b16 %v2102, %v2100
    %v2139 = vpack.c.b16 %v2105, %v2103
    %v2140 = vpack.c.b16 %v2106, %v2104
    %v2141 = vpack.c.b16 %v2109, %v2107
    %v2142 = vpack.c.b16 %v2110, %v2108
    %2175 = vmatprep.subr.bf16.mxu0 %v2126
    %2176 = vmatpush1.bf16.msra.mxu0 %v2125
    %2177 = vmatprep.subr.bf16.mxu0 %v2124
    %2178 = vmatpush1.bf16.msra.mxu0 %v2123
    %2179 = vmatprep.subr.bf16.mxu0 %v2122
    %2180 = vmatpush1.bf16.msra.mxu0 %v2121
    %2181 = vmatprep.subr.bf16.mxu0 %v2120
    %2182 = vmatpush1.bf16.msra.mxu0 %v2119
    %2183 = vmatprep.subr.bf16.mxu0 %v2118
    %2184 = vmatpush1.bf16.msra.mxu0 %v2117
    %2185 = vmatprep.subr.bf16.mxu0 %v2116
    %2186 = vmatpush1.bf16.msra.mxu0 %v2115
    %2187 = vmatprep.subr.bf16.mxu0 %v2114
    %2188 = vmatpush1.bf16.msra.mxu0 %v2113
    %2189 = vmatprep.subr.bf16.mxu0 %v2112
    %2190 = vmatpush1.bf16.msra.mxu0 %v2111
    %2191 = vmatprep.subr.bf16.mxu0 %v2142
    %2192 = vmatpush2.bf16.msra.mxu0 %v2141
    %2193 = vmatprep.subr.bf16.mxu0 %v2140
    %2194 = vmatpush2.bf16.msra.mxu0 %v2139
    %2195 = vmatprep.subr.bf16.mxu0 %v2138
    %2196 = vmatpush2.bf16.msra.mxu0 %v2137
    %2197 = vmatprep.subr.bf16.mxu0 %v2136
    %2198 = vmatpush2.bf16.msra.mxu0 %v2135
    %2199 = vmatprep.subr.bf16.mxu0 %v2134
    %2200 = vmatpush2.bf16.msra.mxu0 %v2133
    %2201 = vmatprep.subr.bf16.mxu0 %v2132
    %2202 = vmatpush2.bf16.msra.mxu0 %v2131
    %2203 = vmatprep.subr.bf16.mxu0 %v2130
    %2204 = vmatpush2.bf16.msra.mxu0 %v2129
    %2205 = vmatprep.subr.bf16.mxu0 %v2128
    %2206 = vmatpush2.bf16.msra.mxu0 %v2127
    %2207 = vmatprep.mubr.bf16.mxu0 %v1968
    %2208 = vmatmul.mubr.bf16.gmra.mxu0 %v1967
    %v2209 = vpop.f32.mrf.mxu0
    %v2210 = vadd.f32 %v1954, %v2209
    %v2211 = vpop.f32.mrf.mxu0
    %v2212 = vadd.f32 %v1958, %v2211
    %v2213 = vpop.f32.mrf.mxu0
    %v2214 = vadd.f32 %v1954, %v2213
    %v2215 = vpop.f32.mrf.mxu0
    %v2216 = vadd.f32 %v1958, %v2215
    %2217 = vmatprep.mubr.bf16.mxu0 %v1970
    %2218 = vmatmul.mubr.bf16.gmra.mxu0 %v1969
    %v2219 = vpop.f32.mrf.mxu0
    %v2220 = vadd.f32 %v1954, %v2219
    %v2221 = vpop.f32.mrf.mxu0
    %v2222 = vadd.f32 %v1958, %v2221
    %v2223 = vpop.f32.mrf.mxu0
    %v2224 = vadd.f32 %v1954, %v2223
    %v2225 = vpop.f32.mrf.mxu0
    %v2226 = vadd.f32 %v1958, %v2225
    %2227 = vmatprep.mubr.bf16.mxu0 %v1972
    %2228 = vmatmul.mubr.bf16.gmra.mxu0 %v1971
    %v2229 = vpop.f32.mrf.mxu0
    %v2230 = vadd.f32 %v1954, %v2229
    %v2231 = vpop.f32.mrf.mxu0
    %v2232 = vadd.f32 %v1958, %v2231
    %v2233 = vpop.f32.mrf.mxu0
    %v2234 = vadd.f32 %v1954, %v2233
    %v2235 = vpop.f32.mrf.mxu0
    %v2236 = vadd.f32 %v1958, %v2235
    %2237 = vmatprep.mubr.bf16.mxu0 %v1974
    %2238 = vmatmul.mubr.bf16.gmra.mxu0 %v1973
    %v2239 = vpop.f32.mrf.mxu0
    %v2240 = vadd.f32 %v1954, %v2239
    %v2241 = vpop.f32.mrf.mxu0
    %v2242 = vadd.f32 %v1958, %v2241
    %v2243 = vpop.f32.mrf.mxu0
    %v2244 = vadd.f32 %v1954, %v2243
    %v2245 = vpop.f32.mrf.mxu0
    %v2246 = vadd.f32 %v1958, %v2245
    %2247 = vmatprep.mubr.bf16.mxu0 %v1976
    %2248 = vmatmul.mubr.bf16.gmra.mxu0 %v1975
    %v2249 = vpop.f32.mrf.mxu0
    %v2250 = vadd.f32 %v1962, %v2249
    %v2251 = vpop.f32.mrf.mxu0
    %v2252 = vadd.f32 %v1966, %v2251
    %v2253 = vpop.f32.mrf.mxu0
    %v2254 = vadd.f32 %v1962, %v2253
    %v2255 = vpop.f32.mrf.mxu0
    %v2256 = vadd.f32 %v1966, %v2255
    %2257 = vmatprep.mubr.bf16.mxu0 %v1978
    %2258 = vmatmul.mubr.bf16.gmra.mxu0 %v1977
    %v2259 = vpop.f32.mrf.mxu0
    %v2260 = vadd.f32 %v1962, %v2259
    %v2261 = vpop.f32.mrf.mxu0
    %v2262 = vadd.f32 %v1966, %v2261
    %v2263 = vpop.f32.mrf.mxu0
    %v2264 = vadd.f32 %v1962, %v2263
    %v2265 = vpop.f32.mrf.mxu0
    %v2266 = vadd.f32 %v1966, %v2265
    %2267 = vmatprep.mubr.bf16.mxu0 %v1980
    %2268 = vmatmul.mubr.bf16.gmra.mxu0 %v1979
    %v2269 = vpop.f32.mrf.mxu0
    %v2270 = vadd.f32 %v1962, %v2269
    %v2271 = vpop.f32.mrf.mxu0
    %v2272 = vadd.f32 %v1966, %v2271
    %v2273 = vpop.f32.mrf.mxu0
    %v2274 = vadd.f32 %v1962, %v2273
    %v2275 = vpop.f32.mrf.mxu0
    %v2276 = vadd.f32 %v1966, %v2275
    %2277 = vmatprep.mubr.bf16.mxu0 %v1982
    %2278 = vmatmul.mubr.bf16.gmra.mxu0 %v1981
    %v2279 = vpop.f32.mrf.mxu0
    %v2280 = vadd.f32 %v1962, %v2279
    %v2281 = vpop.f32.mrf.mxu0
    %v2282 = vadd.f32 %v1966, %v2281
    %v2283 = vpop.f32.mrf.mxu0
    %v2284 = vadd.f32 %v1962, %v2283
    %v2285 = vpop.f32.mrf.mxu0
    %v2286 = vadd.f32 %v1966, %v2285
    %2287 = vdwg.mxu0
    %v2288 = vpack.c.bf16 %v2214, %v2210
    %v2289 = vpack.c.bf16 %v2216, %v2212
    %v2290 = vpack.c.bf16 %v2224, %v2220
    %v2291 = vpack.c.bf16 %v2226, %v2222
    %v2292 = vpack.c.bf16 %v2234, %v2230
    %v2293 = vpack.c.bf16 %v2236, %v2232
    %v2294 = vpack.c.bf16 %v2244, %v2240
    %v2295 = vpack.c.bf16 %v2246, %v2242
    %v2296 = vpack.c.bf16 %v2254, %v2250
    %v2297 = vpack.c.bf16 %v2256, %v2252
    %v2298 = vpack.c.bf16 %v2264, %v2260
    %v2299 = vpack.c.bf16 %v2266, %v2262
    %v2300 = vpack.c.bf16 %v2274, %v2270
    %v2301 = vpack.c.bf16 %v2276, %v2272
    %v2302 = vpack.c.bf16 %v2284, %v2280
    %v2303 = vpack.c.bf16 %v2286, %v2282
    %v2304 = vld [vmem:[%s11] sm:$0x3]
    %v2306 = vlaneseq
    %v2307 = vshrl.u32 %v2306, 7
    %v2308 = vsub.s32 0, %v2307
    %v2309 = vrot.slane %v2304, %v2308
    %v2310 = vlaneseq
    %v2311 = vshrl.u32 %v2310, 7
    %v2312 = vsub.s32 1, %v2311
    %v2313 = vrot.slane %v2304, %v2312
    %2316 = vmatprep.subr.bf16.mxu0 %v2303
    %2317 = vmatpush1.bf16.msra.mxu0 %v2302
    %2318 = vmatprep.subr.bf16.mxu0 %v2301
    %2319 = vmatpush1.bf16.msra.mxu0 %v2300
    %2320 = vmatprep.subr.bf16.mxu0 %v2299
    %2321 = vmatpush1.bf16.msra.mxu0 %v2298
    %2322 = vmatprep.subr.bf16.mxu0 %v2297
    %2323 = vmatpush1.bf16.msra.mxu0 %v2296
    %2324 = vmatprep.subr.bf16.mxu0 %v2295
    %2325 = vmatpush1.bf16.msra.mxu0 %v2294
    %2326 = vmatprep.subr.bf16.mxu0 %v2293
    %2327 = vmatpush1.bf16.msra.mxu0 %v2292
    %2328 = vmatprep.subr.bf16.mxu0 %v2291
    %2329 = vmatpush1.bf16.msra.mxu0 %v2290
    %2330 = vmatprep.subr.bf16.mxu0 %v2289
    %2331 = vmatpush1.bf16.msra.mxu0 %v2288
    %2332 = vmatprep.subr.bf16.mxu0 0
    %2333 = vmatpush2.bf16.msra.mxu0 0
    %2334 = vmatprep.subr.bf16.mxu0 0
    %2335 = vmatpush2.bf16.msra.mxu0 0
    %2336 = vmatprep.subr.bf16.mxu0 0
    %2337 = vmatpush2.bf16.msra.mxu0 0
    %2338 = vmatprep.subr.bf16.mxu0 0
    %2339 = vmatpush2.bf16.msra.mxu0 0
    %2340 = vmatprep.subr.bf16.mxu0 0
    %2341 = vmatpush2.bf16.msra.mxu0 0
    %2342 = vmatprep.subr.bf16.mxu0 0
    %2343 = vmatpush2.bf16.msra.mxu0 0
    %2344 = vmatprep.subr.bf16.mxu0 0
    %2345 = vmatpush2.bf16.msra.mxu0 0
    %2346 = vmatprep.subr.bf16.mxu0 0
    %2347 = vmatpush2.bf16.msra.mxu0 0
    %2348 = vmatprep.mubr.bf16.mxu0 0
    %2349 = vmatmul.mubr.bf16.gmra.mxu0 %v268
    %v2350 = vpop.f32.mrf.mxu0
    %v2351 = vadd.f32 %v2309, %v2350
    %v2352 = vpop.f32.mrf.mxu0
    %v2353 = vadd.f32 %v2313, %v2352
    %v2354 = vpop.f32.mrf.mxu0
    %v2355 = vadd.f32 %v2309, %v2354
    %v2356 = vpop.f32.mrf.mxu0
    %v2357 = vadd.f32 %v2313, %v2356
    %2358 = vmatprep.mubr.bf16.mxu0 0
    %2359 = vmatmul.mubr.bf16.gmra.mxu0 %v269
    %v2360 = vpop.f32.mrf.mxu0
    %v2361 = vadd.f32 %v2309, %v2360
    %v2362 = vpop.f32.mrf.mxu0
    %v2363 = vadd.f32 %v2313, %v2362
    %v2364 = vpop.f32.mrf.mxu0
    %v2365 = vadd.f32 %v2309, %v2364
    %v2366 = vpop.f32.mrf.mxu0
    %v2367 = vadd.f32 %v2313, %v2366
    %2368 = vmatprep.mubr.bf16.mxu0 0
    %2369 = vmatmul.mubr.bf16.gmra.mxu0 %v270
    %v2370 = vpop.f32.mrf.mxu0
    %v2371 = vadd.f32 %v2309, %v2370
    %v2372 = vpop.f32.mrf.mxu0
    %v2373 = vadd.f32 %v2313, %v2372
    %v2374 = vpop.f32.mrf.mxu0
    %v2375 = vadd.f32 %v2309, %v2374
    %v2376 = vpop.f32.mrf.mxu0
    %v2377 = vadd.f32 %v2313, %v2376
    %2378 = vmatprep.mubr.bf16.mxu0 0
    %2379 = vmatmul.mubr.bf16.gmra.mxu0 %v271
    %v2380 = vpop.f32.mrf.mxu0
    %v2381 = vadd.f32 %v2309, %v2380
    %v2382 = vpop.f32.mrf.mxu0
    %v2383 = vadd.f32 %v2313, %v2382
    %v2384 = vpop.f32.mrf.mxu0
    %v2385 = vadd.f32 %v2309, %v2384
    %v2386 = vpop.f32.mrf.mxu0
    %v2387 = vadd.f32 %v2313, %v2386
    %2388 = vmatprep.mubr.bf16.mxu0 0
    %2389 = vmatmul.mubr.bf16.gmra.mxu0 %v272
    %v2390 = vpop.f32.mrf.mxu0
    %v2391 = vadd.f32 %v2309, %v2390
    %v2392 = vpop.f32.mrf.mxu0
    %v2393 = vadd.f32 %v2313, %v2392
    %v2394 = vpop.f32.mrf.mxu0
    %v2395 = vadd.f32 %v2309, %v2394
    %v2396 = vpop.f32.mrf.mxu0
    %v2397 = vadd.f32 %v2313, %v2396
    %2398 = vmatprep.mubr.bf16.mxu0 0
    %2399 = vmatmul.mubr.bf16.gmra.mxu0 %v273
    %v2400 = vpop.f32.mrf.mxu0
    %v2401 = vadd.f32 %v2309, %v2400
    %v2402 = vpop.f32.mrf.mxu0
    %v2403 = vadd.f32 %v2313, %v2402
    %v2404 = vpop.f32.mrf.mxu0
    %v2405 = vadd.f32 %v2309, %v2404
    %v2406 = vpop.f32.mrf.mxu0
    %v2407 = vadd.f32 %v2313, %v2406
    %2408 = vmatprep.mubr.bf16.mxu0 0
    %2409 = vmatmul.mubr.bf16.gmra.mxu0 %v274
    %v2410 = vpop.f32.mrf.mxu0
    %v2411 = vadd.f32 %v2309, %v2410
    %v2412 = vpop.f32.mrf.mxu0
    %v2413 = vadd.f32 %v2313, %v2412
    %v2414 = vpop.f32.mrf.mxu0
    %v2415 = vadd.f32 %v2309, %v2414
    %v2416 = vpop.f32.mrf.mxu0
    %v2417 = vadd.f32 %v2313, %v2416
    %2418 = vmatprep.mubr.bf16.mxu0 0
    %2419 = vmatmul.mubr.bf16.gmra.mxu0 %v275
    %v2420 = vpop.f32.mrf.mxu0
    %v2421 = vadd.f32 %v2309, %v2420
    %v2422 = vpop.f32.mrf.mxu0
    %v2423 = vadd.f32 %v2313, %v2422
    %v2424 = vpop.f32.mrf.mxu0
    %v2425 = vadd.f32 %v2309, %v2424
    %v2426 = vpop.f32.mrf.mxu0
    %v2427 = vadd.f32 %v2313, %v2426
    %2428 = vdwg.mxu0
    %v2429 = vmax.f32 %v2351, 0.0
    %v2430 = vmax.f32 %v2353, 0.0
    %v2431 = vmax.f32 %v2355, 0.0
    %v2432 = vmax.f32 %v2357, 0.0
    %v2433 = vmax.f32 %v2361, 0.0
    %v2434 = vmax.f32 %v2363, 0.0
    %v2435 = vmax.f32 %v2365, 0.0
    %v2436 = vmax.f32 %v2367, 0.0
    %v2437 = vmax.f32 %v2371, 0.0
    %v2438 = vmax.f32 %v2373, 0.0
    %v2439 = vmax.f32 %v2375, 0.0
    %v2440 = vmax.f32 %v2377, 0.0
    %v2441 = vmax.f32 %v2381, 0.0
    %v2442 = vmax.f32 %v2383, 0.0
    %v2443 = vmax.f32 %v2385, 0.0
    %v2444 = vmax.f32 %v2387, 0.0
    %v2445 = vmax.f32 %v2391, 0.0
    %v2446 = vmax.f32 %v2393, 0.0
    %v2447 = vmax.f32 %v2395, 0.0
    %v2448 = vmax.f32 %v2397, 0.0
    %v2449 = vmax.f32 %v2401, 0.0
    %v2450 = vmax.f32 %v2403, 0.0
    %v2451 = vmax.f32 %v2405, 0.0
    %v2452 = vmax.f32 %v2407, 0.0
    %v2453 = vmax.f32 %v2411, 0.0
    %v2454 = vmax.f32 %v2413, 0.0
    %v2455 = vmax.f32 %v2415, 0.0
    %v2456 = vmax.f32 %v2417, 0.0
    %v2457 = vmax.f32 %v2421, 0.0
    %v2458 = vmax.f32 %v2423, 0.0
    %v2459 = vmax.f32 %v2425, 0.0
    %v2460 = vmax.f32 %v2427, 0.0
    %v2461 = vpack.c.bf16 %v2431, %v2429
    %v2462 = vpack.c.bf16 %v2432, %v2430
    %v2463 = vpack.c.bf16 %v2435, %v2433
    %v2464 = vpack.c.bf16 %v2436, %v2434
    %v2465 = vpack.c.bf16 %v2439, %v2437
    %v2466 = vpack.c.bf16 %v2440, %v2438
    %v2467 = vpack.c.bf16 %v2443, %v2441
    %v2468 = vpack.c.bf16 %v2444, %v2442
    %v2469 = vpack.c.bf16 %v2447, %v2445
    %v2470 = vpack.c.bf16 %v2448, %v2446
    %v2471 = vpack.c.bf16 %v2451, %v2449
    %v2472 = vpack.c.bf16 %v2452, %v2450
    %v2473 = vpack.c.bf16 %v2455, %v2453
    %v2474 = vpack.c.bf16 %v2456, %v2454
    %v2475 = vpack.c.bf16 %v2459, %v2457
    %v2476 = vpack.c.bf16 %v2460, %v2458
    %v2477 = vld [vmem:[#allocation17] sm:$0xff]
    %v2478 = vld [vmem:[#allocation17 + $0x8] sm:$0xff]
    %v2479 = vld [vmem:[#allocation17 + $0x10] sm:$0xff]
    %v2480 = vld [vmem:[#allocation17 + $0x18] sm:$0xff]
    %v2481 = vld [vmem:[#allocation17 + $0x20] sm:$0xff]
    %v2482 = vld [vmem:[#allocation17 + $0x28] sm:$0xff]
    %v2483 = vld [vmem:[#allocation17 + $0x30] sm:$0xff]
    %v2484 = vld [vmem:[#allocation17 + $0x38] sm:$0xff]
    %v2485 = vld [vmem:[#allocation17 + $0x40] sm:$0xff]
    %v2486 = vld [vmem:[#allocation17 + $0x48] sm:$0xff]
    %v2487 = vld [vmem:[#allocation17 + $0x50] sm:$0xff]
    %v2488 = vld [vmem:[#allocation17 + $0x58] sm:$0xff]
    %v2489 = vld [vmem:[#allocation17 + $0x60] sm:$0xff]
    %v2490 = vld [vmem:[#allocation17 + $0x68] sm:$0xff]
    %v2491 = vld [vmem:[#allocation17 + $0x70] sm:$0xff]
    %v2492 = vld [vmem:[#allocation17 + $0x78] sm:$0xff]
    %v2493 = vld [vmem:[#allocation17 + $0x80] sm:$0xff]
    %v2494 = vld [vmem:[#allocation17 + $0x88] sm:$0xff]
    %v2495 = vld [vmem:[#allocation17 + $0x90] sm:$0xff]
    %v2496 = vld [vmem:[#allocation17 + $0x98] sm:$0xff]
    %v2497 = vld [vmem:[#allocation17 + $0xa0] sm:$0xff]
    %v2498 = vld [vmem:[#allocation17 + $0xa8] sm:$0xff]
    %v2499 = vld [vmem:[#allocation17 + $0xb0] sm:$0xff]
    %v2500 = vld [vmem:[#allocation17 + $0xb8] sm:$0xff]
    %v2501 = vld [vmem:[#allocation17 + $0xc0] sm:$0xff]
    %v2502 = vld [vmem:[#allocation17 + $0xc8] sm:$0xff]
    %v2503 = vld [vmem:[#allocation17 + $0xd0] sm:$0xff]
    %v2504 = vld [vmem:[#allocation17 + $0xd8] sm:$0xff]
    %v2505 = vld [vmem:[#allocation17 + $0xe0] sm:$0xff]
    %v2506 = vld [vmem:[#allocation17 + $0xe8] sm:$0xff]
    %v2507 = vld [vmem:[#allocation17 + $0xf0] sm:$0xff]
    %v2508 = vld [vmem:[#allocation17 + $0xf8] sm:$0xff]
    %v2541 = vunpack.c.l.b16 %v2477
    %v2542 = vunpack.c.h.b16 %v2477
    %v2543 = vunpack.c.l.b16 %v2478
    %v2544 = vunpack.c.h.b16 %v2478
    %v2545 = vunpack.c.l.b16 %v2479
    %v2546 = vunpack.c.h.b16 %v2479
    %v2547 = vunpack.c.l.b16 %v2480
    %v2548 = vunpack.c.h.b16 %v2480
    %v2549 = vunpack.c.l.b16 %v2481
    %v2550 = vunpack.c.h.b16 %v2481
    %v2551 = vunpack.c.l.b16 %v2482
    %v2552 = vunpack.c.h.b16 %v2482
    %v2553 = vunpack.c.l.b16 %v2483
    %v2554 = vunpack.c.h.b16 %v2483
    %v2555 = vunpack.c.l.b16 %v2484
    %v2556 = vunpack.c.h.b16 %v2484
    %v2557 = vunpack.c.l.b16 %v2485
    %v2558 = vunpack.c.h.b16 %v2485
    %v2559 = vunpack.c.l.b16 %v2486
    %v2560 = vunpack.c.h.b16 %v2486
    %v2561 = vunpack.c.l.b16 %v2487
    %v2562 = vunpack.c.h.b16 %v2487
    %v2563 = vunpack.c.l.b16 %v2488
    %v2564 = vunpack.c.h.b16 %v2488
    %v2565 = vunpack.c.l.b16 %v2489
    %v2566 = vunpack.c.h.b16 %v2489
    %v2567 = vunpack.c.l.b16 %v2490
    %v2568 = vunpack.c.h.b16 %v2490
    %v2569 = vunpack.c.l.b16 %v2491
    %v2570 = vunpack.c.h.b16 %v2491
    %v2571 = vunpack.c.l.b16 %v2492
    %v2572 = vunpack.c.h.b16 %v2492
    %v2573 = vunpack.c.l.b16 %v2493
    %v2574 = vunpack.c.h.b16 %v2493
    %v2575 = vunpack.c.l.b16 %v2494
    %v2576 = vunpack.c.h.b16 %v2494
    %v2577 = vunpack.c.l.b16 %v2495
    %v2578 = vunpack.c.h.b16 %v2495
    %v2579 = vunpack.c.l.b16 %v2496
    %v2580 = vunpack.c.h.b16 %v2496
    %v2581 = vunpack.c.l.b16 %v2497
    %v2582 = vunpack.c.h.b16 %v2497
    %v2583 = vunpack.c.l.b16 %v2498
    %v2584 = vunpack.c.h.b16 %v2498
    %v2585 = vunpack.c.l.b16 %v2499
    %v2586 = vunpack.c.h.b16 %v2499
    %v2587 = vunpack.c.l.b16 %v2500
    %v2588 = vunpack.c.h.b16 %v2500
    %v2589 = vunpack.c.l.b16 %v2501
    %v2590 = vunpack.c.h.b16 %v2501
    %v2591 = vunpack.c.l.b16 %v2502
    %v2592 = vunpack.c.h.b16 %v2502
    %v2593 = vunpack.c.l.b16 %v2503
    %v2594 = vunpack.c.h.b16 %v2503
    %v2595 = vunpack.c.l.b16 %v2504
    %v2596 = vunpack.c.h.b16 %v2504
    %v2597 = vunpack.c.l.b16 %v2505
    %v2598 = vunpack.c.h.b16 %v2505
    %v2599 = vunpack.c.l.b16 %v2506
    %v2600 = vunpack.c.h.b16 %v2506
    %v2601 = vunpack.c.l.b16 %v2507
    %v2602 = vunpack.c.h.b16 %v2507
    %v2603 = vunpack.c.l.b16 %v2508
    %v2604 = vunpack.c.h.b16 %v2508
    %v2605 = vpack.c.b16 %v2543, %v2541
    %v2606 = vpack.c.b16 %v2544, %v2542
    %v2607 = vpack.c.b16 %v2547, %v2545
    %v2608 = vpack.c.b16 %v2548, %v2546
    %v2609 = vpack.c.b16 %v2551, %v2549
    %v2610 = vpack.c.b16 %v2552, %v2550
    %v2611 = vpack.c.b16 %v2555, %v2553
    %v2612 = vpack.c.b16 %v2556, %v2554
    %v2613 = vpack.c.b16 %v2559, %v2557
    %v2614 = vpack.c.b16 %v2560, %v2558
    %v2615 = vpack.c.b16 %v2563, %v2561
    %v2616 = vpack.c.b16 %v2564, %v2562
    %v2617 = vpack.c.b16 %v2567, %v2565
    %v2618 = vpack.c.b16 %v2568, %v2566
    %v2619 = vpack.c.b16 %v2571, %v2569
    %v2620 = vpack.c.b16 %v2572, %v2570
    %v2621 = vpack.c.b16 %v2575, %v2573
    %v2622 = vpack.c.b16 %v2576, %v2574
    %v2623 = vpack.c.b16 %v2579, %v2577
    %v2624 = vpack.c.b16 %v2580, %v2578
    %v2625 = vpack.c.b16 %v2583, %v2581
    %v2626 = vpack.c.b16 %v2584, %v2582
    %v2627 = vpack.c.b16 %v2587, %v2585
    %v2628 = vpack.c.b16 %v2588, %v2586
    %v2629 = vpack.c.b16 %v2591, %v2589
    %v2630 = vpack.c.b16 %v2592, %v2590
    %v2631 = vpack.c.b16 %v2595, %v2593
    %v2632 = vpack.c.b16 %v2596, %v2594
    %v2633 = vpack.c.b16 %v2599, %v2597
    %v2634 = vpack.c.b16 %v2600, %v2598
    %v2635 = vpack.c.b16 %v2603, %v2601
    %v2636 = vpack.c.b16 %v2604, %v2602
    %2669 = vmatprep.subr.bf16.mxu0 %v2620
    %2670 = vmatpush1.bf16.msra.mxu0 %v2619
    %2671 = vmatprep.subr.bf16.mxu0 %v2618
    %2672 = vmatpush1.bf16.msra.mxu0 %v2617
    %2673 = vmatprep.subr.bf16.mxu0 %v2616
    %2674 = vmatpush1.bf16.msra.mxu0 %v2615
    %2675 = vmatprep.subr.bf16.mxu0 %v2614
    %2676 = vmatpush1.bf16.msra.mxu0 %v2613
    %2677 = vmatprep.subr.bf16.mxu0 %v2612
    %2678 = vmatpush1.bf16.msra.mxu0 %v2611
    %2679 = vmatprep.subr.bf16.mxu0 %v2610
    %2680 = vmatpush1.bf16.msra.mxu0 %v2609
    %2681 = vmatprep.subr.bf16.mxu0 %v2608
    %2682 = vmatpush1.bf16.msra.mxu0 %v2607
    %2683 = vmatprep.subr.bf16.mxu0 %v2606
    %2684 = vmatpush1.bf16.msra.mxu0 %v2605
    %2685 = vmatprep.subr.bf16.mxu0 %v2636
    %2686 = vmatpush2.bf16.msra.mxu0 %v2635
    %2687 = vmatprep.subr.bf16.mxu0 %v2634
    %2688 = vmatpush2.bf16.msra.mxu0 %v2633
    %2689 = vmatprep.subr.bf16.mxu0 %v2632
    %2690 = vmatpush2.bf16.msra.mxu0 %v2631
    %2691 = vmatprep.subr.bf16.mxu0 %v2630
    %2692 = vmatpush2.bf16.msra.mxu0 %v2629
    %2693 = vmatprep.subr.bf16.mxu0 %v2628
    %2694 = vmatpush2.bf16.msra.mxu0 %v2627
    %2695 = vmatprep.subr.bf16.mxu0 %v2626
    %2696 = vmatpush2.bf16.msra.mxu0 %v2625
    %2697 = vmatprep.subr.bf16.mxu0 %v2624
    %2698 = vmatpush2.bf16.msra.mxu0 %v2623
    %2699 = vmatprep.subr.bf16.mxu0 %v2622
    %2700 = vmatpush2.bf16.msra.mxu0 %v2621
    %2701 = vmatprep.mubr.bf16.mxu0 %v2462
    %2702 = vmatmul.mubr.bf16.gmra.mxu0 %v2461
    %v2703 = vpop.f32.mrf.mxu0
    %v2704 = vadd.f32 0.0, %v2703
    %v2705 = vpop.f32.mrf.mxu0
    %v2706 = vadd.f32 0.0, %v2705
    %v2707 = vpop.f32.mrf.mxu0
    %v2708 = vadd.f32 0.0, %v2707
    %v2709 = vpop.f32.mrf.mxu0
    %v2710 = vadd.f32 0.0, %v2709
    %2711 = vmatprep.mubr.bf16.mxu0 %v2464
    %2712 = vmatmul.mubr.bf16.gmra.mxu0 %v2463
    %v2713 = vpop.f32.mrf.mxu0
    %v2714 = vadd.f32 0.0, %v2713
    %v2715 = vpop.f32.mrf.mxu0
    %v2716 = vadd.f32 0.0, %v2715
    %v2717 = vpop.f32.mrf.mxu0
    %v2718 = vadd.f32 0.0, %v2717
    %v2719 = vpop.f32.mrf.mxu0
    %v2720 = vadd.f32 0.0, %v2719
    %2721 = vmatprep.mubr.bf16.mxu0 %v2466
    %2722 = vmatmul.mubr.bf16.gmra.mxu0 %v2465
    %v2723 = vpop.f32.mrf.mxu0
    %v2724 = vadd.f32 0.0, %v2723
    %v2725 = vpop.f32.mrf.mxu0
    %v2726 = vadd.f32 0.0, %v2725
    %v2727 = vpop.f32.mrf.mxu0
    %v2728 = vadd.f32 0.0, %v2727
    %v2729 = vpop.f32.mrf.mxu0
    %v2730 = vadd.f32 0.0, %v2729
    %2731 = vmatprep.mubr.bf16.mxu0 %v2468
    %2732 = vmatmul.mubr.bf16.gmra.mxu0 %v2467
    %v2733 = vpop.f32.mrf.mxu0
    %v2734 = vadd.f32 0.0, %v2733
    %v2735 = vpop.f32.mrf.mxu0
    %v2736 = vadd.f32 0.0, %v2735
    %v2737 = vpop.f32.mrf.mxu0
    %v2738 = vadd.f32 0.0, %v2737
    %v2739 = vpop.f32.mrf.mxu0
    %v2740 = vadd.f32 0.0, %v2739
    %2741 = vmatprep.mubr.bf16.mxu0 %v2470
    %2742 = vmatmul.mubr.bf16.gmra.mxu0 %v2469
    %v2743 = vpop.f32.mrf.mxu0
    %v2744 = vadd.f32 0.0, %v2743
    %v2745 = vpop.f32.mrf.mxu0
    %v2746 = vadd.f32 0.0, %v2745
    %v2747 = vpop.f32.mrf.mxu0
    %v2748 = vadd.f32 0.0, %v2747
    %v2749 = vpop.f32.mrf.mxu0
    %v2750 = vadd.f32 0.0, %v2749
    %2751 = vmatprep.mubr.bf16.mxu0 %v2472
    %2752 = vmatmul.mubr.bf16.gmra.mxu0 %v2471
    %v2753 = vpop.f32.mrf.mxu0
    %v2754 = vadd.f32 0.0, %v2753
    %v2755 = vpop.f32.mrf.mxu0
    %v2756 = vadd.f32 0.0, %v2755
    %v2757 = vpop.f32.mrf.mxu0
    %v2758 = vadd.f32 0.0, %v2757
    %v2759 = vpop.f32.mrf.mxu0
    %v2760 = vadd.f32 0.0, %v2759
    %2761 = vmatprep.mubr.bf16.mxu0 %v2474
    %2762 = vmatmul.mubr.bf16.gmra.mxu0 %v2473
    %v2763 = vpop.f32.mrf.mxu0
    %v2764 = vadd.f32 0.0, %v2763
    %v2765 = vpop.f32.mrf.mxu0
    %v2766 = vadd.f32 0.0, %v2765
    %v2767 = vpop.f32.mrf.mxu0
    %v2768 = vadd.f32 0.0, %v2767
    %v2769 = vpop.f32.mrf.mxu0
    %v2770 = vadd.f32 0.0, %v2769
    %2771 = vmatprep.mubr.bf16.mxu0 %v2476
    %2772 = vmatmul.mubr.bf16.gmra.mxu0 %v2475
    %v2773 = vpop.f32.mrf.mxu0
    %v2774 = vadd.f32 0.0, %v2773
    %v2775 = vpop.f32.mrf.mxu0
    %v2776 = vadd.f32 0.0, %v2775
    %v2777 = vpop.f32.mrf.mxu0
    %v2778 = vadd.f32 0.0, %v2777
    %v2779 = vpop.f32.mrf.mxu0
    %v2780 = vadd.f32 0.0, %v2779
    %2781 = vdwg.mxu0
    %v2782 = vpack.c.bf16 %v2708, %v2704
    %v2783 = vpack.c.bf16 %v2710, %v2706
    %v2784 = vpack.c.bf16 %v2718, %v2714
    %v2785 = vpack.c.bf16 %v2720, %v2716
    %v2786 = vpack.c.bf16 %v2728, %v2724
    %v2787 = vpack.c.bf16 %v2730, %v2726
    %v2788 = vpack.c.bf16 %v2738, %v2734
    %v2789 = vpack.c.bf16 %v2740, %v2736
    %v2790 = vpack.c.bf16 %v2748, %v2744
    %v2791 = vpack.c.bf16 %v2750, %v2746
    %v2792 = vpack.c.bf16 %v2758, %v2754
    %v2793 = vpack.c.bf16 %v2760, %v2756
    %v2794 = vpack.c.bf16 %v2768, %v2764
    %v2795 = vpack.c.bf16 %v2770, %v2766
    %v2796 = vpack.c.bf16 %v2778, %v2774
    %v2797 = vpack.c.bf16 %v2780, %v2776
    %v2798 = vld [vmem:[%s13] sm:$0x3]
    %v2800 = vlaneseq
    %v2801 = vshrl.u32 %v2800, 7
    %v2802 = vsub.s32 0, %v2801
    %v2803 = vrot.slane %v2798, %v2802
    %v2804 = vlaneseq
    %v2805 = vshrl.u32 %v2804, 7
    %v2806 = vsub.s32 1, %v2805
    %v2807 = vrot.slane %v2798, %v2806
    %2810 = vmatprep.subr.bf16.mxu0 %v2797
    %2811 = vmatpush1.bf16.msra.mxu0 %v2796
    %2812 = vmatprep.subr.bf16.mxu0 %v2795
    %2813 = vmatpush1.bf16.msra.mxu0 %v2794
    %2814 = vmatprep.subr.bf16.mxu0 %v2793
    %2815 = vmatpush1.bf16.msra.mxu0 %v2792
    %2816 = vmatprep.subr.bf16.mxu0 %v2791
    %2817 = vmatpush1.bf16.msra.mxu0 %v2790
    %2818 = vmatprep.subr.bf16.mxu0 %v2789
    %2819 = vmatpush1.bf16.msra.mxu0 %v2788
    %2820 = vmatprep.subr.bf16.mxu0 %v2787
    %2821 = vmatpush1.bf16.msra.mxu0 %v2786
    %2822 = vmatprep.subr.bf16.mxu0 %v2785
    %2823 = vmatpush1.bf16.msra.mxu0 %v2784
    %2824 = vmatprep.subr.bf16.mxu0 %v2783
    %2825 = vmatpush1.bf16.msra.mxu0 %v2782
    %2826 = vmatprep.subr.bf16.mxu0 0
    %2827 = vmatpush2.bf16.msra.mxu0 0
    %2828 = vmatprep.subr.bf16.mxu0 0
    %2829 = vmatpush2.bf16.msra.mxu0 0
    %2830 = vmatprep.subr.bf16.mxu0 0
    %2831 = vmatpush2.bf16.msra.mxu0 0
    %2832 = vmatprep.subr.bf16.mxu0 0
    %2833 = vmatpush2.bf16.msra.mxu0 0
    %2834 = vmatprep.subr.bf16.mxu0 0
    %2835 = vmatpush2.bf16.msra.mxu0 0
    %2836 = vmatprep.subr.bf16.mxu0 0
    %2837 = vmatpush2.bf16.msra.mxu0 0
    %2838 = vmatprep.subr.bf16.mxu0 0
    %2839 = vmatpush2.bf16.msra.mxu0 0
    %2840 = vmatprep.subr.bf16.mxu0 0
    %2841 = vmatpush2.bf16.msra.mxu0 0
    %2842 = vmatprep.mubr.bf16.mxu0 0
    %2843 = vmatmul.mubr.bf16.gmra.mxu0 %v268
    %v2844 = vpop.f32.mrf.mxu0
    %v2845 = vadd.f32 %v2803, %v2844
    %v2846 = vpop.f32.mrf.mxu0
    %v2847 = vadd.f32 %v2807, %v2846
    %v2848 = vpop.f32.mrf.mxu0
    %v2849 = vadd.f32 %v2803, %v2848
    %v2850 = vpop.f32.mrf.mxu0
    %v2851 = vadd.f32 %v2807, %v2850
    %2852 = vmatprep.mubr.bf16.mxu0 0
    %2853 = vmatmul.mubr.bf16.gmra.mxu0 %v269
    %v2854 = vpop.f32.mrf.mxu0
    %v2855 = vadd.f32 %v2803, %v2854
    %v2856 = vpop.f32.mrf.mxu0
    %v2857 = vadd.f32 %v2807, %v2856
    %v2858 = vpop.f32.mrf.mxu0
    %v2859 = vadd.f32 %v2803, %v2858
    %v2860 = vpop.f32.mrf.mxu0
    %v2861 = vadd.f32 %v2807, %v2860
    %2862 = vmatprep.mubr.bf16.mxu0 0
    %2863 = vmatmul.mubr.bf16.gmra.mxu0 %v270
    %v2864 = vpop.f32.mrf.mxu0
    %v2865 = vadd.f32 %v2803, %v2864
    %v2866 = vpop.f32.mrf.mxu0
    %v2867 = vadd.f32 %v2807, %v2866
    %v2868 = vpop.f32.mrf.mxu0
    %v2869 = vadd.f32 %v2803, %v2868
    %v2870 = vpop.f32.mrf.mxu0
    %v2871 = vadd.f32 %v2807, %v2870
    %2872 = vmatprep.mubr.bf16.mxu0 0
    %2873 = vmatmul.mubr.bf16.gmra.mxu0 %v271
    %v2874 = vpop.f32.mrf.mxu0
    %v2875 = vadd.f32 %v2803, %v2874
    %v2876 = vpop.f32.mrf.mxu0
    %v2877 = vadd.f32 %v2807, %v2876
    %v2878 = vpop.f32.mrf.mxu0
    %v2879 = vadd.f32 %v2803, %v2878
    %v2880 = vpop.f32.mrf.mxu0
    %v2881 = vadd.f32 %v2807, %v2880
    %2882 = vmatprep.mubr.bf16.mxu0 0
    %2883 = vmatmul.mubr.bf16.gmra.mxu0 %v272
    %v2884 = vpop.f32.mrf.mxu0
    %v2885 = vadd.f32 %v2803, %v2884
    %v2886 = vpop.f32.mrf.mxu0
    %v2887 = vadd.f32 %v2807, %v2886
    %v2888 = vpop.f32.mrf.mxu0
    %v2889 = vadd.f32 %v2803, %v2888
    %v2890 = vpop.f32.mrf.mxu0
    %v2891 = vadd.f32 %v2807, %v2890
    %2892 = vmatprep.mubr.bf16.mxu0 0
    %2893 = vmatmul.mubr.bf16.gmra.mxu0 %v273
    %v2894 = vpop.f32.mrf.mxu0
    %v2895 = vadd.f32 %v2803, %v2894
    %v2896 = vpop.f32.mrf.mxu0
    %v2897 = vadd.f32 %v2807, %v2896
    %v2898 = vpop.f32.mrf.mxu0
    %v2899 = vadd.f32 %v2803, %v2898
    %v2900 = vpop.f32.mrf.mxu0
    %v2901 = vadd.f32 %v2807, %v2900
    %2902 = vmatprep.mubr.bf16.mxu0 0
    %2903 = vmatmul.mubr.bf16.gmra.mxu0 %v274
    %v2904 = vpop.f32.mrf.mxu0
    %v2905 = vadd.f32 %v2803, %v2904
    %v2906 = vpop.f32.mrf.mxu0
    %v2907 = vadd.f32 %v2807, %v2906
    %v2908 = vpop.f32.mrf.mxu0
    %v2909 = vadd.f32 %v2803, %v2908
    %v2910 = vpop.f32.mrf.mxu0
    %v2911 = vadd.f32 %v2807, %v2910
    %2912 = vmatprep.mubr.bf16.mxu0 0
    %2913 = vmatmul.mubr.bf16.gmra.mxu0 %v275
    %v2914 = vpop.f32.mrf.mxu0
    %v2915 = vadd.f32 %v2803, %v2914
    %v2916 = vpop.f32.mrf.mxu0
    %v2917 = vadd.f32 %v2807, %v2916
    %v2918 = vpop.f32.mrf.mxu0
    %v2919 = vadd.f32 %v2803, %v2918
    %v2920 = vpop.f32.mrf.mxu0
    %v2921 = vadd.f32 %v2807, %v2920
    %2922 = vdwg.mxu0
    %v2923 = vmax.f32 %v2845, 0.0
    %v2924 = vmax.f32 %v2847, 0.0
    %v2925 = vmax.f32 %v2849, 0.0
    %v2926 = vmax.f32 %v2851, 0.0
    %v2927 = vmax.f32 %v2855, 0.0
    %v2928 = vmax.f32 %v2857, 0.0
    %v2929 = vmax.f32 %v2859, 0.0
    %v2930 = vmax.f32 %v2861, 0.0
    %v2931 = vmax.f32 %v2865, 0.0
    %v2932 = vmax.f32 %v2867, 0.0
    %v2933 = vmax.f32 %v2869, 0.0
    %v2934 = vmax.f32 %v2871, 0.0
    %v2935 = vmax.f32 %v2875, 0.0
    %v2936 = vmax.f32 %v2877, 0.0
    %v2937 = vmax.f32 %v2879, 0.0
    %v2938 = vmax.f32 %v2881, 0.0
    %v2939 = vmax.f32 %v2885, 0.0
    %v2940 = vmax.f32 %v2887, 0.0
    %v2941 = vmax.f32 %v2889, 0.0
    %v2942 = vmax.f32 %v2891, 0.0
    %v2943 = vmax.f32 %v2895, 0.0
    %v2944 = vmax.f32 %v2897, 0.0
    %v2945 = vmax.f32 %v2899, 0.0
    %v2946 = vmax.f32 %v2901, 0.0
    %v2947 = vmax.f32 %v2905, 0.0
    %v2948 = vmax.f32 %v2907, 0.0
    %v2949 = vmax.f32 %v2909, 0.0
    %v2950 = vmax.f32 %v2911, 0.0
    %v2951 = vmax.f32 %v2915, 0.0
    %v2952 = vmax.f32 %v2917, 0.0
    %v2953 = vmax.f32 %v2919, 0.0
    %v2954 = vmax.f32 %v2921, 0.0
    %v2955 = vpack.c.bf16 %v2925, %v2923
    %v2956 = vpack.c.bf16 %v2926, %v2924
    %v2957 = vpack.c.bf16 %v2929, %v2927
    %v2958 = vpack.c.bf16 %v2930, %v2928
    %v2959 = vpack.c.bf16 %v2933, %v2931
    %v2960 = vpack.c.bf16 %v2934, %v2932
    %v2961 = vpack.c.bf16 %v2937, %v2935
    %v2962 = vpack.c.bf16 %v2938, %v2936
    %v2963 = vpack.c.bf16 %v2941, %v2939
    %v2964 = vpack.c.bf16 %v2942, %v2940
    %v2965 = vpack.c.bf16 %v2945, %v2943
    %v2966 = vpack.c.bf16 %v2946, %v2944
    %v2967 = vpack.c.bf16 %v2949, %v2947
    %v2968 = vpack.c.bf16 %v2950, %v2948
    %v2969 = vpack.c.bf16 %v2953, %v2951
    %v2970 = vpack.c.bf16 %v2954, %v2952
    %v2971 = vld [vmem:[#allocation19] sm:$0xf]
    %v2972 = vld [vmem:[#allocation19 + $0x4] sm:$0xf]
    %v2973 = vld [vmem:[#allocation19 + $0x8] sm:$0xf]
    %v2974 = vld [vmem:[#allocation19 + $0xc] sm:$0xf]
    %v2975 = vld [vmem:[#allocation19 + $0x10] sm:$0xf]
    %v2976 = vld [vmem:[#allocation19 + $0x14] sm:$0xf]
    %v2977 = vld [vmem:[#allocation19 + $0x18] sm:$0xf]
    %v2978 = vld [vmem:[#allocation19 + $0x1c] sm:$0xf]
    %v2979 = vld [vmem:[#allocation19 + $0x20] sm:$0xf]
    %v2980 = vld [vmem:[#allocation19 + $0x24] sm:$0xf]
    %v2981 = vld [vmem:[#allocation19 + $0x28] sm:$0xf]
    %v2982 = vld [vmem:[#allocation19 + $0x2c] sm:$0xf]
    %v2983 = vld [vmem:[#allocation19 + $0x30] sm:$0xf]
    %v2984 = vld [vmem:[#allocation19 + $0x34] sm:$0xf]
    %v2985 = vld [vmem:[#allocation19 + $0x38] sm:$0xf]
    %v2986 = vld [vmem:[#allocation19 + $0x3c] sm:$0xf]
    %v2987 = vld [vmem:[#allocation19 + $0x40] sm:$0xf]
    %v2988 = vld [vmem:[#allocation19 + $0x44] sm:$0xf]
    %v2989 = vld [vmem:[#allocation19 + $0x48] sm:$0xf]
    %v2990 = vld [vmem:[#allocation19 + $0x4c] sm:$0xf]
    %v2991 = vld [vmem:[#allocation19 + $0x50] sm:$0xf]
    %v2992 = vld [vmem:[#allocation19 + $0x54] sm:$0xf]
    %v2993 = vld [vmem:[#allocation19 + $0x58] sm:$0xf]
    %v2994 = vld [vmem:[#allocation19 + $0x5c] sm:$0xf]
    %v2995 = vld [vmem:[#allocation19 + $0x60] sm:$0xf]
    %v2996 = vld [vmem:[#allocation19 + $0x64] sm:$0xf]
    %v2997 = vld [vmem:[#allocation19 + $0x68] sm:$0xf]
    %v2998 = vld [vmem:[#allocation19 + $0x6c] sm:$0xf]
    %v2999 = vld [vmem:[#allocation19 + $0x70] sm:$0xf]
    %v3000 = vld [vmem:[#allocation19 + $0x74] sm:$0xf]
    %v3001 = vld [vmem:[#allocation19 + $0x78] sm:$0xf]
    %v3002 = vld [vmem:[#allocation19 + $0x7c] sm:$0xf]
    %v3035 = vunpack.c.l.b16 %v2971
    %v3036 = vunpack.c.l.b16 %v2972
    %v3037 = vunpack.c.l.b16 %v2973
    %v3038 = vunpack.c.l.b16 %v2974
    %v3039 = vunpack.c.l.b16 %v2975
    %v3040 = vunpack.c.l.b16 %v2976
    %v3041 = vunpack.c.l.b16 %v2977
    %v3042 = vunpack.c.l.b16 %v2978
    %v3043 = vunpack.c.l.b16 %v2979
    %v3044 = vunpack.c.l.b16 %v2980
    %v3045 = vunpack.c.l.b16 %v2981
    %v3046 = vunpack.c.l.b16 %v2982
    %v3047 = vunpack.c.l.b16 %v2983
    %v3048 = vunpack.c.l.b16 %v2984
    %v3049 = vunpack.c.l.b16 %v2985
    %v3050 = vunpack.c.l.b16 %v2986
    %v3051 = vunpack.c.l.b16 %v2987
    %v3052 = vunpack.c.l.b16 %v2988
    %v3053 = vunpack.c.l.b16 %v2989
    %v3054 = vunpack.c.l.b16 %v2990
    %v3055 = vunpack.c.l.b16 %v2991
    %v3056 = vunpack.c.l.b16 %v2992
    %v3057 = vunpack.c.l.b16 %v2993
    %v3058 = vunpack.c.l.b16 %v2994
    %v3059 = vunpack.c.l.b16 %v2995
    %v3060 = vunpack.c.l.b16 %v2996
    %v3061 = vunpack.c.l.b16 %v2997
    %v3062 = vunpack.c.l.b16 %v2998
    %v3063 = vunpack.c.l.b16 %v2999
    %v3064 = vunpack.c.l.b16 %v3000
    %v3065 = vunpack.c.l.b16 %v3001
    %v3066 = vunpack.c.l.b16 %v3002
    %v3067 = vpack.c.b16 %v3036, %v3035
    %v3068 = vpack.c.b16 %v3038, %v3037
    %v3069 = vpack.c.b16 %v3040, %v3039
    %v3070 = vpack.c.b16 %v3042, %v3041
    %v3071 = vpack.c.b16 %v3044, %v3043
    %v3072 = vpack.c.b16 %v3046, %v3045
    %v3073 = vpack.c.b16 %v3048, %v3047
    %v3074 = vpack.c.b16 %v3050, %v3049
    %v3075 = vpack.c.b16 %v3052, %v3051
    %v3076 = vpack.c.b16 %v3054, %v3053
    %v3077 = vpack.c.b16 %v3056, %v3055
    %v3078 = vpack.c.b16 %v3058, %v3057
    %v3079 = vpack.c.b16 %v3060, %v3059
    %v3080 = vpack.c.b16 %v3062, %v3061
    %v3081 = vpack.c.b16 %v3064, %v3063
    %v3082 = vpack.c.b16 %v3066, %v3065
    %3099 = vmatprep.subr.bf16.mxu0 0
    %3100 = vmatpush1.bf16.msra.mxu0 %v3074
    %3101 = vmatprep.subr.bf16.mxu0 0
    %3102 = vmatpush1.bf16.msra.mxu0 %v3073
    %3103 = vmatprep.subr.bf16.mxu0 0
    %3104 = vmatpush1.bf16.msra.mxu0 %v3072
    %3105 = vmatprep.subr.bf16.mxu0 0
    %3106 = vmatpush1.bf16.msra.mxu0 %v3071
    %3107 = vmatprep.subr.bf16.mxu0 0
    %3108 = vmatpush1.bf16.msra.mxu0 %v3070
    %3109 = vmatprep.subr.bf16.mxu0 0
    %3110 = vmatpush1.bf16.msra.mxu0 %v3069
    %3111 = vmatprep.subr.bf16.mxu0 0
    %3112 = vmatpush1.bf16.msra.mxu0 %v3068
    %3113 = vmatprep.subr.bf16.mxu0 0
    %3114 = vmatpush1.bf16.msra.mxu0 %v3067
    %3115 = vmatprep.subr.bf16.mxu0 0
    %3116 = vmatpush2.bf16.msra.mxu0 %v3082
    %3117 = vmatprep.subr.bf16.mxu0 0
    %3118 = vmatpush2.bf16.msra.mxu0 %v3081
    %3119 = vmatprep.subr.bf16.mxu0 0
    %3120 = vmatpush2.bf16.msra.mxu0 %v3080
    %3121 = vmatprep.subr.bf16.mxu0 0
    %3122 = vmatpush2.bf16.msra.mxu0 %v3079
    %3123 = vmatprep.subr.bf16.mxu0 0
    %3124 = vmatpush2.bf16.msra.mxu0 %v3078
    %3125 = vmatprep.subr.bf16.mxu0 0
    %3126 = vmatpush2.bf16.msra.mxu0 %v3077
    %3127 = vmatprep.subr.bf16.mxu0 0
    %3128 = vmatpush2.bf16.msra.mxu0 %v3076
    %3129 = vmatprep.subr.bf16.mxu0 0
    %3130 = vmatpush2.bf16.msra.mxu0 %v3075
    %3131 = vmatprep.mubr.bf16.mxu0 %v2956
    %3132 = vmatmul.mubr.bf16.gmra.mxu0 %v2955
    %v3133 = vpop.f32.mrf.mxu0
    %v3134 = vadd.f32 0.0, %v3133
    %v3135 = vpop.f32.mrf.mxu0
    %v3136 = vpop.f32.mrf.mxu0
    %v3137 = vadd.f32 0.0, %v3136
    %v3138 = vpop.f32.mrf.mxu0
    %3139 = vmatprep.mubr.bf16.mxu0 %v2958
    %3140 = vmatmul.mubr.bf16.gmra.mxu0 %v2957
    %v3141 = vpop.f32.mrf.mxu0
    %v3142 = vadd.f32 0.0, %v3141
    %v3143 = vpop.f32.mrf.mxu0
    %v3144 = vpop.f32.mrf.mxu0
    %v3145 = vadd.f32 0.0, %v3144
    %v3146 = vpop.f32.mrf.mxu0
    %3147 = vmatprep.mubr.bf16.mxu0 %v2960
    %3148 = vmatmul.mubr.bf16.gmra.mxu0 %v2959
    %v3149 = vpop.f32.mrf.mxu0
    %v3150 = vadd.f32 0.0, %v3149
    %v3151 = vpop.f32.mrf.mxu0
    %v3152 = vpop.f32.mrf.mxu0
    %v3153 = vadd.f32 0.0, %v3152
    %v3154 = vpop.f32.mrf.mxu0
    %3155 = vmatprep.mubr.bf16.mxu0 %v2962
    %3156 = vmatmul.mubr.bf16.gmra.mxu0 %v2961
    %v3157 = vpop.f32.mrf.mxu0
    %v3158 = vadd.f32 0.0, %v3157
    %v3159 = vpop.f32.mrf.mxu0
    %v3160 = vpop.f32.mrf.mxu0
    %v3161 = vadd.f32 0.0, %v3160
    %v3162 = vpop.f32.mrf.mxu0
    %3163 = vmatprep.mubr.bf16.mxu0 %v2964
    %3164 = vmatmul.mubr.bf16.gmra.mxu0 %v2963
    %v3165 = vpop.f32.mrf.mxu0
    %v3166 = vadd.f32 0.0, %v3165
    %v3167 = vpop.f32.mrf.mxu0
    %v3168 = vpop.f32.mrf.mxu0
    %v3169 = vadd.f32 0.0, %v3168
    %v3170 = vpop.f32.mrf.mxu0
    %3171 = vmatprep.mubr.bf16.mxu0 %v2966
    %3172 = vmatmul.mubr.bf16.gmra.mxu0 %v2965
    %v3173 = vpop.f32.mrf.mxu0
    %v3174 = vadd.f32 0.0, %v3173
    %v3175 = vpop.f32.mrf.mxu0
    %v3176 = vpop.f32.mrf.mxu0
    %v3177 = vadd.f32 0.0, %v3176
    %v3178 = vpop.f32.mrf.mxu0
    %3179 = vmatprep.mubr.bf16.mxu0 %v2968
    %3180 = vmatmul.mubr.bf16.gmra.mxu0 %v2967
    %v3181 = vpop.f32.mrf.mxu0
    %v3182 = vadd.f32 0.0, %v3181
    %v3183 = vpop.f32.mrf.mxu0
    %v3184 = vpop.f32.mrf.mxu0
    %v3185 = vadd.f32 0.0, %v3184
    %v3186 = vpop.f32.mrf.mxu0
    %3187 = vmatprep.mubr.bf16.mxu0 %v2970
    %3188 = vmatmul.mubr.bf16.gmra.mxu0 %v2969
    %v3189 = vpop.f32.mrf.mxu0
    %v3190 = vadd.f32 0.0, %v3189
    %v3191 = vpop.f32.mrf.mxu0
    %v3192 = vpop.f32.mrf.mxu0
    %v3193 = vadd.f32 0.0, %v3192
    %v3194 = vpop.f32.mrf.mxu0
    %3195 = vdwg.mxu0
    %v3196 = vpack.c.bf16 %v3137, %v3134
    %v3197 = vpack.c.bf16 %v3145, %v3142
    %v3198 = vpack.c.bf16 %v3153, %v3150
    %v3199 = vpack.c.bf16 %v3161, %v3158
    %v3200 = vpack.c.bf16 %v3169, %v3166
    %v3201 = vpack.c.bf16 %v3177, %v3174
    %v3202 = vpack.c.bf16 %v3185, %v3182
    %v3203 = vpack.c.bf16 %v3193, %v3190
    %v3204 = vld [vmem:[%s15] sm:$0x1]
    %v3206 = vlaneseq
    %v3207 = vshrl.u32 %v3206, 7
    %v3208 = vsub.s32 0, %v3207
    %v3209 = vrot.slane %v3204, %v3208
    %3211 = vmatprep.subr.bf16.mxu0 0
    %3212 = vmatpush1.bf16.msra.mxu0 %v3203
    %3213 = vmatprep.subr.bf16.mxu0 0
    %3214 = vmatpush1.bf16.msra.mxu0 %v3202
    %3215 = vmatprep.subr.bf16.mxu0 0
    %3216 = vmatpush1.bf16.msra.mxu0 %v3201
    %3217 = vmatprep.subr.bf16.mxu0 0
    %3218 = vmatpush1.bf16.msra.mxu0 %v3200
    %3219 = vmatprep.subr.bf16.mxu0 0
    %3220 = vmatpush1.bf16.msra.mxu0 %v3199
    %3221 = vmatprep.subr.bf16.mxu0 0
    %3222 = vmatpush1.bf16.msra.mxu0 %v3198
    %3223 = vmatprep.subr.bf16.mxu0 0
    %3224 = vmatpush1.bf16.msra.mxu0 %v3197
    %3225 = vmatprep.subr.bf16.mxu0 0
    %3226 = vmatpush1.bf16.msra.mxu0 %v3196
    %3227 = vmatprep.subr.bf16.mxu0 0
    %3228 = vmatpush2.bf16.msra.mxu0 0
    %3229 = vmatprep.subr.bf16.mxu0 0
    %3230 = vmatpush2.bf16.msra.mxu0 0
    %3231 = vmatprep.subr.bf16.mxu0 0
    %3232 = vmatpush2.bf16.msra.mxu0 0
    %3233 = vmatprep.subr.bf16.mxu0 0
    %3234 = vmatpush2.bf16.msra.mxu0 0
    %3235 = vmatprep.subr.bf16.mxu0 0
    %3236 = vmatpush2.bf16.msra.mxu0 0
    %3237 = vmatprep.subr.bf16.mxu0 0
    %3238 = vmatpush2.bf16.msra.mxu0 0
    %3239 = vmatprep.subr.bf16.mxu0 0
    %3240 = vmatpush2.bf16.msra.mxu0 0
    %3241 = vmatprep.subr.bf16.mxu0 0
    %3242 = vmatpush2.bf16.msra.mxu0 0
    %3243 = vmatprep.mubr.bf16.mxu0 0
    %3244 = vmatmul.mubr.bf16.gmra.mxu0 %v268
    %v3245 = vpop.f32.mrf.mxu0
    %v3246 = vadd.f32 %v3209, %v3245
    %v3247 = vpop.f32.mrf.mxu0
    %v3248 = vpop.f32.mrf.mxu0
    %v3249 = vadd.f32 %v3209, %v3248
    %v3250 = vpop.f32.mrf.mxu0
    %3251 = vmatprep.mubr.bf16.mxu0 0
    %3252 = vmatmul.mubr.bf16.gmra.mxu0 %v269
    %v3253 = vpop.f32.mrf.mxu0
    %v3254 = vadd.f32 %v3209, %v3253
    %v3255 = vpop.f32.mrf.mxu0
    %v3256 = vpop.f32.mrf.mxu0
    %v3257 = vadd.f32 %v3209, %v3256
    %v3258 = vpop.f32.mrf.mxu0
    %3259 = vmatprep.mubr.bf16.mxu0 0
    %3260 = vmatmul.mubr.bf16.gmra.mxu0 %v270
    %v3261 = vpop.f32.mrf.mxu0
    %v3262 = vadd.f32 %v3209, %v3261
    %v3263 = vpop.f32.mrf.mxu0
    %v3264 = vpop.f32.mrf.mxu0
    %v3265 = vadd.f32 %v3209, %v3264
    %v3266 = vpop.f32.mrf.mxu0
    %3267 = vmatprep.mubr.bf16.mxu0 0
    %3268 = vmatmul.mubr.bf16.gmra.mxu0 %v271
    %v3269 = vpop.f32.mrf.mxu0
    %v3270 = vadd.f32 %v3209, %v3269
    %v3271 = vpop.f32.mrf.mxu0
    %v3272 = vpop.f32.mrf.mxu0
    %v3273 = vadd.f32 %v3209, %v3272
    %v3274 = vpop.f32.mrf.mxu0
    %3275 = vmatprep.mubr.bf16.mxu0 0
    %3276 = vmatmul.mubr.bf16.gmra.mxu0 %v272
    %v3277 = vpop.f32.mrf.mxu0
    %v3278 = vadd.f32 %v3209, %v3277
    %v3279 = vpop.f32.mrf.mxu0
    %v3280 = vpop.f32.mrf.mxu0
    %v3281 = vadd.f32 %v3209, %v3280
    %v3282 = vpop.f32.mrf.mxu0
    %3283 = vmatprep.mubr.bf16.mxu0 0
    %3284 = vmatmul.mubr.bf16.gmra.mxu0 %v273
    %v3285 = vpop.f32.mrf.mxu0
    %v3286 = vadd.f32 %v3209, %v3285
    %v3287 = vpop.f32.mrf.mxu0
    %v3288 = vpop.f32.mrf.mxu0
    %v3289 = vadd.f32 %v3209, %v3288
    %v3290 = vpop.f32.mrf.mxu0
    %3291 = vmatprep.mubr.bf16.mxu0 0
    %3292 = vmatmul.mubr.bf16.gmra.mxu0 %v274
    %v3293 = vpop.f32.mrf.mxu0
    %v3294 = vadd.f32 %v3209, %v3293
    %v3295 = vpop.f32.mrf.mxu0
    %v3296 = vpop.f32.mrf.mxu0
    %v3297 = vadd.f32 %v3209, %v3296
    %v3298 = vpop.f32.mrf.mxu0
    %3299 = vmatprep.mubr.bf16.mxu0 0
    %3300 = vmatmul.mubr.bf16.gmra.mxu0 %v275
    %v3301 = vpop.f32.mrf.mxu0
    %v3302 = vadd.f32 %v3209, %v3301
    %v3303 = vpop.f32.mrf.mxu0
    %v3304 = vpop.f32.mrf.mxu0
    %v3305 = vadd.f32 %v3209, %v3304
    %v3306 = vpop.f32.mrf.mxu0
    %3307 = vdwg.mxu0
    %v3308 = vmax.f32 %v3246, 0.0
    %v3309 = vmax.f32 %v3249, 0.0
    %v3310 = vmax.f32 %v3254, 0.0
    %v3311 = vmax.f32 %v3257, 0.0
    %v3312 = vmax.f32 %v3262, 0.0
    %v3313 = vmax.f32 %v3265, 0.0
    %v3314 = vmax.f32 %v3270, 0.0
    %v3315 = vmax.f32 %v3273, 0.0
    %v3316 = vmax.f32 %v3278, 0.0
    %v3317 = vmax.f32 %v3281, 0.0
    %v3318 = vmax.f32 %v3286, 0.0
    %v3319 = vmax.f32 %v3289, 0.0
    %v3320 = vmax.f32 %v3294, 0.0
    %v3321 = vmax.f32 %v3297, 0.0
    %v3322 = vmax.f32 %v3302, 0.0
    %v3323 = vmax.f32 %v3305, 0.0
    %3324 = vst [vmem:[#allocation20] sm:$0xff] %v3308
    %3325 = vst [vmem:[#allocation20 + $0x8] sm:$0xff] %v3309
    %3326 = vst [vmem:[#allocation20 + $0x10] sm:$0xff] %v3310
    %3327 = vst [vmem:[#allocation20 + $0x18] sm:$0xff] %v3311
    %3328 = vst [vmem:[#allocation20 + $0x20] sm:$0xff] %v3312
    %3329 = vst [vmem:[#allocation20 + $0x28] sm:$0xff] %v3313
    %3330 = vst [vmem:[#allocation20 + $0x30] sm:$0xff] %v3314
    %3331 = vst [vmem:[#allocation20 + $0x38] sm:$0xff] %v3315
    %3332 = vst [vmem:[#allocation20 + $0x40] sm:$0xff] %v3316
    %3333 = vst [vmem:[#allocation20 + $0x48] sm:$0xff] %v3317
    %3334 = vst [vmem:[#allocation20 + $0x50] sm:$0xff] %v3318
    %3335 = vst [vmem:[#allocation20 + $0x58] sm:$0xff] %v3319
    %3336 = vst [vmem:[#allocation20 + $0x60] sm:$0xff] %v3320
    %3337 = vst [vmem:[#allocation20 + $0x68] sm:$0xff] %v3321
    %3338 = vst [vmem:[#allocation20 + $0x70] sm:$0xff] %v3322
    %3339 = vst [vmem:[#allocation20 + $0x78] sm:$0xff] %v3323
    // Predicated region
    $region110: #{tpu_custom_call.1} parent=1 // pred_check
      _
    $region111: #{tpu_custom_call.1} parent=1 // pred_check_branch
      %3341 = sbr.rel (0) target = $region113
    $region112: #{tpu_custom_call.1} parent=1 // pred_region
      %s3343 = ssub.s32 2048, 2048
      %3344 = vsyncadd [#allocation4], %s3343
      %s3345 = sshll.u32 [#allocation20], 4
      %s3346 = int_to_ptr.vmem [resolvable:$true] %s3345
      %3351 = dma.vmem_to_hbm [thread:$0]  %s3346, 2048, %s16, [#allocation4], 128, 128, 8
    $region113: #{tpu_custom_call.1} parent=1 // pred_fallthru
      _
    // Predicated region
    $region114: #{tpu_custom_call.1} parent=1 // pred_check
      _
    $region115: #{tpu_custom_call.1} parent=1 // pred_check_branch
      %3353 = sbr.rel (0) target = $region117
    $region116: #{tpu_custom_call.1} parent=1 // pred_region
      %3354 = dma.done [#allocation4], 2048
    $region117: #{tpu_custom_call.1} parent=1 // pred_fallthru
      _
    %3355 = vsyncpa [#allocation3], 1
    %3356 = vsyncpa [#allocation6], 1
    %3357 = vsyncpa [#allocation9], 1
    %3358 = vsyncpa [#allocation12], 1
    %3359 = vsyncpa [#allocation15], 1
    %3360 = vsyncpa [#allocation18], 1
    %3361 = vsyncpa [#allocation4], 1

</llo_original>
